<compile_context>
chip_gen: v7x
topology: tpu7x:2x2x1
jax: 0.10.0
libtpu: 0.0.40
codegen_flags: <defaults>
</compile_context>

<pallas_src>
import math
import functools

import jax
import jax.numpy as jnp
from jax.experimental import pallas as pl
from jax.experimental.pallas import tpu as pltpu

# ----------------------------- config (small) -------------------------------
VOCAB = 64
D_MODEL = 32
NUM_HEADS = 4
NUM_LAYERS = 2
D_FF = 64
MAX_SEQ = 16
BATCH = 2
SEQ = 8
EPS = 1e-5  # nn.LayerNorm default


# --------------------------- kernel helpers ----------------------------------
def _layer_norm(y, g, b):
    """f32 LayerNorm matching torch defaults (biased var, eps=1e-5)."""
    mu = jnp.mean(y, axis=-1, keepdims=True)
    var = jnp.mean((y - mu) ** 2, axis=-1, keepdims=True)
    return (y - mu) * jax.lax.rsqrt(var + EPS) * g + b


def _mm(a, w_bf16, b=None):
    """bf16 MXU matmul with f32 accumulation; optional f32 bias add."""
    out = jnp.dot(a.astype(jnp.bfloat16), w_bf16,
                  preferred_element_type=jnp.float32)
    return out if b is None else out + b


# ----------------------------- fused kernel ----------------------------------
def fused_forward_kernel(tgt_ref, emb_ref, pe_ref,
                         wqkv_ref, bqkv_ref, wo_ref, bo_ref, ln_ref,
                         w1_ref, b1_ref, w2_ref, b2_ref, fcw_ref, fcb_ref,
                         o_ref, x_scr,
                         *, num_layers, num_heads, batch, seq):
    B, S, H = batch, seq, num_heads
    N = B * S
    D = emb_ref.shape[1]
    Dh = D // H

    # ---- fused embedding gather + positional encoding (token ids in SMEM) ---
    for n in range(N):                      # static unroll, N = 16 rows
        b, s = divmod(n, S)
        tok = tgt_ref[b, s]                 # scalar int32 from SMEM
        x_scr[pl.ds(n, 1), :] = (emb_ref[pl.ds(tok, 1), :]
                                 + pe_ref[pl.ds(s, 1), :])
    x = x_scr[...]                          # (N, D) f32
    # dropout(p=0.1) after pos-enc is identity at inference time

    # ---- additive causal ("no-peek") bias, built in-kernel ------------------
    row = jax.lax.broadcasted_iota(jnp.int32, (S, S), 0)
    col = jax.lax.broadcasted_iota(jnp.int32, (S, S), 1)
    causal_bias = jnp.where(col <= row, 0.0, -1e9).astype(jnp.float32)[None]

    # ---- per-head lane masks (head split stays on lanes: no XLU relayouts) --
    lane = jax.lax.broadcasted_iota(jnp.int32, (1, 1, D), 2)
    head_masks = [
        jnp.where((lane >= h * Dh) & (lane < (h + 1) * Dh), 1.0, 0.0
                  ).astype(jnp.bfloat16)
        for h in range(H)
    ]

    for li in range(num_layers):            # static, unrolled
        # fused QKV projection; 1/sqrt(Dh) already folded into the Q third
        qkv = _mm(x, wqkv_ref[li], bqkv_ref[li])              # (N, 3D) f32
        q = qkv[:, 0:D].reshape(B, S, D).astype(jnp.bfloat16)
        k = qkv[:, D:2 * D].reshape(B, S, D).astype(jnp.bfloat16)
        v = qkv[:, 2 * D:3 * D].reshape(B, S, D).astype(jnp.bfloat16)

        # multi-head attention via lane masking:
        #   scores_h  = (q .* mask_h) @ k^T    (cross-head terms vanish)
        #   context  += softmax_h @ (v .* mask_h)   (disjoint output lanes)
        ctx = jnp.zeros((B, S, D), jnp.float32)
        for h in range(H):
            mh = head_masks[h]
            sc = jnp.einsum('bqd,bkd->bqk', q * mh, k,
                            preferred_element_type=jnp.float32)
            sc = sc + causal_bias
            m = jnp.max(sc, axis=-1, keepdims=True)
            e = jnp.exp(sc - m)
            p = e / jnp.sum(e, axis=-1, keepdims=True)        # exact softmax
            ctx = ctx + jnp.einsum('bqk,bkd->bqd', p.astype(jnp.bfloat16),
                                   v * mh,
                                   preferred_element_type=jnp.float32)
        attn = ctx.reshape(N, D)                              # free reshape
        attn_out = _mm(attn, wo_ref[li], bo_ref[li])          # (N,D)@(D,D)

        # ---- residual + LayerNorm 1 ----
        ln = ln_ref[li]                                       # (4, D)
        x1 = _layer_norm(x + attn_out, ln[0:1, :], ln[1:2, :])

        # ---- position-wise feed-forward (Linear -> ReLU -> Linear) ----
        h1 = jnp.maximum(_mm(x1, w1_ref[li], b1_ref[li]), 0.0)  # (N, D_FF)
        ff = _mm(h1, w2_ref[li], b2_ref[li])                    # (N, D)

        # ---- residual + LayerNorm 2 ----
        x = _layer_norm(x1 + ff, ln[2:3, :], ln[3:4, :])

    # ---- final vocab projection, written directly as (B, S, VOCAB) ----------
    logits = _mm(x, fcw_ref[...], fcb_ref[...])               # (N, VOCAB) f32
    o_ref[...] = logits.reshape(B, S, -1)


# ------------------------------ wrapper ---------------------------------------
def forward(tgt, params):
    # tgt: (B, S) int32 token ids. Single pallas_call = the entire forward.
    B, S = tgt.shape
    kernel = functools.partial(
        fused_forward_kernel, num_layers=NUM_LAYERS, num_heads=NUM_HEADS,
        batch=B, seq=S)

    vmem = pl.BlockSpec(memory_space=pltpu.MemorySpace.VMEM)
    smem = pl.BlockSpec(memory_space=pltpu.MemorySpace.SMEM)

    return pl.pallas_call(
        kernel,
        out_shape=jax.ShapeDtypeStruct((B, S, VOCAB), jnp.float32),
        in_specs=[smem] + [vmem] * 13,          # token ids -> SMEM, rest VMEM
        out_specs=vmem,
        scratch_shapes=[pltpu.VMEM((B * S, D_MODEL), jnp.float32)],
        compiler_params=pltpu.CompilerParams(
            vmem_limit_bytes=32 * 1024 * 1024),
        # Grid-less on purpose: at B*S = 16 the ~0.35us/step grid overhead
        # would dominate.  On v7x, introduce a 'parallel' row-tile grid axis
        # only once the batch is large enough to feed both TensorCores.
    )(tgt, params['emb'], params['pe'],
      params['wqkv'], params['bqkv'], params['wo'], params['bo'], params['ln'],
      params['w1'], params['b1'], params['w2'], params['b2'],
      params['fc_w'], params['fc_b'])


# ----------------------- params / glue (plain JAX) ---------------------------
def make_positional_encoding(max_len, d_model):
    pos = jnp.arange(max_len, dtype=jnp.float32)[:, None]
    div = jnp.exp(jnp.arange(0, d_model, 2, dtype=jnp.float32)
                  * (-math.log(10000.0) / d_model))
    pe = jnp.zeros((max_len, d_model), jnp.float32)
    pe = pe.at[:, 0::2].set(jnp.sin(pos * div))
    pe = pe.at[:, 1::2].set(jnp.cos(pos * div))
    return pe


def init_params(key):
    def nrm(k, shape, s=0.05):
        return jax.random.normal(k, shape, jnp.float32) * s

    keys = jax.random.split(key, NUM_LAYERS + 2)
    dh = D_MODEL // NUM_HEADS
    q_scale = 1.0 / math.sqrt(dh)            # folded into Q weights/bias

    params = {
        'emb': nrm(keys[0], (VOCAB, D_MODEL), 0.02),
        'pe': make_positional_encoding(MAX_SEQ, D_MODEL),   # (MAX_SEQ, D) f32
    }

    wqkv, bqkv, wo, bo, ln, w1, b1, w2, b2 = ([] for _ in range(9))
    for li in range(NUM_LAYERS):
        ks = jax.random.split(keys[1 + li], 6)
        wq = nrm(ks[0], (D_MODEL, D_MODEL)) * q_scale        # scale folded in
        wk = nrm(ks[1], (D_MODEL, D_MODEL))
        wv = nrm(ks[2], (D_MODEL, D_MODEL))
        wqkv.append(jnp.concatenate([wq, wk, wv], axis=1))   # (D, 3D)
        bq = jnp.zeros((1, D_MODEL), jnp.float32) * q_scale  # scaled q bias
        bqkv.append(jnp.concatenate(
            [bq, jnp.zeros((1, D_MODEL), jnp.float32),
             jnp.zeros((1, D_MODEL), jnp.float32)], axis=1))  # (1, 3D)
        wo.append(nrm(ks[3], (D_MODEL, D_MODEL)))
        bo.append(jnp.zeros((1, D_MODEL), jnp.float32))
        ln.append(jnp.stack([jnp.ones((D_MODEL,), jnp.float32),    # ln1 gamma
                             jnp.zeros((D_MODEL,), jnp.float32),   # ln1 beta
                             jnp.ones((D_MODEL,), jnp.float32),    # ln2 gamma
                             jnp.zeros((D_MODEL,), jnp.float32)])) # ln2 beta
        w1.append(nrm(ks[4], (D_MODEL, D_FF)))
        b1.append(jnp.zeros((1, D_FF), jnp.float32))
        w2.append(nrm(ks[5], (D_FF, D_MODEL)))
        b2.append(jnp.zeros((1, D_MODEL), jnp.float32))

    params.update({
        'wqkv': jnp.stack(wqkv).astype(jnp.bfloat16),   # (L, D, 3D)
        'bqkv': jnp.stack(bqkv),                        # (L, 1, 3D) f32
        'wo':   jnp.stack(wo).astype(jnp.bfloat16),     # (L, D, D)
        'bo':   jnp.stack(bo),                          # (L, 1, D)  f32
        'ln':   jnp.stack(ln).astype(jnp.float32),      # (L, 4, D)  f32
        'w1':   jnp.stack(w1).astype(jnp.bfloat16),     # (L, D, D_FF)
        'b1':   jnp.stack(b1),                          # (L, 1, D_FF) f32
        'w2':   jnp.stack(w2).astype(jnp.bfloat16),     # (L, D_FF, D)
        'b2':   jnp.stack(b2),                          # (L, 1, D)  f32
        'fc_w': nrm(keys[-1], (D_MODEL, VOCAB)).astype(jnp.bfloat16),
        'fc_b': jnp.zeros((1, VOCAB), jnp.float32),
    })
    return params


# --------------------------------- main ---------------------------------------
if __name__ == "__main__":
    key = jax.random.PRNGKey(0)
    k_par, k_tok = jax.random.split(key)
    params = init_params(k_par)
    tgt = jax.random.randint(k_tok, (BATCH, SEQ), 0, VOCAB, dtype=jnp.int32)

    logits = forward(tgt, params)
    jax.block_until_ready(logits)
    assert logits.shape == (BATCH, SEQ, VOCAB)
    assert bool(jnp.all(jnp.isfinite(logits)))
    print("KERNEL_OK")
</pallas_src>

<mosaic_0001>
module attributes {stable_mosaic.version = 11 : i64} {
  func.func @fused_forward_kernel(%arg0: memref<2x8xi32, #tpu.memory_space<smem>>, %arg1: memref<64x32xf32, #tpu.memory_space<vmem>>, %arg2: memref<16x32xf32, #tpu.memory_space<vmem>>, %arg3: memref<2x32x96xbf16, #tpu.memory_space<vmem>>, %arg4: memref<2x1x96xf32, #tpu.memory_space<vmem>>, %arg5: memref<2x32x32xbf16, #tpu.memory_space<vmem>>, %arg6: memref<2x1x32xf32, #tpu.memory_space<vmem>>, %arg7: memref<2x4x32xf32, #tpu.memory_space<vmem>>, %arg8: memref<2x32x64xbf16, #tpu.memory_space<vmem>>, %arg9: memref<2x1x64xf32, #tpu.memory_space<vmem>>, %arg10: memref<2x64x32xbf16, #tpu.memory_space<vmem>>, %arg11: memref<2x1x32xf32, #tpu.memory_space<vmem>>, %arg12: memref<32x64xbf16, #tpu.memory_space<vmem>>, %arg13: memref<1x64xf32, #tpu.memory_space<vmem>>, %arg14: memref<2x8x64xf32, #tpu.memory_space<vmem>>, %arg15: memref<16x32xf32, #tpu.memory_space<vmem>>) attributes {dimension_semantics = [], scalar_prefetch = 0 : i64, scratch_operands = 1 : i64, tpu.core_type = #tpu.core_type<tc>} {
    %c0 = arith.constant 0 : index
    %c0_0 = arith.constant 0 : index
    %0 = memref.load %arg0[%c0, %c0_0] : memref<2x8xi32, #tpu.memory_space<smem>>
    %1 = arith.index_cast %0 : i32 to index
    %c0_1 = arith.constant 0 : index
    %2 = vector.load %arg1[%1, %c0_1] : memref<64x32xf32, #tpu.memory_space<vmem>>, vector<1x32xf32>
    %c0_2 = arith.constant 0 : index
    %c0_3 = arith.constant 0 : index
    %3 = vector.load %arg2[%c0_2, %c0_3] : memref<16x32xf32, #tpu.memory_space<vmem>>, vector<1x32xf32>
    %4 = arith.addf %2, %3 : vector<1x32xf32>
    %c0_4 = arith.constant 0 : index
    %c0_5 = arith.constant 0 : index
    %5 = vector.load %arg15[%c0_4, %c0_5] : memref<16x32xf32, #tpu.memory_space<vmem>>, vector<1x32xf32>
    tpu.vector_store %arg15[%c0_4, %c0_5], %4 {strides = array<i32>} : memref<16x32xf32, #tpu.memory_space<vmem>>, vector<1x32xf32>,
    %c0_6 = arith.constant 0 : index
    %c1 = arith.constant 1 : index
    %6 = memref.load %arg0[%c0_6, %c1] : memref<2x8xi32, #tpu.memory_space<smem>>
    %7 = arith.index_cast %6 : i32 to index
    %c0_7 = arith.constant 0 : index
    %8 = vector.load %arg1[%7, %c0_7] : memref<64x32xf32, #tpu.memory_space<vmem>>, vector<1x32xf32>
    %c1_8 = arith.constant 1 : index
    %c0_9 = arith.constant 0 : index
    %9 = vector.load %arg2[%c1_8, %c0_9] : memref<16x32xf32, #tpu.memory_space<vmem>>, vector<1x32xf32>
    %10 = arith.addf %8, %9 : vector<1x32xf32>
    %c1_10 = arith.constant 1 : index
    %c0_11 = arith.constant 0 : index
    %11 = vector.load %arg15[%c1_10, %c0_11] : memref<16x32xf32, #tpu.memory_space<vmem>>, vector<1x32xf32>
    tpu.vector_store %arg15[%c1_10, %c0_11], %10 {strides = array<i32>} : memref<16x32xf32, #tpu.memory_space<vmem>>, vector<1x32xf32>,
    %c0_12 = arith.constant 0 : index
    %c2 = arith.constant 2 : index
    %12 = memref.load %arg0[%c0_12, %c2] : memref<2x8xi32, #tpu.memory_space<smem>>
    %13 = arith.index_cast %12 : i32 to index
    %c0_13 = arith.constant 0 : index
    %14 = vector.load %arg1[%13, %c0_13] : memref<64x32xf32, #tpu.memory_space<vmem>>, vector<1x32xf32>
    %c2_14 = arith.constant 2 : index
    %c0_15 = arith.constant 0 : index
    %15 = vector.load %arg2[%c2_14, %c0_15] : memref<16x32xf32, #tpu.memory_space<vmem>>, vector<1x32xf32>
    %16 = arith.addf %14, %15 : vector<1x32xf32>
    %c2_16 = arith.constant 2 : index
    %c0_17 = arith.constant 0 : index
    %17 = vector.load %arg15[%c2_16, %c0_17] : memref<16x32xf32, #tpu.memory_space<vmem>>, vector<1x32xf32>
    tpu.vector_store %arg15[%c2_16, %c0_17], %16 {strides = array<i32>} : memref<16x32xf32, #tpu.memory_space<vmem>>, vector<1x32xf32>,
    %c0_18 = arith.constant 0 : index
    %c3 = arith.constant 3 : index
    %18 = memref.load %arg0[%c0_18, %c3] : memref<2x8xi32, #tpu.memory_space<smem>>
    %19 = arith.index_cast %18 : i32 to index
    %c0_19 = arith.constant 0 : index
    %20 = vector.load %arg1[%19, %c0_19] : memref<64x32xf32, #tpu.memory_space<vmem>>, vector<1x32xf32>
    %c3_20 = arith.constant 3 : index
    %c0_21 = arith.constant 0 : index
    %21 = vector.load %arg2[%c3_20, %c0_21] : memref<16x32xf32, #tpu.memory_space<vmem>>, vector<1x32xf32>
    %22 = arith.addf %20, %21 : vector<1x32xf32>
    %c3_22 = arith.constant 3 : index
    %c0_23 = arith.constant 0 : index
    %23 = vector.load %arg15[%c3_22, %c0_23] : memref<16x32xf32, #tpu.memory_space<vmem>>, vector<1x32xf32>
    tpu.vector_store %arg15[%c3_22, %c0_23], %22 {strides = array<i32>} : memref<16x32xf32, #tpu.memory_space<vmem>>, vector<1x32xf32>,
    %c0_24 = arith.constant 0 : index
    %c4 = arith.constant 4 : index
    %24 = memref.load %arg0[%c0_24, %c4] : memref<2x8xi32, #tpu.memory_space<smem>>
    %25 = arith.index_cast %24 : i32 to index
    %c0_25 = arith.constant 0 : index
    %26 = vector.load %arg1[%25, %c0_25] : memref<64x32xf32, #tpu.memory_space<vmem>>, vector<1x32xf32>
    %c4_26 = arith.constant 4 : index
    %c0_27 = arith.constant 0 : index
    %27 = vector.load %arg2[%c4_26, %c0_27] : memref<16x32xf32, #tpu.memory_space<vmem>>, vector<1x32xf32>
    %28 = arith.addf %26, %27 : vector<1x32xf32>
    %c4_28 = arith.constant 4 : index
    %c0_29 = arith.constant 0 : index
    %29 = vector.load %arg15[%c4_28, %c0_29] : memref<16x32xf32, #tpu.memory_space<vmem>>, vector<1x32xf32>
    tpu.vector_store %arg15[%c4_28, %c0_29], %28 {strides = array<i32>} : memref<16x32xf32, #tpu.memory_space<vmem>>, vector<1x32xf32>,
    %c0_30 = arith.constant 0 : index
    %c5 = arith.constant 5 : index
    %30 = memref.load %arg0[%c0_30, %c5] : memref<2x8xi32, #tpu.memory_space<smem>>
    %31 = arith.index_cast %30 : i32 to index
    %c0_31 = arith.constant 0 : index
    %32 = vector.load %arg1[%31, %c0_31] : memref<64x32xf32, #tpu.memory_space<vmem>>, vector<1x32xf32>
    %c5_32 = arith.constant 5 : index
    %c0_33 = arith.constant 0 : index
    %33 = vector.load %arg2[%c5_32, %c0_33] : memref<16x32xf32, #tpu.memory_space<vmem>>, vector<1x32xf32>
    %34 = arith.addf %32, %33 : vector<1x32xf32>
    %c5_34 = arith.constant 5 : index
    %c0_35 = arith.constant 0 : index
    %35 = vector.load %arg15[%c5_34, %c0_35] : memref<16x32xf32, #tpu.memory_space<vmem>>, vector<1x32xf32>
    tpu.vector_store %arg15[%c5_34, %c0_35], %34 {strides = array<i32>} : memref<16x32xf32, #tpu.memory_space<vmem>>, vector<1x32xf32>,
    %c0_36 = arith.constant 0 : index
    %c6 = arith.constant 6 : index
    %36 = memref.load %arg0[%c0_36, %c6] : memref<2x8xi32, #tpu.memory_space<smem>>
    %37 = arith.index_cast %36 : i32 to index
    %c0_37 = arith.constant 0 : index
    %38 = vector.load %arg1[%37, %c0_37] : memref<64x32xf32, #tpu.memory_space<vmem>>, vector<1x32xf32>
    %c6_38 = arith.constant 6 : index
    %c0_39 = arith.constant 0 : index
    %39 = vector.load %arg2[%c6_38, %c0_39] : memref<16x32xf32, #tpu.memory_space<vmem>>, vector<1x32xf32>
    %40 = arith.addf %38, %39 : vector<1x32xf32>
    %c6_40 = arith.constant 6 : index
    %c0_41 = arith.constant 0 : index
    %41 = vector.load %arg15[%c6_40, %c0_41] : memref<16x32xf32, #tpu.memory_space<vmem>>, vector<1x32xf32>
    tpu.vector_store %arg15[%c6_40, %c0_41], %40 {strides = array<i32>} : memref<16x32xf32, #tpu.memory_space<vmem>>, vector<1x32xf32>,
    %c0_42 = arith.constant 0 : index
    %c7 = arith.constant 7 : index
    %42 = memref.load %arg0[%c0_42, %c7] : memref<2x8xi32, #tpu.memory_space<smem>>
    %43 = arith.index_cast %42 : i32 to index
    %c0_43 = arith.constant 0 : index
    %44 = vector.load %arg1[%43, %c0_43] : memref<64x32xf32, #tpu.memory_space<vmem>>, vector<1x32xf32>
    %c7_44 = arith.constant 7 : index
    %c0_45 = arith.constant 0 : index
    %45 = vector.load %arg2[%c7_44, %c0_45] : memref<16x32xf32, #tpu.memory_space<vmem>>, vector<1x32xf32>
    %46 = arith.addf %44, %45 : vector<1x32xf32>
    %c7_46 = arith.constant 7 : index
    %c0_47 = arith.constant 0 : index
    %47 = vector.load %arg15[%c7_46, %c0_47] : memref<16x32xf32, #tpu.memory_space<vmem>>, vector<1x32xf32>
    tpu.vector_store %arg15[%c7_46, %c0_47], %46 {strides = array<i32>} : memref<16x32xf32, #tpu.memory_space<vmem>>, vector<1x32xf32>,
    %c1_48 = arith.constant 1 : index
    %c0_49 = arith.constant 0 : index
    %48 = memref.load %arg0[%c1_48, %c0_49] : memref<2x8xi32, #tpu.memory_space<smem>>
    %49 = arith.index_cast %48 : i32 to index
    %c0_50 = arith.constant 0 : index
    %50 = vector.load %arg1[%49, %c0_50] : memref<64x32xf32, #tpu.memory_space<vmem>>, vector<1x32xf32>
    %c0_51 = arith.constant 0 : index
    %c0_52 = arith.constant 0 : index
    %51 = vector.load %arg2[%c0_51, %c0_52] : memref<16x32xf32, #tpu.memory_space<vmem>>, vector<1x32xf32>
    %52 = arith.addf %50, %51 : vector<1x32xf32>
    %c8 = arith.constant 8 : index
    %c0_53 = arith.constant 0 : index
    %53 = vector.load %arg15[%c8, %c0_53] : memref<16x32xf32, #tpu.memory_space<vmem>>, vector<1x32xf32>
    tpu.vector_store %arg15[%c8, %c0_53], %52 {strides = array<i32>} : memref<16x32xf32, #tpu.memory_space<vmem>>, vector<1x32xf32>,
    %c1_54 = arith.constant 1 : index
    %c1_55 = arith.constant 1 : index
    %54 = memref.load %arg0[%c1_54, %c1_55] : memref<2x8xi32, #tpu.memory_space<smem>>
    %55 = arith.index_cast %54 : i32 to index
    %c0_56 = arith.constant 0 : index
    %56 = vector.load %arg1[%55, %c0_56] : memref<64x32xf32, #tpu.memory_space<vmem>>, vector<1x32xf32>
    %c1_57 = arith.constant 1 : index
    %c0_58 = arith.constant 0 : index
    %57 = vector.load %arg2[%c1_57, %c0_58] : memref<16x32xf32, #tpu.memory_space<vmem>>, vector<1x32xf32>
    %58 = arith.addf %56, %57 : vector<1x32xf32>
    %c9 = arith.constant 9 : index
    %c0_59 = arith.constant 0 : index
    %59 = vector.load %arg15[%c9, %c0_59] : memref<16x32xf32, #tpu.memory_space<vmem>>, vector<1x32xf32>
    tpu.vector_store %arg15[%c9, %c0_59], %58 {strides = array<i32>} : memref<16x32xf32, #tpu.memory_space<vmem>>, vector<1x32xf32>,
    %c1_60 = arith.constant 1 : index
    %c2_61 = arith.constant 2 : index
    %60 = memref.load %arg0[%c1_60, %c2_61] : memref<2x8xi32, #tpu.memory_space<smem>>
    %61 = arith.index_cast %60 : i32 to index
    %c0_62 = arith.constant 0 : index
    %62 = vector.load %arg1[%61, %c0_62] : memref<64x32xf32, #tpu.memory_space<vmem>>, vector<1x32xf32>
    %c2_63 = arith.constant 2 : index
    %c0_64 = arith.constant 0 : index
    %63 = vector.load %arg2[%c2_63, %c0_64] : memref<16x32xf32, #tpu.memory_space<vmem>>, vector<1x32xf32>
    %64 = arith.addf %62, %63 : vector<1x32xf32>
    %c10 = arith.constant 10 : index
    %c0_65 = arith.constant 0 : index
    %65 = vector.load %arg15[%c10, %c0_65] : memref<16x32xf32, #tpu.memory_space<vmem>>, vector<1x32xf32>
    tpu.vector_store %arg15[%c10, %c0_65], %64 {strides = array<i32>} : memref<16x32xf32, #tpu.memory_space<vmem>>, vector<1x32xf32>,
    %c1_66 = arith.constant 1 : index
    %c3_67 = arith.constant 3 : index
    %66 = memref.load %arg0[%c1_66, %c3_67] : memref<2x8xi32, #tpu.memory_space<smem>>
    %67 = arith.index_cast %66 : i32 to index
    %c0_68 = arith.constant 0 : index
    %68 = vector.load %arg1[%67, %c0_68] : memref<64x32xf32, #tpu.memory_space<vmem>>, vector<1x32xf32>
    %c3_69 = arith.constant 3 : index
    %c0_70 = arith.constant 0 : index
    %69 = vector.load %arg2[%c3_69, %c0_70] : memref<16x32xf32, #tpu.memory_space<vmem>>, vector<1x32xf32>
    %70 = arith.addf %68, %69 : vector<1x32xf32>
    %c11 = arith.constant 11 : index
    %c0_71 = arith.constant 0 : index
    %71 = vector.load %arg15[%c11, %c0_71] : memref<16x32xf32, #tpu.memory_space<vmem>>, vector<1x32xf32>
    tpu.vector_store %arg15[%c11, %c0_71], %70 {strides = array<i32>} : memref<16x32xf32, #tpu.memory_space<vmem>>, vector<1x32xf32>,
    %c1_72 = arith.constant 1 : index
    %c4_73 = arith.constant 4 : index
    %72 = memref.load %arg0[%c1_72, %c4_73] : memref<2x8xi32, #tpu.memory_space<smem>>
    %73 = arith.index_cast %72 : i32 to index
    %c0_74 = arith.constant 0 : index
    %74 = vector.load %arg1[%73, %c0_74] : memref<64x32xf32, #tpu.memory_space<vmem>>, vector<1x32xf32>
    %c4_75 = arith.constant 4 : index
    %c0_76 = arith.constant 0 : index
    %75 = vector.load %arg2[%c4_75, %c0_76] : memref<16x32xf32, #tpu.memory_space<vmem>>, vector<1x32xf32>
    %76 = arith.addf %74, %75 : vector<1x32xf32>
    %c12 = arith.constant 12 : index
    %c0_77 = arith.constant 0 : index
    %77 = vector.load %arg15[%c12, %c0_77] : memref<16x32xf32, #tpu.memory_space<vmem>>, vector<1x32xf32>
    tpu.vector_store %arg15[%c12, %c0_77], %76 {strides = array<i32>} : memref<16x32xf32, #tpu.memory_space<vmem>>, vector<1x32xf32>,
    %c1_78 = arith.constant 1 : index
    %c5_79 = arith.constant 5 : index
    %78 = memref.load %arg0[%c1_78, %c5_79] : memref<2x8xi32, #tpu.memory_space<smem>>
    %79 = arith.index_cast %78 : i32 to index
    %c0_80 = arith.constant 0 : index
    %80 = vector.load %arg1[%79, %c0_80] : memref<64x32xf32, #tpu.memory_space<vmem>>, vector<1x32xf32>
    %c5_81 = arith.constant 5 : index
    %c0_82 = arith.constant 0 : index
    %81 = vector.load %arg2[%c5_81, %c0_82] : memref<16x32xf32, #tpu.memory_space<vmem>>, vector<1x32xf32>
    %82 = arith.addf %80, %81 : vector<1x32xf32>
    %c13 = arith.constant 13 : index
    %c0_83 = arith.constant 0 : index
    %83 = vector.load %arg15[%c13, %c0_83] : memref<16x32xf32, #tpu.memory_space<vmem>>, vector<1x32xf32>
    tpu.vector_store %arg15[%c13, %c0_83], %82 {strides = array<i32>} : memref<16x32xf32, #tpu.memory_space<vmem>>, vector<1x32xf32>,
    %c1_84 = arith.constant 1 : index
    %c6_85 = arith.constant 6 : index
    %84 = memref.load %arg0[%c1_84, %c6_85] : memref<2x8xi32, #tpu.memory_space<smem>>
    %85 = arith.index_cast %84 : i32 to index
    %c0_86 = arith.constant 0 : index
    %86 = vector.load %arg1[%85, %c0_86] : memref<64x32xf32, #tpu.memory_space<vmem>>, vector<1x32xf32>
    %c6_87 = arith.constant 6 : index
    %c0_88 = arith.constant 0 : index
    %87 = vector.load %arg2[%c6_87, %c0_88] : memref<16x32xf32, #tpu.memory_space<vmem>>, vector<1x32xf32>
    %88 = arith.addf %86, %87 : vector<1x32xf32>
    %c14 = arith.constant 14 : index
    %c0_89 = arith.constant 0 : index
    %89 = vector.load %arg15[%c14, %c0_89] : memref<16x32xf32, #tpu.memory_space<vmem>>, vector<1x32xf32>
    tpu.vector_store %arg15[%c14, %c0_89], %88 {strides = array<i32>} : memref<16x32xf32, #tpu.memory_space<vmem>>, vector<1x32xf32>,
    %c1_90 = arith.constant 1 : index
    %c7_91 = arith.constant 7 : index
    %90 = memref.load %arg0[%c1_90, %c7_91] : memref<2x8xi32, #tpu.memory_space<smem>>
    %91 = arith.index_cast %90 : i32 to index
    %c0_92 = arith.constant 0 : index
    %92 = vector.load %arg1[%91, %c0_92] : memref<64x32xf32, #tpu.memory_space<vmem>>, vector<1x32xf32>
    %c7_93 = arith.constant 7 : index
    %c0_94 = arith.constant 0 : index
    %93 = vector.load %arg2[%c7_93, %c0_94] : memref<16x32xf32, #tpu.memory_space<vmem>>, vector<1x32xf32>
    %94 = arith.addf %92, %93 : vector<1x32xf32>
    %c15 = arith.constant 15 : index
    %c0_95 = arith.constant 0 : index
    %95 = vector.load %arg15[%c15, %c0_95] : memref<16x32xf32, #tpu.memory_space<vmem>>, vector<1x32xf32>
    tpu.vector_store %arg15[%c15, %c0_95], %94 {strides = array<i32>} : memref<16x32xf32, #tpu.memory_space<vmem>>, vector<1x32xf32>,
    %c0_96 = arith.constant 0 : index
    %c0_97 = arith.constant 0 : index
    %96 = vector.load %arg15[%c0_96, %c0_97] : memref<16x32xf32, #tpu.memory_space<vmem>>, vector<16x32xf32>
    %97 = tpu.iota {dimensions = array<i32: 0>} : vector<8x8xi32>
    %98 = tpu.iota {dimensions = array<i32: 1>} : vector<8x8xi32>
    %99 = arith.cmpi sle, %98, %97 : vector<8x8xi32>
    %cst = arith.constant 0.000000e+00 : f32
    %cst_98 = arith.constant -1.000000e+09 : f32
    %100 = vector.broadcast %cst : f32 to vector<8x8xf32>
    %101 = vector.broadcast %cst_98 : f32 to vector<8x8xf32>
    %102 = arith.select %99, %100, %101 : vector<8x8xi1>, vector<8x8xf32>
    %103 = vector.shape_cast %102 : vector<8x8xf32> to vector<1x8x8xf32>
    %104 = tpu.iota {dimensions = array<i32: 2>} : vector<1x1x32xi32>
    %c0_i32 = arith.constant 0 : i32
    %105 = vector.broadcast %c0_i32 : i32 to vector<1x1x32xi32>
    %106 = arith.cmpi sge, %104, %105 : vector<1x1x32xi32>
    %c8_i32 = arith.constant 8 : i32
    %107 = vector.broadcast %c8_i32 : i32 to vector<1x1x32xi32>
    %108 = arith.cmpi slt, %104, %107 : vector<1x1x32xi32>
    %109 = arith.andi %106, %108 : vector<1x1x32xi1>
    %cst_99 = arith.constant 1.000000e+00 : f32
    %cst_100 = arith.constant 0.000000e+00 : f32
    %110 = vector.broadcast %cst_99 : f32 to vector<1x1x32xf32>
    %111 = vector.broadcast %cst_100 : f32 to vector<1x1x32xf32>
    %112 = arith.select %109, %110, %111 : vector<1x1x32xi1>, vector<1x1x32xf32>
    %113 = arith.truncf %112 : vector<1x1x32xf32> to vector<1x1x32xbf16>
    %c8_i32_101 = arith.constant 8 : i32
    %114 = vector.broadcast %c8_i32_101 : i32 to vector<1x1x32xi32>
    %115 = arith.cmpi sge, %104, %114 : vector<1x1x32xi32>
    %c16_i32 = arith.constant 16 : i32
    %116 = vector.broadcast %c16_i32 : i32 to vector<1x1x32xi32>
    %117 = arith.cmpi slt, %104, %116 : vector<1x1x32xi32>
    %118 = arith.andi %115, %117 : vector<1x1x32xi1>
    %cst_102 = arith.constant 1.000000e+00 : f32
    %cst_103 = arith.constant 0.000000e+00 : f32
    %119 = vector.broadcast %cst_102 : f32 to vector<1x1x32xf32>
    %120 = vector.broadcast %cst_103 : f32 to vector<1x1x32xf32>
    %121 = arith.select %118, %119, %120 : vector<1x1x32xi1>, vector<1x1x32xf32>
    %122 = arith.truncf %121 : vector<1x1x32xf32> to vector<1x1x32xbf16>
    %c16_i32_104 = arith.constant 16 : i32
    %123 = vector.broadcast %c16_i32_104 : i32 to vector<1x1x32xi32>
    %124 = arith.cmpi sge, %104, %123 : vector<1x1x32xi32>
    %c24_i32 = arith.constant 24 : i32
    %125 = vector.broadcast %c24_i32 : i32 to vector<1x1x32xi32>
    %126 = arith.cmpi slt, %104, %125 : vector<1x1x32xi32>
    %127 = arith.andi %124, %126 : vector<1x1x32xi1>
    %cst_105 = arith.constant 1.000000e+00 : f32
    %cst_106 = arith.constant 0.000000e+00 : f32
    %128 = vector.broadcast %cst_105 : f32 to vector<1x1x32xf32>
    %129 = vector.broadcast %cst_106 : f32 to vector<1x1x32xf32>
    %130 = arith.select %127, %128, %129 : vector<1x1x32xi1>, vector<1x1x32xf32>
    %131 = arith.truncf %130 : vector<1x1x32xf32> to vector<1x1x32xbf16>
    %c24_i32_107 = arith.constant 24 : i32
    %132 = vector.broadcast %c24_i32_107 : i32 to vector<1x1x32xi32>
    %133 = arith.cmpi sge, %104, %132 : vector<1x1x32xi32>
    %c32_i32 = arith.constant 32 : i32
    %134 = vector.broadcast %c32_i32 : i32 to vector<1x1x32xi32>
    %135 = arith.cmpi slt, %104, %134 : vector<1x1x32xi32>
    %136 = arith.andi %133, %135 : vector<1x1x32xi1>
    %cst_108 = arith.constant 1.000000e+00 : f32
    %cst_109 = arith.constant 0.000000e+00 : f32
    %137 = vector.broadcast %cst_108 : f32 to vector<1x1x32xf32>
    %138 = vector.broadcast %cst_109 : f32 to vector<1x1x32xf32>
    %139 = arith.select %136, %137, %138 : vector<1x1x32xi1>, vector<1x1x32xf32>
    %140 = arith.truncf %139 : vector<1x1x32xf32> to vector<1x1x32xbf16>
    %c0_110 = arith.constant 0 : index
    %c0_111 = arith.constant 0 : index
    %c0_112 = arith.constant 0 : index
    %141 = vector.load %arg3[%c0_110, %c0_111, %c0_112] : memref<2x32x96xbf16, #tpu.memory_space<vmem>>, vector<1x32x96xbf16>
    %142 = vector.shape_cast %141 : vector<1x32x96xbf16> to vector<32x96xbf16>
    %c0_113 = arith.constant 0 : index
    %c0_114 = arith.constant 0 : index
    %c0_115 = arith.constant 0 : index
    %143 = vector.load %arg4[%c0_113, %c0_114, %c0_115] : memref<2x1x96xf32, #tpu.memory_space<vmem>>, vector<1x1x96xf32>
    %144 = vector.shape_cast %143 : vector<1x1x96xf32> to vector<1x96xf32>
    %145 = arith.truncf %96 : vector<16x32xf32> to vector<16x32xbf16>
    %cst_116 = arith.constant dense<0.000000e+00> : vector<16x96xf32>
    %146 = tpu.matmul %145, %142, %cst_116 {dimension_numbers = #tpu.dot_dimension_numbers<[1], [0], [0], [1], [0, 0, 1, 1], [], []>} : vector<16x32xbf16>, vector<32x96xbf16>, vector<16x96xf32> -> vector<16x96xf32>
    %147 = vector.broadcast %144 : vector<1x96xf32> to vector<16x96xf32>
    %148 = arith.addf %146, %147 : vector<16x96xf32>
    %149 = vector.extract_strided_slice %148 {offsets = [0, 0], sizes = [16, 32], strides = [1, 1]} : vector<16x96xf32> to vector<16x32xf32>
    %150 = vector.shape_cast %149 : vector<16x32xf32> to vector<2x8x32xf32>
    %151 = arith.truncf %150 : vector<2x8x32xf32> to vector<2x8x32xbf16>
    %152 = vector.extract_strided_slice %148 {offsets = [0, 32], sizes = [16, 32], strides = [1, 1]} : vector<16x96xf32> to vector<16x32xf32>
    %153 = vector.shape_cast %152 : vector<16x32xf32> to vector<2x8x32xf32>
    %154 = arith.truncf %153 : vector<2x8x32xf32> to vector<2x8x32xbf16>
    %155 = vector.extract_strided_slice %148 {offsets = [0, 64], sizes = [16, 32], strides = [1, 1]} : vector<16x96xf32> to vector<16x32xf32>
    %156 = vector.shape_cast %155 : vector<16x32xf32> to vector<2x8x32xf32>
    %157 = arith.truncf %156 : vector<2x8x32xf32> to vector<2x8x32xbf16>
    %cst_117 = arith.constant 0.000000e+00 : f32
    %158 = vector.broadcast %cst_117 : f32 to vector<2x8x32xf32>
    %159 = vector.broadcast %113 : vector<1x1x32xbf16> to vector<2x8x32xbf16>
    %160 = arith.mulf %151, %159 : vector<2x8x32xbf16>
    "tpu.trace_start"() <{level = 10 : i32, message = "bqd,bkd->bqk"}> : () -> ()
    %cst_118 = arith.constant dense<0.000000e+00> : vector<2x8x8xf32>
    %161 = tpu.matmul %160, %154, %cst_118 {dimension_numbers = #tpu.dot_dimension_numbers<[2], [2], [1], [1], [0, 0, 0, 1, 1, 1], [0], [0]>} : vector<2x8x32xbf16>, vector<2x8x32xbf16>, vector<2x8x8xf32> -> vector<2x8x8xf32>
    "tpu.trace_stop"() : () -> ()
    %162 = vector.broadcast %103 : vector<1x8x8xf32> to vector<2x8x8xf32>
    %163 = arith.addf %161, %162 : vector<2x8x8xf32>
    %cst_119 = arith.constant dense<0xFF800000> : vector<2x8xf32>
    %164 = vector.multi_reduction <maximumf>, %163, %cst_119 [2] : vector<2x8x8xf32> to vector<2x8xf32>
    %165 = vector.shape_cast %164 : vector<2x8xf32> to vector<2x8x1xf32>
    %166 = vector.broadcast %165 : vector<2x8x1xf32> to vector<2x8x8xf32>
    %167 = arith.subf %163, %166 : vector<2x8x8xf32>
    %168 = math.exp %167 : vector<2x8x8xf32>
    %cst_120 = arith.constant dense<0.000000e+00> : vector<2x8xf32>
    %169 = vector.multi_reduction <add>, %168, %cst_120 [2] : vector<2x8x8xf32> to vector<2x8xf32>
    %170 = vector.shape_cast %169 : vector<2x8xf32> to vector<2x8x1xf32>
    %171 = vector.broadcast %170 : vector<2x8x1xf32> to vector<2x8x8xf32>
    %172 = arith.divf %168, %171 : vector<2x8x8xf32>
    %173 = arith.truncf %172 : vector<2x8x8xf32> to vector<2x8x8xbf16>
    %174 = vector.broadcast %113 : vector<1x1x32xbf16> to vector<2x8x32xbf16>
    %175 = arith.mulf %157, %174 : vector<2x8x32xbf16>
    "tpu.trace_start"() <{level = 10 : i32, message = "bqk,bkd->bqd"}> : () -> ()
    %cst_121 = arith.constant dense<0.000000e+00> : vector<2x8x32xf32>
    %176 = tpu.matmul %173, %175, %cst_121 {dimension_numbers = #tpu.dot_dimension_numbers<[2], [1], [1], [2], [0, 0, 0, 1, 1, 2], [0], [0]>} : vector<2x8x8xbf16>, vector<2x8x32xbf16>, vector<2x8x32xf32> -> vector<2x8x32xf32>
    "tpu.trace_stop"() : () -> ()
    %177 = arith.addf %158, %176 : vector<2x8x32xf32>
    %178 = vector.broadcast %122 : vector<1x1x32xbf16> to vector<2x8x32xbf16>
    %179 = arith.mulf %151, %178 : vector<2x8x32xbf16>
    "tpu.trace_start"() <{level = 10 : i32, message = "bqd,bkd->bqk"}> : () -> ()
    %cst_122 = arith.constant dense<0.000000e+00> : vector<2x8x8xf32>
    %180 = tpu.matmul %179, %154, %cst_122 {dimension_numbers = #tpu.dot_dimension_numbers<[2], [2], [1], [1], [0, 0, 0, 1, 1, 1], [0], [0]>} : vector<2x8x32xbf16>, vector<2x8x32xbf16>, vector<2x8x8xf32> -> vector<2x8x8xf32>
    "tpu.trace_stop"() : () -> ()
    %181 = vector.broadcast %103 : vector<1x8x8xf32> to vector<2x8x8xf32>
    %182 = arith.addf %180, %181 : vector<2x8x8xf32>
    %cst_123 = arith.constant dense<0xFF800000> : vector<2x8xf32>
    %183 = vector.multi_reduction <maximumf>, %182, %cst_123 [2] : vector<2x8x8xf32> to vector<2x8xf32>
    %184 = vector.shape_cast %183 : vector<2x8xf32> to vector<2x8x1xf32>
    %185 = vector.broadcast %184 : vector<2x8x1xf32> to vector<2x8x8xf32>
    %186 = arith.subf %182, %185 : vector<2x8x8xf32>
    %187 = math.exp %186 : vector<2x8x8xf32>
    %cst_124 = arith.constant dense<0.000000e+00> : vector<2x8xf32>
    %188 = vector.multi_reduction <add>, %187, %cst_124 [2] : vector<2x8x8xf32> to vector<2x8xf32>
    %189 = vector.shape_cast %188 : vector<2x8xf32> to vector<2x8x1xf32>
    %190 = vector.broadcast %189 : vector<2x8x1xf32> to vector<2x8x8xf32>
    %191 = arith.divf %187, %190 : vector<2x8x8xf32>
    %192 = arith.truncf %191 : vector<2x8x8xf32> to vector<2x8x8xbf16>
    %193 = vector.broadcast %122 : vector<1x1x32xbf16> to vector<2x8x32xbf16>
    %194 = arith.mulf %157, %193 : vector<2x8x32xbf16>
    "tpu.trace_start"() <{level = 10 : i32, message = "bqk,bkd->bqd"}> : () -> ()
    %cst_125 = arith.constant dense<0.000000e+00> : vector<2x8x32xf32>
    %195 = tpu.matmul %192, %194, %cst_125 {dimension_numbers = #tpu.dot_dimension_numbers<[2], [1], [1], [2], [0, 0, 0, 1, 1, 2], [0], [0]>} : vector<2x8x8xbf16>, vector<2x8x32xbf16>, vector<2x8x32xf32> -> vector<2x8x32xf32>
    "tpu.trace_stop"() : () -> ()
    %196 = arith.addf %177, %195 : vector<2x8x32xf32>
    %197 = vector.broadcast %131 : vector<1x1x32xbf16> to vector<2x8x32xbf16>
    %198 = arith.mulf %151, %197 : vector<2x8x32xbf16>
    "tpu.trace_start"() <{level = 10 : i32, message = "bqd,bkd->bqk"}> : () -> ()
    %cst_126 = arith.constant dense<0.000000e+00> : vector<2x8x8xf32>
    %199 = tpu.matmul %198, %154, %cst_126 {dimension_numbers = #tpu.dot_dimension_numbers<[2], [2], [1], [1], [0, 0, 0, 1, 1, 1], [0], [0]>} : vector<2x8x32xbf16>, vector<2x8x32xbf16>, vector<2x8x8xf32> -> vector<2x8x8xf32>
    "tpu.trace_stop"() : () -> ()
    %200 = vector.broadcast %103 : vector<1x8x8xf32> to vector<2x8x8xf32>
    %201 = arith.addf %199, %200 : vector<2x8x8xf32>
    %cst_127 = arith.constant dense<0xFF800000> : vector<2x8xf32>
    %202 = vector.multi_reduction <maximumf>, %201, %cst_127 [2] : vector<2x8x8xf32> to vector<2x8xf32>
    %203 = vector.shape_cast %202 : vector<2x8xf32> to vector<2x8x1xf32>
    %204 = vector.broadcast %203 : vector<2x8x1xf32> to vector<2x8x8xf32>
    %205 = arith.subf %201, %204 : vector<2x8x8xf32>
    %206 = math.exp %205 : vector<2x8x8xf32>
    %cst_128 = arith.constant dense<0.000000e+00> : vector<2x8xf32>
    %207 = vector.multi_reduction <add>, %206, %cst_128 [2] : vector<2x8x8xf32> to vector<2x8xf32>
    %208 = vector.shape_cast %207 : vector<2x8xf32> to vector<2x8x1xf32>
    %209 = vector.broadcast %208 : vector<2x8x1xf32> to vector<2x8x8xf32>
    %210 = arith.divf %206, %209 : vector<2x8x8xf32>
    %211 = arith.truncf %210 : vector<2x8x8xf32> to vector<2x8x8xbf16>
    %212 = vector.broadcast %131 : vector<1x1x32xbf16> to vector<2x8x32xbf16>
    %213 = arith.mulf %157, %212 : vector<2x8x32xbf16>
    "tpu.trace_start"() <{level = 10 : i32, message = "bqk,bkd->bqd"}> : () -> ()
    %cst_129 = arith.constant dense<0.000000e+00> : vector<2x8x32xf32>
    %214 = tpu.matmul %211, %213, %cst_129 {dimension_numbers = #tpu.dot_dimension_numbers<[2], [1], [1], [2], [0, 0, 0, 1, 1, 2], [0], [0]>} : vector<2x8x8xbf16>, vector<2x8x32xbf16>, vector<2x8x32xf32> -> vector<2x8x32xf32>
    "tpu.trace_stop"() : () -> ()
    %215 = arith.addf %196, %214 : vector<2x8x32xf32>
    %216 = vector.broadcast %140 : vector<1x1x32xbf16> to vector<2x8x32xbf16>
    %217 = arith.mulf %151, %216 : vector<2x8x32xbf16>
    "tpu.trace_start"() <{level = 10 : i32, message = "bqd,bkd->bqk"}> : () -> ()
    %cst_130 = arith.constant dense<0.000000e+00> : vector<2x8x8xf32>
    %218 = tpu.matmul %217, %154, %cst_130 {dimension_numbers = #tpu.dot_dimension_numbers<[2], [2], [1], [1], [0, 0, 0, 1, 1, 1], [0], [0]>} : vector<2x8x32xbf16>, vector<2x8x32xbf16>, vector<2x8x8xf32> -> vector<2x8x8xf32>
    "tpu.trace_stop"() : () -> ()
    %219 = vector.broadcast %103 : vector<1x8x8xf32> to vector<2x8x8xf32>
    %220 = arith.addf %218, %219 : vector<2x8x8xf32>
    %cst_131 = arith.constant dense<0xFF800000> : vector<2x8xf32>
    %221 = vector.multi_reduction <maximumf>, %220, %cst_131 [2] : vector<2x8x8xf32> to vector<2x8xf32>
    %222 = vector.shape_cast %221 : vector<2x8xf32> to vector<2x8x1xf32>
    %223 = vector.broadcast %222 : vector<2x8x1xf32> to vector<2x8x8xf32>
    %224 = arith.subf %220, %223 : vector<2x8x8xf32>
    %225 = math.exp %224 : vector<2x8x8xf32>
    %cst_132 = arith.constant dense<0.000000e+00> : vector<2x8xf32>
    %226 = vector.multi_reduction <add>, %225, %cst_132 [2] : vector<2x8x8xf32> to vector<2x8xf32>
    %227 = vector.shape_cast %226 : vector<2x8xf32> to vector<2x8x1xf32>
    %228 = vector.broadcast %227 : vector<2x8x1xf32> to vector<2x8x8xf32>
    %229 = arith.divf %225, %228 : vector<2x8x8xf32>
    %230 = arith.truncf %229 : vector<2x8x8xf32> to vector<2x8x8xbf16>
    %231 = vector.broadcast %140 : vector<1x1x32xbf16> to vector<2x8x32xbf16>
    %232 = arith.mulf %157, %231 : vector<2x8x32xbf16>
    "tpu.trace_start"() <{level = 10 : i32, message = "bqk,bkd->bqd"}> : () -> ()
    %cst_133 = arith.constant dense<0.000000e+00> : vector<2x8x32xf32>
    %233 = tpu.matmul %230, %232, %cst_133 {dimension_numbers = #tpu.dot_dimension_numbers<[2], [1], [1], [2], [0, 0, 0, 1, 1, 2], [0], [0]>} : vector<2x8x8xbf16>, vector<2x8x32xbf16>, vector<2x8x32xf32> -> vector<2x8x32xf32>
    "tpu.trace_stop"() : () -> ()
    %234 = arith.addf %215, %233 : vector<2x8x32xf32>
    %235 = vector.shape_cast %234 : vector<2x8x32xf32> to vector<16x32xf32>
    %c0_134 = arith.constant 0 : index
    %c0_135 = arith.constant 0 : index
    %c0_136 = arith.constant 0 : index
    %236 = vector.load %arg5[%c0_134, %c0_135, %c0_136] : memref<2x32x32xbf16, #tpu.memory_space<vmem>>, vector<1x32x32xbf16>
    %237 = vector.shape_cast %236 : vector<1x32x32xbf16> to vector<32x32xbf16>
    %c0_137 = arith.constant 0 : index
    %c0_138 = arith.constant 0 : index
    %c0_139 = arith.constant 0 : index
    %238 = vector.load %arg6[%c0_137, %c0_138, %c0_139] : memref<2x1x32xf32, #tpu.memory_space<vmem>>, vector<1x1x32xf32>
    %239 = vector.shape_cast %238 : vector<1x1x32xf32> to vector<1x32xf32>
    %240 = arith.truncf %235 : vector<16x32xf32> to vector<16x32xbf16>
    %cst_140 = arith.constant dense<0.000000e+00> : vector<16x32xf32>
    %241 = tpu.matmul %240, %237, %cst_140 {dimension_numbers = #tpu.dot_dimension_numbers<[1], [0], [0], [1], [0, 0, 1, 1], [], []>} : vector<16x32xbf16>, vector<32x32xbf16>, vector<16x32xf32> -> vector<16x32xf32>
    %242 = vector.broadcast %239 : vector<1x32xf32> to vector<16x32xf32>
    %243 = arith.addf %241, %242 : vector<16x32xf32>
    %c0_141 = arith.constant 0 : index
    %c0_142 = arith.constant 0 : index
    %c0_143 = arith.constant 0 : index
    %244 = vector.load %arg7[%c0_141, %c0_142, %c0_143] : memref<2x4x32xf32, #tpu.memory_space<vmem>>, vector<1x4x32xf32>
    %245 = vector.shape_cast %244 : vector<1x4x32xf32> to vector<4x32xf32>
    %246 = arith.addf %96, %243 : vector<16x32xf32>
    %247 = vector.extract_strided_slice %245 {offsets = [0, 0], sizes = [1, 32], strides = [1, 1]} : vector<4x32xf32> to vector<1x32xf32>
    %248 = vector.extract_strided_slice %245 {offsets = [1, 0], sizes = [1, 32], strides = [1, 1]} : vector<4x32xf32> to vector<1x32xf32>
    %cst_144 = arith.constant dense<0.000000e+00> : vector<16xf32>
    %249 = vector.multi_reduction <add>, %246, %cst_144 [1] : vector<16x32xf32> to vector<16xf32>
    %250 = vector.shape_cast %249 : vector<16xf32> to vector<16x1xf32>
    %cst_145 = arith.constant 3.200000e+01 : f32
    %251 = vector.broadcast %cst_145 : f32 to vector<16x1xf32>
    %252 = arith.divf %250, %251 : vector<16x1xf32>
    %253 = vector.broadcast %252 : vector<16x1xf32> to vector<16x32xf32>
    %254 = arith.subf %246, %253 : vector<16x32xf32>
    %255 = arith.mulf %254, %254 : vector<16x32xf32>
    %cst_146 = arith.constant dense<0.000000e+00> : vector<16xf32>
    %256 = vector.multi_reduction <add>, %255, %cst_146 [1] : vector<16x32xf32> to vector<16xf32>
    %257 = vector.shape_cast %256 : vector<16xf32> to vector<16x1xf32>
    %cst_147 = arith.constant 3.200000e+01 : f32
    %258 = vector.broadcast %cst_147 : f32 to vector<16x1xf32>
    %259 = arith.divf %257, %258 : vector<16x1xf32>
    %260 = vector.broadcast %252 : vector<16x1xf32> to vector<16x32xf32>
    %261 = arith.subf %246, %260 : vector<16x32xf32>
    %cst_148 = arith.constant 9.99999974E-6 : f32
    %262 = vector.broadcast %cst_148 : f32 to vector<16x1xf32>
    %263 = arith.addf %259, %262 : vector<16x1xf32>
    %264 = math.rsqrt %263 : vector<16x1xf32>
    %265 = vector.broadcast %264 : vector<16x1xf32> to vector<16x32xf32>
    %266 = arith.mulf %261, %265 : vector<16x32xf32>
    %267 = vector.broadcast %247 : vector<1x32xf32> to vector<16x32xf32>
    %268 = arith.mulf %266, %267 : vector<16x32xf32>
    %269 = vector.broadcast %248 : vector<1x32xf32> to vector<16x32xf32>
    %270 = arith.addf %268, %269 : vector<16x32xf32>
    %c0_149 = arith.constant 0 : index
    %c0_150 = arith.constant 0 : index
    %c0_151 = arith.constant 0 : index
    %271 = vector.load %arg8[%c0_149, %c0_150, %c0_151] : memref<2x32x64xbf16, #tpu.memory_space<vmem>>, vector<1x32x64xbf16>
    %272 = vector.shape_cast %271 : vector<1x32x64xbf16> to vector<32x64xbf16>
    %c0_152 = arith.constant 0 : index
    %c0_153 = arith.constant 0 : index
    %c0_154 = arith.constant 0 : index
    %273 = vector.load %arg9[%c0_152, %c0_153, %c0_154] : memref<2x1x64xf32, #tpu.memory_space<vmem>>, vector<1x1x64xf32>
    %274 = vector.shape_cast %273 : vector<1x1x64xf32> to vector<1x64xf32>
    %275 = arith.truncf %270 : vector<16x32xf32> to vector<16x32xbf16>
    %cst_155 = arith.constant dense<0.000000e+00> : vector<16x64xf32>
    %276 = tpu.matmul %275, %272, %cst_155 {dimension_numbers = #tpu.dot_dimension_numbers<[1], [0], [0], [1], [0, 0, 1, 1], [], []>} : vector<16x32xbf16>, vector<32x64xbf16>, vector<16x64xf32> -> vector<16x64xf32>
    %277 = vector.broadcast %274 : vector<1x64xf32> to vector<16x64xf32>
    %278 = arith.addf %276, %277 : vector<16x64xf32>
    %cst_156 = arith.constant 0.000000e+00 : f32
    %279 = vector.broadcast %cst_156 : f32 to vector<16x64xf32>
    %280 = arith.maximumf %278, %279 : vector<16x64xf32>
    %c0_157 = arith.constant 0 : index
    %c0_158 = arith.constant 0 : index
    %c0_159 = arith.constant 0 : index
    %281 = vector.load %arg10[%c0_157, %c0_158, %c0_159] : memref<2x64x32xbf16, #tpu.memory_space<vmem>>, vector<1x64x32xbf16>
    %282 = vector.shape_cast %281 : vector<1x64x32xbf16> to vector<64x32xbf16>
    %c0_160 = arith.constant 0 : index
    %c0_161 = arith.constant 0 : index
    %c0_162 = arith.constant 0 : index
    %283 = vector.load %arg11[%c0_160, %c0_161, %c0_162] : memref<2x1x32xf32, #tpu.memory_space<vmem>>, vector<1x1x32xf32>
    %284 = vector.shape_cast %283 : vector<1x1x32xf32> to vector<1x32xf32>
    %285 = arith.truncf %280 : vector<16x64xf32> to vector<16x64xbf16>
    %cst_163 = arith.constant dense<0.000000e+00> : vector<16x32xf32>
    %286 = tpu.matmul %285, %282, %cst_163 {dimension_numbers = #tpu.dot_dimension_numbers<[1], [0], [0], [1], [0, 0, 1, 1], [], []>} : vector<16x64xbf16>, vector<64x32xbf16>, vector<16x32xf32> -> vector<16x32xf32>
    %287 = vector.broadcast %284 : vector<1x32xf32> to vector<16x32xf32>
    %288 = arith.addf %286, %287 : vector<16x32xf32>
    %289 = arith.addf %270, %288 : vector<16x32xf32>
    %290 = vector.extract_strided_slice %245 {offsets = [2, 0], sizes = [1, 32], strides = [1, 1]} : vector<4x32xf32> to vector<1x32xf32>
    %291 = vector.extract_strided_slice %245 {offsets = [3, 0], sizes = [1, 32], strides = [1, 1]} : vector<4x32xf32> to vector<1x32xf32>
    %cst_164 = arith.constant dense<0.000000e+00> : vector<16xf32>
    %292 = vector.multi_reduction <add>, %289, %cst_164 [1] : vector<16x32xf32> to vector<16xf32>
    %293 = vector.shape_cast %292 : vector<16xf32> to vector<16x1xf32>
    %cst_165 = arith.constant 3.200000e+01 : f32
    %294 = vector.broadcast %cst_165 : f32 to vector<16x1xf32>
    %295 = arith.divf %293, %294 : vector<16x1xf32>
    %296 = vector.broadcast %295 : vector<16x1xf32> to vector<16x32xf32>
    %297 = arith.subf %289, %296 : vector<16x32xf32>
    %298 = arith.mulf %297, %297 : vector<16x32xf32>
    %cst_166 = arith.constant dense<0.000000e+00> : vector<16xf32>
    %299 = vector.multi_reduction <add>, %298, %cst_166 [1] : vector<16x32xf32> to vector<16xf32>
    %300 = vector.shape_cast %299 : vector<16xf32> to vector<16x1xf32>
    %cst_167 = arith.constant 3.200000e+01 : f32
    %301 = vector.broadcast %cst_167 : f32 to vector<16x1xf32>
    %302 = arith.divf %300, %301 : vector<16x1xf32>
    %303 = vector.broadcast %295 : vector<16x1xf32> to vector<16x32xf32>
    %304 = arith.subf %289, %303 : vector<16x32xf32>
    %cst_168 = arith.constant 9.99999974E-6 : f32
    %305 = vector.broadcast %cst_168 : f32 to vector<16x1xf32>
    %306 = arith.addf %302, %305 : vector<16x1xf32>
    %307 = math.rsqrt %306 : vector<16x1xf32>
    %308 = vector.broadcast %307 : vector<16x1xf32> to vector<16x32xf32>
    %309 = arith.mulf %304, %308 : vector<16x32xf32>
    %310 = vector.broadcast %290 : vector<1x32xf32> to vector<16x32xf32>
    %311 = arith.mulf %309, %310 : vector<16x32xf32>
    %312 = vector.broadcast %291 : vector<1x32xf32> to vector<16x32xf32>
    %313 = arith.addf %311, %312 : vector<16x32xf32>
    %c1_169 = arith.constant 1 : index
    %c0_170 = arith.constant 0 : index
    %c0_171 = arith.constant 0 : index
    %314 = vector.load %arg3[%c1_169, %c0_170, %c0_171] : memref<2x32x96xbf16, #tpu.memory_space<vmem>>, vector<1x32x96xbf16>
    %315 = vector.shape_cast %314 : vector<1x32x96xbf16> to vector<32x96xbf16>
    %c1_172 = arith.constant 1 : index
    %c0_173 = arith.constant 0 : index
    %c0_174 = arith.constant 0 : index
    %316 = vector.load %arg4[%c1_172, %c0_173, %c0_174] : memref<2x1x96xf32, #tpu.memory_space<vmem>>, vector<1x1x96xf32>
    %317 = vector.shape_cast %316 : vector<1x1x96xf32> to vector<1x96xf32>
    %318 = arith.truncf %313 : vector<16x32xf32> to vector<16x32xbf16>
    %cst_175 = arith.constant dense<0.000000e+00> : vector<16x96xf32>
    %319 = tpu.matmul %318, %315, %cst_175 {dimension_numbers = #tpu.dot_dimension_numbers<[1], [0], [0], [1], [0, 0, 1, 1], [], []>} : vector<16x32xbf16>, vector<32x96xbf16>, vector<16x96xf32> -> vector<16x96xf32>
    %320 = vector.broadcast %317 : vector<1x96xf32> to vector<16x96xf32>
    %321 = arith.addf %319, %320 : vector<16x96xf32>
    %322 = vector.extract_strided_slice %321 {offsets = [0, 0], sizes = [16, 32], strides = [1, 1]} : vector<16x96xf32> to vector<16x32xf32>
    %323 = vector.shape_cast %322 : vector<16x32xf32> to vector<2x8x32xf32>
    %324 = arith.truncf %323 : vector<2x8x32xf32> to vector<2x8x32xbf16>
    %325 = vector.extract_strided_slice %321 {offsets = [0, 32], sizes = [16, 32], strides = [1, 1]} : vector<16x96xf32> to vector<16x32xf32>
    %326 = vector.shape_cast %325 : vector<16x32xf32> to vector<2x8x32xf32>
    %327 = arith.truncf %326 : vector<2x8x32xf32> to vector<2x8x32xbf16>
    %328 = vector.extract_strided_slice %321 {offsets = [0, 64], sizes = [16, 32], strides = [1, 1]} : vector<16x96xf32> to vector<16x32xf32>
    %329 = vector.shape_cast %328 : vector<16x32xf32> to vector<2x8x32xf32>
    %330 = arith.truncf %329 : vector<2x8x32xf32> to vector<2x8x32xbf16>
    %cst_176 = arith.constant 0.000000e+00 : f32
    %331 = vector.broadcast %cst_176 : f32 to vector<2x8x32xf32>
    %332 = vector.broadcast %113 : vector<1x1x32xbf16> to vector<2x8x32xbf16>
    %333 = arith.mulf %324, %332 : vector<2x8x32xbf16>
    "tpu.trace_start"() <{level = 10 : i32, message = "bqd,bkd->bqk"}> : () -> ()
    %cst_177 = arith.constant dense<0.000000e+00> : vector<2x8x8xf32>
    %334 = tpu.matmul %333, %327, %cst_177 {dimension_numbers = #tpu.dot_dimension_numbers<[2], [2], [1], [1], [0, 0, 0, 1, 1, 1], [0], [0]>} : vector<2x8x32xbf16>, vector<2x8x32xbf16>, vector<2x8x8xf32> -> vector<2x8x8xf32>
    "tpu.trace_stop"() : () -> ()
    %335 = vector.broadcast %103 : vector<1x8x8xf32> to vector<2x8x8xf32>
    %336 = arith.addf %334, %335 : vector<2x8x8xf32>
    %cst_178 = arith.constant dense<0xFF800000> : vector<2x8xf32>
    %337 = vector.multi_reduction <maximumf>, %336, %cst_178 [2] : vector<2x8x8xf32> to vector<2x8xf32>
    %338 = vector.shape_cast %337 : vector<2x8xf32> to vector<2x8x1xf32>
    %339 = vector.broadcast %338 : vector<2x8x1xf32> to vector<2x8x8xf32>
    %340 = arith.subf %336, %339 : vector<2x8x8xf32>
    %341 = math.exp %340 : vector<2x8x8xf32>
    %cst_179 = arith.constant dense<0.000000e+00> : vector<2x8xf32>
    %342 = vector.multi_reduction <add>, %341, %cst_179 [2] : vector<2x8x8xf32> to vector<2x8xf32>
    %343 = vector.shape_cast %342 : vector<2x8xf32> to vector<2x8x1xf32>
    %344 = vector.broadcast %343 : vector<2x8x1xf32> to vector<2x8x8xf32>
    %345 = arith.divf %341, %344 : vector<2x8x8xf32>
    %346 = arith.truncf %345 : vector<2x8x8xf32> to vector<2x8x8xbf16>
    %347 = vector.broadcast %113 : vector<1x1x32xbf16> to vector<2x8x32xbf16>
    %348 = arith.mulf %330, %347 : vector<2x8x32xbf16>
    "tpu.trace_start"() <{level = 10 : i32, message = "bqk,bkd->bqd"}> : () -> ()
    %cst_180 = arith.constant dense<0.000000e+00> : vector<2x8x32xf32>
    %349 = tpu.matmul %346, %348, %cst_180 {dimension_numbers = #tpu.dot_dimension_numbers<[2], [1], [1], [2], [0, 0, 0, 1, 1, 2], [0], [0]>} : vector<2x8x8xbf16>, vector<2x8x32xbf16>, vector<2x8x32xf32> -> vector<2x8x32xf32>
    "tpu.trace_stop"() : () -> ()
    %350 = arith.addf %331, %349 : vector<2x8x32xf32>
    %351 = vector.broadcast %122 : vector<1x1x32xbf16> to vector<2x8x32xbf16>
    %352 = arith.mulf %324, %351 : vector<2x8x32xbf16>
    "tpu.trace_start"() <{level = 10 : i32, message = "bqd,bkd->bqk"}> : () -> ()
    %cst_181 = arith.constant dense<0.000000e+00> : vector<2x8x8xf32>
    %353 = tpu.matmul %352, %327, %cst_181 {dimension_numbers = #tpu.dot_dimension_numbers<[2], [2], [1], [1], [0, 0, 0, 1, 1, 1], [0], [0]>} : vector<2x8x32xbf16>, vector<2x8x32xbf16>, vector<2x8x8xf32> -> vector<2x8x8xf32>
    "tpu.trace_stop"() : () -> ()
    %354 = vector.broadcast %103 : vector<1x8x8xf32> to vector<2x8x8xf32>
    %355 = arith.addf %353, %354 : vector<2x8x8xf32>
    %cst_182 = arith.constant dense<0xFF800000> : vector<2x8xf32>
    %356 = vector.multi_reduction <maximumf>, %355, %cst_182 [2] : vector<2x8x8xf32> to vector<2x8xf32>
    %357 = vector.shape_cast %356 : vector<2x8xf32> to vector<2x8x1xf32>
    %358 = vector.broadcast %357 : vector<2x8x1xf32> to vector<2x8x8xf32>
    %359 = arith.subf %355, %358 : vector<2x8x8xf32>
    %360 = math.exp %359 : vector<2x8x8xf32>
    %cst_183 = arith.constant dense<0.000000e+00> : vector<2x8xf32>
    %361 = vector.multi_reduction <add>, %360, %cst_183 [2] : vector<2x8x8xf32> to vector<2x8xf32>
    %362 = vector.shape_cast %361 : vector<2x8xf32> to vector<2x8x1xf32>
    %363 = vector.broadcast %362 : vector<2x8x1xf32> to vector<2x8x8xf32>
    %364 = arith.divf %360, %363 : vector<2x8x8xf32>
    %365 = arith.truncf %364 : vector<2x8x8xf32> to vector<2x8x8xbf16>
    %366 = vector.broadcast %122 : vector<1x1x32xbf16> to vector<2x8x32xbf16>
    %367 = arith.mulf %330, %366 : vector<2x8x32xbf16>
    "tpu.trace_start"() <{level = 10 : i32, message = "bqk,bkd->bqd"}> : () -> ()
    %cst_184 = arith.constant dense<0.000000e+00> : vector<2x8x32xf32>
    %368 = tpu.matmul %365, %367, %cst_184 {dimension_numbers = #tpu.dot_dimension_numbers<[2], [1], [1], [2], [0, 0, 0, 1, 1, 2], [0], [0]>} : vector<2x8x8xbf16>, vector<2x8x32xbf16>, vector<2x8x32xf32> -> vector<2x8x32xf32>
    "tpu.trace_stop"() : () -> ()
    %369 = arith.addf %350, %368 : vector<2x8x32xf32>
    %370 = vector.broadcast %131 : vector<1x1x32xbf16> to vector<2x8x32xbf16>
    %371 = arith.mulf %324, %370 : vector<2x8x32xbf16>
    "tpu.trace_start"() <{level = 10 : i32, message = "bqd,bkd->bqk"}> : () -> ()
    %cst_185 = arith.constant dense<0.000000e+00> : vector<2x8x8xf32>
    %372 = tpu.matmul %371, %327, %cst_185 {dimension_numbers = #tpu.dot_dimension_numbers<[2], [2], [1], [1], [0, 0, 0, 1, 1, 1], [0], [0]>} : vector<2x8x32xbf16>, vector<2x8x32xbf16>, vector<2x8x8xf32> -> vector<2x8x8xf32>
    "tpu.trace_stop"() : () -> ()
    %373 = vector.broadcast %103 : vector<1x8x8xf32> to vector<2x8x8xf32>
    %374 = arith.addf %372, %373 : vector<2x8x8xf32>
    %cst_186 = arith.constant dense<0xFF800000> : vector<2x8xf32>
    %375 = vector.multi_reduction <maximumf>, %374, %cst_186 [2] : vector<2x8x8xf32> to vector<2x8xf32>
    %376 = vector.shape_cast %375 : vector<2x8xf32> to vector<2x8x1xf32>
    %377 = vector.broadcast %376 : vector<2x8x1xf32> to vector<2x8x8xf32>
    %378 = arith.subf %374, %377 : vector<2x8x8xf32>
    %379 = math.exp %378 : vector<2x8x8xf32>
    %cst_187 = arith.constant dense<0.000000e+00> : vector<2x8xf32>
    %380 = vector.multi_reduction <add>, %379, %cst_187 [2] : vector<2x8x8xf32> to vector<2x8xf32>
    %381 = vector.shape_cast %380 : vector<2x8xf32> to vector<2x8x1xf32>
    %382 = vector.broadcast %381 : vector<2x8x1xf32> to vector<2x8x8xf32>
    %383 = arith.divf %379, %382 : vector<2x8x8xf32>
    %384 = arith.truncf %383 : vector<2x8x8xf32> to vector<2x8x8xbf16>
    %385 = vector.broadcast %131 : vector<1x1x32xbf16> to vector<2x8x32xbf16>
    %386 = arith.mulf %330, %385 : vector<2x8x32xbf16>
    "tpu.trace_start"() <{level = 10 : i32, message = "bqk,bkd->bqd"}> : () -> ()
    %cst_188 = arith.constant dense<0.000000e+00> : vector<2x8x32xf32>
    %387 = tpu.matmul %384, %386, %cst_188 {dimension_numbers = #tpu.dot_dimension_numbers<[2], [1], [1], [2], [0, 0, 0, 1, 1, 2], [0], [0]>} : vector<2x8x8xbf16>, vector<2x8x32xbf16>, vector<2x8x32xf32> -> vector<2x8x32xf32>
    "tpu.trace_stop"() : () -> ()
    %388 = arith.addf %369, %387 : vector<2x8x32xf32>
    %389 = vector.broadcast %140 : vector<1x1x32xbf16> to vector<2x8x32xbf16>
    %390 = arith.mulf %324, %389 : vector<2x8x32xbf16>
    "tpu.trace_start"() <{level = 10 : i32, message = "bqd,bkd->bqk"}> : () -> ()
    %cst_189 = arith.constant dense<0.000000e+00> : vector<2x8x8xf32>
    %391 = tpu.matmul %390, %327, %cst_189 {dimension_numbers = #tpu.dot_dimension_numbers<[2], [2], [1], [1], [0, 0, 0, 1, 1, 1], [0], [0]>} : vector<2x8x32xbf16>, vector<2x8x32xbf16>, vector<2x8x8xf32> -> vector<2x8x8xf32>
    "tpu.trace_stop"() : () -> ()
    %392 = vector.broadcast %103 : vector<1x8x8xf32> to vector<2x8x8xf32>
    %393 = arith.addf %391, %392 : vector<2x8x8xf32>
    %cst_190 = arith.constant dense<0xFF800000> : vector<2x8xf32>
    %394 = vector.multi_reduction <maximumf>, %393, %cst_190 [2] : vector<2x8x8xf32> to vector<2x8xf32>
    %395 = vector.shape_cast %394 : vector<2x8xf32> to vector<2x8x1xf32>
    %396 = vector.broadcast %395 : vector<2x8x1xf32> to vector<2x8x8xf32>
    %397 = arith.subf %393, %396 : vector<2x8x8xf32>
    %398 = math.exp %397 : vector<2x8x8xf32>
    %cst_191 = arith.constant dense<0.000000e+00> : vector<2x8xf32>
    %399 = vector.multi_reduction <add>, %398, %cst_191 [2] : vector<2x8x8xf32> to vector<2x8xf32>
    %400 = vector.shape_cast %399 : vector<2x8xf32> to vector<2x8x1xf32>
    %401 = vector.broadcast %400 : vector<2x8x1xf32> to vector<2x8x8xf32>
    %402 = arith.divf %398, %401 : vector<2x8x8xf32>
    %403 = arith.truncf %402 : vector<2x8x8xf32> to vector<2x8x8xbf16>
    %404 = vector.broadcast %140 : vector<1x1x32xbf16> to vector<2x8x32xbf16>
    %405 = arith.mulf %330, %404 : vector<2x8x32xbf16>
    "tpu.trace_start"() <{level = 10 : i32, message = "bqk,bkd->bqd"}> : () -> ()
    %cst_192 = arith.constant dense<0.000000e+00> : vector<2x8x32xf32>
    %406 = tpu.matmul %403, %405, %cst_192 {dimension_numbers = #tpu.dot_dimension_numbers<[2], [1], [1], [2], [0, 0, 0, 1, 1, 2], [0], [0]>} : vector<2x8x8xbf16>, vector<2x8x32xbf16>, vector<2x8x32xf32> -> vector<2x8x32xf32>
    "tpu.trace_stop"() : () -> ()
    %407 = arith.addf %388, %406 : vector<2x8x32xf32>
    %408 = vector.shape_cast %407 : vector<2x8x32xf32> to vector<16x32xf32>
    %c1_193 = arith.constant 1 : index
    %c0_194 = arith.constant 0 : index
    %c0_195 = arith.constant 0 : index
    %409 = vector.load %arg5[%c1_193, %c0_194, %c0_195] : memref<2x32x32xbf16, #tpu.memory_space<vmem>>, vector<1x32x32xbf16>
    %410 = vector.shape_cast %409 : vector<1x32x32xbf16> to vector<32x32xbf16>
    %c1_196 = arith.constant 1 : index
    %c0_197 = arith.constant 0 : index
    %c0_198 = arith.constant 0 : index
    %411 = vector.load %arg6[%c1_196, %c0_197, %c0_198] : memref<2x1x32xf32, #tpu.memory_space<vmem>>, vector<1x1x32xf32>
    %412 = vector.shape_cast %411 : vector<1x1x32xf32> to vector<1x32xf32>
    %413 = arith.truncf %408 : vector<16x32xf32> to vector<16x32xbf16>
    %cst_199 = arith.constant dense<0.000000e+00> : vector<16x32xf32>
    %414 = tpu.matmul %413, %410, %cst_199 {dimension_numbers = #tpu.dot_dimension_numbers<[1], [0], [0], [1], [0, 0, 1, 1], [], []>} : vector<16x32xbf16>, vector<32x32xbf16>, vector<16x32xf32> -> vector<16x32xf32>
    %415 = vector.broadcast %412 : vector<1x32xf32> to vector<16x32xf32>
    %416 = arith.addf %414, %415 : vector<16x32xf32>
    %c1_200 = arith.constant 1 : index
    %c0_201 = arith.constant 0 : index
    %c0_202 = arith.constant 0 : index
    %417 = vector.load %arg7[%c1_200, %c0_201, %c0_202] : memref<2x4x32xf32, #tpu.memory_space<vmem>>, vector<1x4x32xf32>
    %418 = vector.shape_cast %417 : vector<1x4x32xf32> to vector<4x32xf32>
    %419 = arith.addf %313, %416 : vector<16x32xf32>
    %420 = vector.extract_strided_slice %418 {offsets = [0, 0], sizes = [1, 32], strides = [1, 1]} : vector<4x32xf32> to vector<1x32xf32>
    %421 = vector.extract_strided_slice %418 {offsets = [1, 0], sizes = [1, 32], strides = [1, 1]} : vector<4x32xf32> to vector<1x32xf32>
    %cst_203 = arith.constant dense<0.000000e+00> : vector<16xf32>
    %422 = vector.multi_reduction <add>, %419, %cst_203 [1] : vector<16x32xf32> to vector<16xf32>
    %423 = vector.shape_cast %422 : vector<16xf32> to vector<16x1xf32>
    %cst_204 = arith.constant 3.200000e+01 : f32
    %424 = vector.broadcast %cst_204 : f32 to vector<16x1xf32>
    %425 = arith.divf %423, %424 : vector<16x1xf32>
    %426 = vector.broadcast %425 : vector<16x1xf32> to vector<16x32xf32>
    %427 = arith.subf %419, %426 : vector<16x32xf32>
    %428 = arith.mulf %427, %427 : vector<16x32xf32>
    %cst_205 = arith.constant dense<0.000000e+00> : vector<16xf32>
    %429 = vector.multi_reduction <add>, %428, %cst_205 [1] : vector<16x32xf32> to vector<16xf32>
    %430 = vector.shape_cast %429 : vector<16xf32> to vector<16x1xf32>
    %cst_206 = arith.constant 3.200000e+01 : f32
    %431 = vector.broadcast %cst_206 : f32 to vector<16x1xf32>
    %432 = arith.divf %430, %431 : vector<16x1xf32>
    %433 = vector.broadcast %425 : vector<16x1xf32> to vector<16x32xf32>
    %434 = arith.subf %419, %433 : vector<16x32xf32>
    %cst_207 = arith.constant 9.99999974E-6 : f32
    %435 = vector.broadcast %cst_207 : f32 to vector<16x1xf32>
    %436 = arith.addf %432, %435 : vector<16x1xf32>
    %437 = math.rsqrt %436 : vector<16x1xf32>
    %438 = vector.broadcast %437 : vector<16x1xf32> to vector<16x32xf32>
    %439 = arith.mulf %434, %438 : vector<16x32xf32>
    %440 = vector.broadcast %420 : vector<1x32xf32> to vector<16x32xf32>
    %441 = arith.mulf %439, %440 : vector<16x32xf32>
    %442 = vector.broadcast %421 : vector<1x32xf32> to vector<16x32xf32>
    %443 = arith.addf %441, %442 : vector<16x32xf32>
    %c1_208 = arith.constant 1 : index
    %c0_209 = arith.constant 0 : index
    %c0_210 = arith.constant 0 : index
    %444 = vector.load %arg8[%c1_208, %c0_209, %c0_210] : memref<2x32x64xbf16, #tpu.memory_space<vmem>>, vector<1x32x64xbf16>
    %445 = vector.shape_cast %444 : vector<1x32x64xbf16> to vector<32x64xbf16>
    %c1_211 = arith.constant 1 : index
    %c0_212 = arith.constant 0 : index
    %c0_213 = arith.constant 0 : index
    %446 = vector.load %arg9[%c1_211, %c0_212, %c0_213] : memref<2x1x64xf32, #tpu.memory_space<vmem>>, vector<1x1x64xf32>
    %447 = vector.shape_cast %446 : vector<1x1x64xf32> to vector<1x64xf32>
    %448 = arith.truncf %443 : vector<16x32xf32> to vector<16x32xbf16>
    %cst_214 = arith.constant dense<0.000000e+00> : vector<16x64xf32>
    %449 = tpu.matmul %448, %445, %cst_214 {dimension_numbers = #tpu.dot_dimension_numbers<[1], [0], [0], [1], [0, 0, 1, 1], [], []>} : vector<16x32xbf16>, vector<32x64xbf16>, vector<16x64xf32> -> vector<16x64xf32>
    %450 = vector.broadcast %447 : vector<1x64xf32> to vector<16x64xf32>
    %451 = arith.addf %449, %450 : vector<16x64xf32>
    %cst_215 = arith.constant 0.000000e+00 : f32
    %452 = vector.broadcast %cst_215 : f32 to vector<16x64xf32>
    %453 = arith.maximumf %451, %452 : vector<16x64xf32>
    %c1_216 = arith.constant 1 : index
    %c0_217 = arith.constant 0 : index
    %c0_218 = arith.constant 0 : index
    %454 = vector.load %arg10[%c1_216, %c0_217, %c0_218] : memref<2x64x32xbf16, #tpu.memory_space<vmem>>, vector<1x64x32xbf16>
    %455 = vector.shape_cast %454 : vector<1x64x32xbf16> to vector<64x32xbf16>
    %c1_219 = arith.constant 1 : index
    %c0_220 = arith.constant 0 : index
    %c0_221 = arith.constant 0 : index
    %456 = vector.load %arg11[%c1_219, %c0_220, %c0_221] : memref<2x1x32xf32, #tpu.memory_space<vmem>>, vector<1x1x32xf32>
    %457 = vector.shape_cast %456 : vector<1x1x32xf32> to vector<1x32xf32>
    %458 = arith.truncf %453 : vector<16x64xf32> to vector<16x64xbf16>
    %cst_222 = arith.constant dense<0.000000e+00> : vector<16x32xf32>
    %459 = tpu.matmul %458, %455, %cst_222 {dimension_numbers = #tpu.dot_dimension_numbers<[1], [0], [0], [1], [0, 0, 1, 1], [], []>} : vector<16x64xbf16>, vector<64x32xbf16>, vector<16x32xf32> -> vector<16x32xf32>
    %460 = vector.broadcast %457 : vector<1x32xf32> to vector<16x32xf32>
    %461 = arith.addf %459, %460 : vector<16x32xf32>
    %462 = arith.addf %443, %461 : vector<16x32xf32>
    %463 = vector.extract_strided_slice %418 {offsets = [2, 0], sizes = [1, 32], strides = [1, 1]} : vector<4x32xf32> to vector<1x32xf32>
    %464 = vector.extract_strided_slice %418 {offsets = [3, 0], sizes = [1, 32], strides = [1, 1]} : vector<4x32xf32> to vector<1x32xf32>
    %cst_223 = arith.constant dense<0.000000e+00> : vector<16xf32>
    %465 = vector.multi_reduction <add>, %462, %cst_223 [1] : vector<16x32xf32> to vector<16xf32>
    %466 = vector.shape_cast %465 : vector<16xf32> to vector<16x1xf32>
    %cst_224 = arith.constant 3.200000e+01 : f32
    %467 = vector.broadcast %cst_224 : f32 to vector<16x1xf32>
    %468 = arith.divf %466, %467 : vector<16x1xf32>
    %469 = vector.broadcast %468 : vector<16x1xf32> to vector<16x32xf32>
    %470 = arith.subf %462, %469 : vector<16x32xf32>
    %471 = arith.mulf %470, %470 : vector<16x32xf32>
    %cst_225 = arith.constant dense<0.000000e+00> : vector<16xf32>
    %472 = vector.multi_reduction <add>, %471, %cst_225 [1] : vector<16x32xf32> to vector<16xf32>
    %473 = vector.shape_cast %472 : vector<16xf32> to vector<16x1xf32>
    %cst_226 = arith.constant 3.200000e+01 : f32
    %474 = vector.broadcast %cst_226 : f32 to vector<16x1xf32>
    %475 = arith.divf %473, %474 : vector<16x1xf32>
    %476 = vector.broadcast %468 : vector<16x1xf32> to vector<16x32xf32>
    %477 = arith.subf %462, %476 : vector<16x32xf32>
    %cst_227 = arith.constant 9.99999974E-6 : f32
    %478 = vector.broadcast %cst_227 : f32 to vector<16x1xf32>
    %479 = arith.addf %475, %478 : vector<16x1xf32>
    %480 = math.rsqrt %479 : vector<16x1xf32>
    %481 = vector.broadcast %480 : vector<16x1xf32> to vector<16x32xf32>
    %482 = arith.mulf %477, %481 : vector<16x32xf32>
    %483 = vector.broadcast %463 : vector<1x32xf32> to vector<16x32xf32>
    %484 = arith.mulf %482, %483 : vector<16x32xf32>
    %485 = vector.broadcast %464 : vector<1x32xf32> to vector<16x32xf32>
    %486 = arith.addf %484, %485 : vector<16x32xf32>
    %c0_228 = arith.constant 0 : index
    %c0_229 = arith.constant 0 : index
    %487 = vector.load %arg12[%c0_228, %c0_229] : memref<32x64xbf16, #tpu.memory_space<vmem>>, vector<32x64xbf16>
    %c0_230 = arith.constant 0 : index
    %c0_231 = arith.constant 0 : index
    %488 = vector.load %arg13[%c0_230, %c0_231] : memref<1x64xf32, #tpu.memory_space<vmem>>, vector<1x64xf32>
    %489 = arith.truncf %486 : vector<16x32xf32> to vector<16x32xbf16>
    %cst_232 = arith.constant dense<0.000000e+00> : vector<16x64xf32>
    %490 = tpu.matmul %489, %487, %cst_232 {dimension_numbers = #tpu.dot_dimension_numbers<[1], [0], [0], [1], [0, 0, 1, 1], [], []>} : vector<16x32xbf16>, vector<32x64xbf16>, vector<16x64xf32> -> vector<16x64xf32>
    %491 = vector.broadcast %488 : vector<1x64xf32> to vector<16x64xf32>
    %492 = arith.addf %490, %491 : vector<16x64xf32>
    %493 = vector.shape_cast %492 : vector<16x64xf32> to vector<2x8x64xf32>
    %c0_233 = arith.constant 0 : index
    %c0_234 = arith.constant 0 : index
    %c0_235 = arith.constant 0 : index
    %494 = vector.load %arg14[%c0_233, %c0_234, %c0_235] : memref<2x8x64xf32, #tpu.memory_space<vmem>>, vector<2x8x64xf32>
    tpu.vector_store %arg14[%c0_233, %c0_234, %c0_235], %493 {strides = array<i32>} : memref<2x8x64xf32, #tpu.memory_space<vmem>>, vector<2x8x64xf32>,
    return
  }
}

</mosaic_0001>

<llo_original>
// kernel: tpu_custom_call.1
$region0: #{tpu_custom_call.1}
  #allocation0 [shape = 'u32[]', space=smem, size = 0x4, offset = 0x4, fixed_abs, tag = 'smem constant byte address 0x4 - core index']
  #allocation1 [shape = 'u32[144,128]{1,0:T(1,128)}', space=vmem, size = 0x12000, scoped, tag = 'internal scratch']
  #allocation2 [shape = 'f32[16,32]{1,0:T(8,128)}', space=vmem, size = 0x2000, scoped, tag = 'scratch operand']
  %s0 = inlined_call_operand.vmem [shape: s32[2,8], index: 0, kind: input, shape index: {}]
  %s1 = inlined_call_operand.vmem [shape: f32[64,32], index: 1, kind: input, shape index: {}]
  %s2 = inlined_call_operand.vmem [shape: f32[16,32], index: 2, kind: input, shape index: {}]
  %s3 = inlined_call_operand.vmem [shape: bf16[2,32,96], index: 3, kind: input, shape index: {}]
  %s4 = inlined_call_operand.vmem [shape: f32[2,1,96], index: 4, kind: input, shape index: {}]
  %s5 = inlined_call_operand.vmem [shape: bf16[2,32,32], index: 5, kind: input, shape index: {}]
  %s6 = inlined_call_operand.vmem [shape: f32[2,1,32], index: 6, kind: input, shape index: {}]
  %s7 = inlined_call_operand.vmem [shape: f32[2,4,32], index: 7, kind: input, shape index: {}]
  %s8 = inlined_call_operand.vmem [shape: bf16[2,32,64], index: 8, kind: input, shape index: {}]
  %s9 = inlined_call_operand.vmem [shape: f32[2,1,64], index: 9, kind: input, shape index: {}]
  %s10 = inlined_call_operand.vmem [shape: bf16[2,64,32], index: 10, kind: input, shape index: {}]
  %s11 = inlined_call_operand.vmem [shape: f32[2,1,32], index: 11, kind: input, shape index: {}]
  %s12 = inlined_call_operand.vmem [shape: bf16[32,64], index: 12, kind: input, shape index: {}]
  %s13 = inlined_call_operand.vmem [shape: f32[1,64], index: 13, kind: input, shape index: {}]
  %s14 = inlined_call_operand.hbm [shape: f32[2,8,64], index: 14, kind: output, shape index: {}]
  %s15 = sld [smem:[#allocation0]]
  $region70: #{tpu_custom_call.1} parent=0
    _
  %s17 = ssub.s32 1, %s15
  %s18 = scalar_select 0, %s17, %s15
  $region1: #{tpu_custom_call.1} parent=0
    #allocation3 [shape = 'u8[1024]{0}', space=smem, size = 0x400, scoped, tag = 'input window, operand 0, single buffered']
    #allocation4 [shape = 's32[1]{0}', space=sflag, size = 0x4, scoped, tag = 'scoped memory for tpu_custom_call.1']
    #allocation5 [shape = 's32[1]{0}', space=sflag, size = 0x4, scoped, tag = 'scoped memory for tpu_custom_call.1']
    #allocation6 [shape = 'u8[8192]{0}', space=vmem, size = 0x2000, scoped, tag = 'output window, operand 0, single buffered']
    %19 = vsyncpa [#allocation5], 0
    %20 = vsyncpa [#allocation4], 0
    // Predicated region
    $region2: #{tpu_custom_call.1} parent=1 // pred_check
      _
    $region3: #{tpu_custom_call.1} parent=1 // pred_check_branch
      %22 = sbr.rel (0) target = $region5
    $region4: #{tpu_custom_call.1} parent=1 // pred_region
      %s24 = ssub.s32 32, 32
      %25 = vsyncadd [#allocation5], %s24
      %s27 = sshll.u32 %s0, 4
      %s28 = int_to_ptr.vmem [resolvable:$true] %s27
      %30 = dma.vmem_to_smem %s28, 32, [#allocation3], [#allocation5]
    $region5: #{tpu_custom_call.1} parent=1 // pred_fallthru
      _
    // Predicated region
    $region6: #{tpu_custom_call.1} parent=1 // pred_check
      _
    $region7: #{tpu_custom_call.1} parent=1 // pred_check_branch
      %32 = sbr.rel (0) target = $region9
    $region8: #{tpu_custom_call.1} parent=1 // pred_region
      _
    $region9: #{tpu_custom_call.1} parent=1 // pred_fallthru
      _
    // Predicated region
    $region10: #{tpu_custom_call.1} parent=1 // pred_check
      _
    $region11: #{tpu_custom_call.1} parent=1 // pred_check_branch
      %34 = sbr.rel (0) target = $region13
    $region12: #{tpu_custom_call.1} parent=1 // pred_region
      _
    $region13: #{tpu_custom_call.1} parent=1 // pred_fallthru
      _
    // Predicated region
    $region14: #{tpu_custom_call.1} parent=1 // pred_check
      _
    $region15: #{tpu_custom_call.1} parent=1 // pred_check_branch
      %36 = sbr.rel (0) target = $region17
    $region16: #{tpu_custom_call.1} parent=1 // pred_region
      _
    $region17: #{tpu_custom_call.1} parent=1 // pred_fallthru
      _
    // Predicated region
    $region18: #{tpu_custom_call.1} parent=1 // pred_check
      _
    $region19: #{tpu_custom_call.1} parent=1 // pred_check_branch
      %38 = sbr.rel (0) target = $region21
    $region20: #{tpu_custom_call.1} parent=1 // pred_region
      _
    $region21: #{tpu_custom_call.1} parent=1 // pred_fallthru
      _
    // Predicated region
    $region22: #{tpu_custom_call.1} parent=1 // pred_check
      _
    $region23: #{tpu_custom_call.1} parent=1 // pred_check_branch
      %40 = sbr.rel (0) target = $region25
    $region24: #{tpu_custom_call.1} parent=1 // pred_region
      _
    $region25: #{tpu_custom_call.1} parent=1 // pred_fallthru
      _
    // Predicated region
    $region26: #{tpu_custom_call.1} parent=1 // pred_check
      _
    $region27: #{tpu_custom_call.1} parent=1 // pred_check_branch
      %42 = sbr.rel (0) target = $region29
    $region28: #{tpu_custom_call.1} parent=1 // pred_region
      _
    $region29: #{tpu_custom_call.1} parent=1 // pred_fallthru
      _
    // Predicated region
    $region30: #{tpu_custom_call.1} parent=1 // pred_check
      _
    $region31: #{tpu_custom_call.1} parent=1 // pred_check_branch
      %44 = sbr.rel (0) target = $region33
    $region32: #{tpu_custom_call.1} parent=1 // pred_region
      _
    $region33: #{tpu_custom_call.1} parent=1 // pred_fallthru
      _
    // Predicated region
    $region34: #{tpu_custom_call.1} parent=1 // pred_check
      _
    $region35: #{tpu_custom_call.1} parent=1 // pred_check_branch
      %46 = sbr.rel (0) target = $region37
    $region36: #{tpu_custom_call.1} parent=1 // pred_region
      _
    $region37: #{tpu_custom_call.1} parent=1 // pred_fallthru
      _
    // Predicated region
    $region38: #{tpu_custom_call.1} parent=1 // pred_check
      _
    $region39: #{tpu_custom_call.1} parent=1 // pred_check_branch
      %48 = sbr.rel (0) target = $region41
    $region40: #{tpu_custom_call.1} parent=1 // pred_region
      _
    $region41: #{tpu_custom_call.1} parent=1 // pred_fallthru
      _
    // Predicated region
    $region42: #{tpu_custom_call.1} parent=1 // pred_check
      _
    $region43: #{tpu_custom_call.1} parent=1 // pred_check_branch
      %50 = sbr.rel (0) target = $region45
    $region44: #{tpu_custom_call.1} parent=1 // pred_region
      _
    $region45: #{tpu_custom_call.1} parent=1 // pred_fallthru
      _
    // Predicated region
    $region46: #{tpu_custom_call.1} parent=1 // pred_check
      _
    $region47: #{tpu_custom_call.1} parent=1 // pred_check_branch
      %52 = sbr.rel (0) target = $region49
    $region48: #{tpu_custom_call.1} parent=1 // pred_region
      _
    $region49: #{tpu_custom_call.1} parent=1 // pred_fallthru
      _
    // Predicated region
    $region50: #{tpu_custom_call.1} parent=1 // pred_check
      _
    $region51: #{tpu_custom_call.1} parent=1 // pred_check_branch
      %54 = sbr.rel (0) target = $region53
    $region52: #{tpu_custom_call.1} parent=1 // pred_region
      _
    $region53: #{tpu_custom_call.1} parent=1 // pred_fallthru
      _
    // Predicated region
    $region54: #{tpu_custom_call.1} parent=1 // pred_check
      _
    $region55: #{tpu_custom_call.1} parent=1 // pred_check_branch
      %56 = sbr.rel (0) target = $region57
    $region56: #{tpu_custom_call.1} parent=1 // pred_region
      _
    $region57: #{tpu_custom_call.1} parent=1 // pred_fallthru
      _
    // Predicated region
    $region58: #{tpu_custom_call.1} parent=1 // pred_check
      _
    $region59: #{tpu_custom_call.1} parent=1 // pred_check_branch
      %58 = sbr.rel (0) target = $region61
    $region60: #{tpu_custom_call.1} parent=1 // pred_region
      %59 = dma.done [#allocation5], 32
    $region61: #{tpu_custom_call.1} parent=1 // pred_fallthru
      _
    %60 = sfence
    %s62 = sld [smem:[#allocation3]]
    %s63 = scalar_lea.vmem %s1, %s62
    %v64 = vld [vmem:[%s63] sm:$0x1]
    %v65 = vld [vmem:[%s2] sm:$0x1]
    %v66 = vadd.f32 %v64, %v65
    %vm67 = vcmask 253952
    %68 = vst.msk [vmem:[#allocation2] sm:$0x1] %vm67, %v66
    %s69 = sld [smem:[#allocation3 + $0x1]]
    %s70 = scalar_lea.vmem %s1, %s69
    %v71 = vld [vmem:[%s70] sm:$0x1]
    %v72 = vld [vmem:[%s2 + $0x1] sm:$0x1]
    %v73 = vadd.f32 %v71, %v72
    %74 = vst.msk [vmem:[#allocation2 + $0x1] sm:$0x1] %vm67, %v73
    %s75 = sld [smem:[#allocation3 + $0x2]]
    %s76 = scalar_lea.vmem %s1, %s75
    %v77 = vld [vmem:[%s76] sm:$0x1]
    %v78 = vld [vmem:[%s2 + $0x2] sm:$0x1]
    %v79 = vadd.f32 %v77, %v78
    %80 = vst.msk [vmem:[#allocation2 + $0x2] sm:$0x1] %vm67, %v79
    %s81 = sld [smem:[#allocation3 + $0x3]]
    %s82 = scalar_lea.vmem %s1, %s81
    %v83 = vld [vmem:[%s82] sm:$0x1]
    %v84 = vld [vmem:[%s2 + $0x3] sm:$0x1]
    %v85 = vadd.f32 %v83, %v84
    %86 = vst.msk [vmem:[#allocation2 + $0x3] sm:$0x1] %vm67, %v85
    %s87 = sld [smem:[#allocation3 + $0x4]]
    %s88 = scalar_lea.vmem %s1, %s87
    %v89 = vld [vmem:[%s88] sm:$0x1]
    %v90 = vld [vmem:[%s2 + $0x4] sm:$0x1]
    %v91 = vadd.f32 %v89, %v90
    %92 = vst.msk [vmem:[#allocation2 + $0x4] sm:$0x1] %vm67, %v91
    %s93 = sld [smem:[#allocation3 + $0x5]]
    %s94 = scalar_lea.vmem %s1, %s93
    %v95 = vld [vmem:[%s94] sm:$0x1]
    %v96 = vld [vmem:[%s2 + $0x5] sm:$0x1]
    %v97 = vadd.f32 %v95, %v96
    %98 = vst.msk [vmem:[#allocation2 + $0x5] sm:$0x1] %vm67, %v97
    %s99 = sld [smem:[#allocation3 + $0x6]]
    %s100 = scalar_lea.vmem %s1, %s99
    %v101 = vld [vmem:[%s100] sm:$0x1]
    %v102 = vld [vmem:[%s2 + $0x6] sm:$0x1]
    %v103 = vadd.f32 %v101, %v102
    %104 = vst.msk [vmem:[#allocation2 + $0x6] sm:$0x1] %vm67, %v103
    %s105 = sld [smem:[#allocation3 + $0x7]]
    %s106 = scalar_lea.vmem %s1, %s105
    %v107 = vld [vmem:[%s106] sm:$0x1]
    %v108 = vld [vmem:[%s2 + $0x7] sm:$0x1]
    %v109 = vadd.f32 %v107, %v108
    %110 = vst.msk [vmem:[#allocation2 + $0x7] sm:$0x1] %vm67, %v109
    %s111 = sld [smem:[#allocation3 + $0x80]]
    %s112 = scalar_lea.vmem %s1, %s111
    %v113 = vld [vmem:[%s112] sm:$0x1]
    %v114 = vld [vmem:[%s2] sm:$0x1]
    %v115 = vadd.f32 %v113, %v114
    %116 = vst.msk [vmem:[#allocation2 + $0x8] sm:$0x1] %vm67, %v115
    %s117 = sld [smem:[#allocation3 + $0x81]]
    %s118 = scalar_lea.vmem %s1, %s117
    %v119 = vld [vmem:[%s118] sm:$0x1]
    %v120 = vld [vmem:[%s2 + $0x1] sm:$0x1]
    %v121 = vadd.f32 %v119, %v120
    %122 = vst.msk [vmem:[#allocation2 + $0x9] sm:$0x1] %vm67, %v121
    %s123 = sld [smem:[#allocation3 + $0x82]]
    %s124 = scalar_lea.vmem %s1, %s123
    %v125 = vld [vmem:[%s124] sm:$0x1]
    %v126 = vld [vmem:[%s2 + $0x2] sm:$0x1]
    %v127 = vadd.f32 %v125, %v126
    %128 = vst.msk [vmem:[#allocation2 + $0xa] sm:$0x1] %vm67, %v127
    %s129 = sld [smem:[#allocation3 + $0x83]]
    %s130 = scalar_lea.vmem %s1, %s129
    %v131 = vld [vmem:[%s130] sm:$0x1]
    %v132 = vld [vmem:[%s2 + $0x3] sm:$0x1]
    %v133 = vadd.f32 %v131, %v132
    %134 = vst.msk [vmem:[#allocation2 + $0xb] sm:$0x1] %vm67, %v133
    %s135 = sld [smem:[#allocation3 + $0x84]]
    %s136 = scalar_lea.vmem %s1, %s135
    %v137 = vld [vmem:[%s136] sm:$0x1]
    %v138 = vld [vmem:[%s2 + $0x4] sm:$0x1]
    %v139 = vadd.f32 %v137, %v138
    %140 = vst.msk [vmem:[#allocation2 + $0xc] sm:$0x1] %vm67, %v139
    %s141 = sld [smem:[#allocation3 + $0x85]]
    %s142 = scalar_lea.vmem %s1, %s141
    %v143 = vld [vmem:[%s142] sm:$0x1]
    %v144 = vld [vmem:[%s2 + $0x5] sm:$0x1]
    %v145 = vadd.f32 %v143, %v144
    %146 = vst.msk [vmem:[#allocation2 + $0xd] sm:$0x1] %vm67, %v145
    %s147 = sld [smem:[#allocation3 + $0x86]]
    %s148 = scalar_lea.vmem %s1, %s147
    %v149 = vld [vmem:[%s148] sm:$0x1]
    %v150 = vld [vmem:[%s2 + $0x6] sm:$0x1]
    %v151 = vadd.f32 %v149, %v150
    %152 = vst.msk [vmem:[#allocation2 + $0xe] sm:$0x1] %vm67, %v151
    %s153 = sld [smem:[#allocation3 + $0x87]]
    %s154 = scalar_lea.vmem %s1, %s153
    %v155 = vld [vmem:[%s154] sm:$0x1]
    %v156 = vld [vmem:[%s2 + $0x7] sm:$0x1]
    %v157 = vadd.f32 %v155, %v156
    %158 = vst.msk [vmem:[#allocation2 + $0xf] sm:$0x1] %vm67, %v157
    %v159 = vld [vmem:[#allocation2] sm:$0xff]
    %v160 = vld [vmem:[#allocation2 + $0x8] sm:$0xff]
    %v161 = vlaneseq
    %v162 = vshrl.u32 %v161, 7
    %v163 = vlaneseq
    %v164 = vand.u32 %v163, 127
    %vm165 = vcmp.le.s32.totalorder %v164, %v162
    %v166 = vsel %vm165, 0.0, -1e+09
    %vm167 = vcmp.ge.s32.totalorder %v164, 0
    %vm168 = vcmp.lt.s32.totalorder %v164, 8
    %vm169 = vmand %vm167, %vm168
    %v170 = vsel %vm169, 1.0, 0.0
    %v171 = vpack.c.bf16 %v170, %v170
    %vm172 = vcmp.ge.s32.totalorder %v164, 8
    %vm173 = vcmp.lt.s32.totalorder %v164, 16
    %vm174 = vmand %vm172, %vm173
    %v175 = vsel %vm174, 1.0, 0.0
    %v176 = vpack.c.bf16 %v175, %v175
    %vm177 = vcmp.ge.s32.totalorder %v164, 16
    %vm178 = vcmp.lt.s32.totalorder %v164, 24
    %vm179 = vmand %vm177, %vm178
    %v180 = vsel %vm179, 1.0, 0.0
    %v181 = vpack.c.bf16 %v180, %v180
    %vm182 = vcmp.ge.s32.totalorder %v164, 24
    %vm183 = vcmp.lt.s32.totalorder %v164, 32
    %vm184 = vmand %vm182, %vm183
    %v185 = vsel %vm184, 1.0, 0.0
    %v186 = vpack.c.bf16 %v185, %v185
    %v187 = vld [vmem:[%s3] sm:$0xf]
    %v188 = vld [vmem:[%s3 + $0x4] sm:$0xf]
    %v189 = vld [vmem:[%s3 + $0x8] sm:$0xf]
    %v190 = vld [vmem:[%s3 + $0xc] sm:$0xf]
    %v191 = vld [vmem:[%s4] sm:$0x1]
    %v192 = vpack.c.bf16 %v160, %v159
    %v194 = vlaneseq
    %v195 = vshrl.u32 %v194, 7
    %v196 = vsub.s32 0, %v195
    %v197 = vrot.slane %v191, %v196
    %v203 = vunpack.c.l.b16 %v187
    %v204 = vunpack.c.l.b16 %v188
    %v205 = vunpack.c.l.b16 %v189
    %v206 = vunpack.c.l.b16 %v190
    %v207 = vpack.c.b16 %v204, %v203
    %v208 = vpack.c.b16 %v206, %v205
    %vm211 = vcmask 261120
    %v213 = vsel %vm211, %v192, 0
    %215 = vmatprep.subr.bf16.mxu0 0
    %216 = vmatpush1.bf16.msra.mxu0 %v207
    %217 = vmatprep.subr.bf16.mxu0 0
    %218 = vmatpush1.bf16.msra.mxu0 %v208
    %219 = vmatprep.subr.bf16.mxu0 0
    %220 = vmatpush1.bf16.msra.mxu0 0
    %221 = vmatprep.subr.bf16.mxu0 0
    %222 = vmatpush1.bf16.msra.mxu0 0
    %223 = vmatprep.subr.bf16.mxu0 0
    %224 = vmatpush1.bf16.msra.mxu0 0
    %225 = vmatprep.subr.bf16.mxu0 0
    %226 = vmatpush1.bf16.msra.mxu0 0
    %227 = vmatprep.subr.bf16.mxu0 0
    %228 = vmatpush1.bf16.msra.mxu0 0
    %229 = vmatprep.subr.bf16.mxu0 0
    %230 = vmatpush1.bf16.msra.mxu0 0
    %231 = vmatprep.subr.bf16.mxu0 0
    %232 = vmatpush1.bf16.msra.mxu0 0
    %233 = vmatprep.subr.bf16.mxu0 0
    %234 = vmatpush1.bf16.msra.mxu0 0
    %235 = vmatprep.subr.bf16.mxu0 0
    %236 = vmatpush1.bf16.msra.mxu0 0
    %237 = vmatprep.subr.bf16.mxu0 0
    %238 = vmatpush1.bf16.msra.mxu0 0
    %239 = vmatprep.subr.bf16.mxu0 0
    %240 = vmatpush1.bf16.msra.mxu0 0
    %241 = vmatprep.subr.bf16.mxu0 0
    %242 = vmatpush1.bf16.msra.mxu0 0
    %243 = vmatprep.subr.bf16.mxu0 0
    %244 = vmatpush1.bf16.msra.mxu0 0
    %245 = vmatprep.subr.bf16.mxu0 0
    %246 = vmatpush1.bf16.msra.mxu0 0
    %247 = vmatprep.mubr.bf16.mxu0 0
    %248 = vmatmul.mubr.bf16.gmra.mrb[0].mxu0 %v213
    %v249 = vpop.f32.mrb[0].mxu0
    %v250 = vadd.f32 %v197, %v249
    %v251 = vpop.f32.mrb[0].mxu0
    %v252 = vpop.f32.mrb[0].mxu0
    %v253 = vadd.f32 %v197, %v252
    %v254 = vpop.f32.mrb[0].mxu0
    %255 = vdwg.mxu0
    %v256 = vpack.c.bf16 %v250, %v250
    %v257 = vpack.c.bf16 %v253, %v253
    %v258 = vmul.bf16 %v256, %v171
    %v259 = vmul.bf16 %v257, %v171
    %261 = vrot.lane.b32.xlu0 %v256, 96
    %v262 = vpop.permute.xlu0 %261
    %v264 = vsel %vm211, %v258, 0
    %v267 = vsel %vm211, %v262, 0
    %269 = vmatprep.subr.bf16.mxu0 0
    %270 = vmatpush1.bf16.xpose.msra.mxu0 %v267
    %271 = vmatprep.subr.bf16.mxu0 0
    %272 = vmatpush1.bf16.xpose.msra.mxu0 0
    %273 = vmatprep.subr.bf16.mxu0 0
    %274 = vmatpush1.bf16.xpose.msra.mxu0 0
    %275 = vmatprep.subr.bf16.mxu0 0
    %276 = vmatpush1.bf16.xpose.msra.mxu0 0
    %277 = vmatprep.subr.bf16.mxu0 0
    %278 = vmatpush1.bf16.xpose.msra.mxu0 0
    %279 = vmatprep.subr.bf16.mxu0 0
    %280 = vmatpush1.bf16.xpose.msra.mxu0 0
    %281 = vmatprep.subr.bf16.mxu0 0
    %282 = vmatpush1.bf16.xpose.msra.mxu0 0
    %283 = vmatprep.subr.bf16.mxu0 0
    %284 = vmatpush1.bf16.xpose.msra.mxu0 0
    %285 = vmatprep.subr.bf16.mxu0 0
    %286 = vmatpush1.bf16.xpose.msra.mxu0 0
    %287 = vmatprep.subr.bf16.mxu0 0
    %288 = vmatpush1.bf16.xpose.msra.mxu0 0
    %289 = vmatprep.subr.bf16.mxu0 0
    %290 = vmatpush1.bf16.xpose.msra.mxu0 0
    %291 = vmatprep.subr.bf16.mxu0 0
    %292 = vmatpush1.bf16.xpose.msra.mxu0 0
    %293 = vmatprep.subr.bf16.mxu0 0
    %294 = vmatpush1.bf16.xpose.msra.mxu0 0
    %295 = vmatprep.subr.bf16.mxu0 0
    %296 = vmatpush1.bf16.xpose.msra.mxu0 0
    %297 = vmatprep.subr.bf16.mxu0 0
    %298 = vmatpush1.bf16.xpose.msra.mxu0 0
    %299 = vmatprep.subr.bf16.mxu0 0
    %300 = vmatpush1.bf16.xpose.msra.mxu0 0
    %301 = vmatprep.mubr.bf16.mxu0 0
    %302 = vmatmul.mubr.bf16.gmra.mrb[0].mxu0 %v264
    %v303 = vpop.f32.mrb[0].mxu0
    %v304 = vadd.f32 %v166, %v303
    %v305 = vpop.f32.mrb[0].mxu0
    %v306 = vpop.f32.mrb[0].mxu0
    %v307 = vpop.f32.mrb[0].mxu0
    %308 = vdwg.mxu0
    %310 = vrot.lane.b32.xlu0 %v257, 96
    %v311 = vpop.permute.xlu0 %310
    %v313 = vsel %vm211, %v259, 0
    %v316 = vsel %vm211, %v311, 0
    %318 = vmatprep.subr.bf16.mxu0 0
    %319 = vmatpush1.bf16.xpose.msra.mxu0 %v316
    %320 = vmatprep.subr.bf16.mxu0 0
    %321 = vmatpush1.bf16.xpose.msra.mxu0 0
    %322 = vmatprep.subr.bf16.mxu0 0
    %323 = vmatpush1.bf16.xpose.msra.mxu0 0
    %324 = vmatprep.subr.bf16.mxu0 0
    %325 = vmatpush1.bf16.xpose.msra.mxu0 0
    %326 = vmatprep.subr.bf16.mxu0 0
    %327 = vmatpush1.bf16.xpose.msra.mxu0 0
    %328 = vmatprep.subr.bf16.mxu0 0
    %329 = vmatpush1.bf16.xpose.msra.mxu0 0
    %330 = vmatprep.subr.bf16.mxu0 0
    %331 = vmatpush1.bf16.xpose.msra.mxu0 0
    %332 = vmatprep.subr.bf16.mxu0 0
    %333 = vmatpush1.bf16.xpose.msra.mxu0 0
    %334 = vmatprep.subr.bf16.mxu0 0
    %335 = vmatpush1.bf16.xpose.msra.mxu0 0
    %336 = vmatprep.subr.bf16.mxu0 0
    %337 = vmatpush1.bf16.xpose.msra.mxu0 0
    %338 = vmatprep.subr.bf16.mxu0 0
    %339 = vmatpush1.bf16.xpose.msra.mxu0 0
    %340 = vmatprep.subr.bf16.mxu0 0
    %341 = vmatpush1.bf16.xpose.msra.mxu0 0
    %342 = vmatprep.subr.bf16.mxu0 0
    %343 = vmatpush1.bf16.xpose.msra.mxu0 0
    %344 = vmatprep.subr.bf16.mxu0 0
    %345 = vmatpush1.bf16.xpose.msra.mxu0 0
    %346 = vmatprep.subr.bf16.mxu0 0
    %347 = vmatpush1.bf16.xpose.msra.mxu0 0
    %348 = vmatprep.subr.bf16.mxu0 0
    %349 = vmatpush1.bf16.xpose.msra.mxu0 0
    %350 = vmatprep.mubr.bf16.mxu0 0
    %351 = vmatmul.mubr.bf16.gmra.mrb[0].mxu0 %v313
    %v352 = vpop.f32.mrb[0].mxu0
    %v353 = vadd.f32 %v166, %v352
    %v354 = vpop.f32.mrb[0].mxu0
    %v355 = vpop.f32.mrb[0].mxu0
    %v356 = vpop.f32.mrb[0].mxu0
    %357 = vdwg.mxu0
    %vm358 = vcmask 64512
    %v359 = vsel %vm358, %v304, -inf
    %360 = vmax.xlane.f32.xlu0 %v359
    %v361 = vpop.xlane.xlu0 %360
    %v362 = vsel %vm358, %v353, -inf
    %363 = vmax.xlane.f32.xlu0 %v362
    %v364 = vpop.xlane.xlu0 %363
    %v365 = vsub.f32 %v304, %v361
    %v366 = vsub.f32 %v353, %v364
    %v367 = vmul.f32 %v365, 1.442695
    %v368 = vpow.pop %v367
    %v369 = vmul.f32 %v366, 1.442695
    %v370 = vpow.pop %v369
    %v371 = vsel %vm358, %v368, 0.0
    %372 = vadd.xlane.f32.xlu0 %v371
    %v373 = vpop.xlane.xlu0 %372
    %v374 = vsel %vm358, %v370, 0.0
    %375 = vadd.xlane.f32.xlu0 %v374
    %v376 = vpop.xlane.xlu0 %375
    %v377 = vrcp.pop %v373
    %v378 = vmul.f32 %v368, %v377
    %v379 = vrcp.pop %v376
    %v380 = vmul.f32 %v370, %v379
    %v381 = vpack.c.bf16 %v378, %v378
    %v382 = vpack.c.bf16 %v380, %v380
    %384 = vrot.lane.b32.xlu0 %v171, 64
    %v385 = vpop.permute.xlu0 %384
    %v387 = vmul.bf16 %v256, %v385
    %v388 = vmul.bf16 %v257, %v385
    %v389 = vmul.bf16 %v256, %v176
    %v390 = vmul.bf16 %v257, %v176
    %v392 = vsel %vm211, %v389, 0
    %394 = vmatprep.subr.bf16.mxu0 0
    %395 = vmatpush1.bf16.xpose.msra.mxu0 %v267
    %396 = vmatprep.subr.bf16.mxu0 0
    %397 = vmatpush1.bf16.xpose.msra.mxu0 0
    %398 = vmatprep.subr.bf16.mxu0 0
    %399 = vmatpush1.bf16.xpose.msra.mxu0 0
    %400 = vmatprep.subr.bf16.mxu0 0
    %401 = vmatpush1.bf16.xpose.msra.mxu0 0
    %402 = vmatprep.subr.bf16.mxu0 0
    %403 = vmatpush1.bf16.xpose.msra.mxu0 0
    %404 = vmatprep.subr.bf16.mxu0 0
    %405 = vmatpush1.bf16.xpose.msra.mxu0 0
    %406 = vmatprep.subr.bf16.mxu0 0
    %407 = vmatpush1.bf16.xpose.msra.mxu0 0
    %408 = vmatprep.subr.bf16.mxu0 0
    %409 = vmatpush1.bf16.xpose.msra.mxu0 0
    %410 = vmatprep.subr.bf16.mxu0 0
    %411 = vmatpush1.bf16.xpose.msra.mxu0 0
    %412 = vmatprep.subr.bf16.mxu0 0
    %413 = vmatpush1.bf16.xpose.msra.mxu0 0
    %414 = vmatprep.subr.bf16.mxu0 0
    %415 = vmatpush1.bf16.xpose.msra.mxu0 0
    %416 = vmatprep.subr.bf16.mxu0 0
    %417 = vmatpush1.bf16.xpose.msra.mxu0 0
    %418 = vmatprep.subr.bf16.mxu0 0
    %419 = vmatpush1.bf16.xpose.msra.mxu0 0
    %420 = vmatprep.subr.bf16.mxu0 0
    %421 = vmatpush1.bf16.xpose.msra.mxu0 0
    %422 = vmatprep.subr.bf16.mxu0 0
    %423 = vmatpush1.bf16.xpose.msra.mxu0 0
    %424 = vmatprep.subr.bf16.mxu0 0
    %425 = vmatpush1.bf16.xpose.msra.mxu0 0
    %426 = vmatprep.mubr.bf16.mxu0 0
    %427 = vmatmul.mubr.bf16.gmra.mrb[0].mxu0 %v392
    %v428 = vpop.f32.mrb[0].mxu0
    %v429 = vadd.f32 %v166, %v428
    %v430 = vpop.f32.mrb[0].mxu0
    %v431 = vpop.f32.mrb[0].mxu0
    %v432 = vpop.f32.mrb[0].mxu0
    %433 = vdwg.mxu0
    %v435 = vsel %vm211, %v390, 0
    %437 = vmatprep.subr.bf16.mxu0 0
    %438 = vmatpush1.bf16.xpose.msra.mxu0 %v316
    %439 = vmatprep.subr.bf16.mxu0 0
    %440 = vmatpush1.bf16.xpose.msra.mxu0 0
    %441 = vmatprep.subr.bf16.mxu0 0
    %442 = vmatpush1.bf16.xpose.msra.mxu0 0
    %443 = vmatprep.subr.bf16.mxu0 0
    %444 = vmatpush1.bf16.xpose.msra.mxu0 0
    %445 = vmatprep.subr.bf16.mxu0 0
    %446 = vmatpush1.bf16.xpose.msra.mxu0 0
    %447 = vmatprep.subr.bf16.mxu0 0
    %448 = vmatpush1.bf16.xpose.msra.mxu0 0
    %449 = vmatprep.subr.bf16.mxu0 0
    %450 = vmatpush1.bf16.xpose.msra.mxu0 0
    %451 = vmatprep.subr.bf16.mxu0 0
    %452 = vmatpush1.bf16.xpose.msra.mxu0 0
    %453 = vmatprep.subr.bf16.mxu0 0
    %454 = vmatpush1.bf16.xpose.msra.mxu0 0
    %455 = vmatprep.subr.bf16.mxu0 0
    %456 = vmatpush1.bf16.xpose.msra.mxu0 0
    %457 = vmatprep.subr.bf16.mxu0 0
    %458 = vmatpush1.bf16.xpose.msra.mxu0 0
    %459 = vmatprep.subr.bf16.mxu0 0
    %460 = vmatpush1.bf16.xpose.msra.mxu0 0
    %461 = vmatprep.subr.bf16.mxu0 0
    %462 = vmatpush1.bf16.xpose.msra.mxu0 0
    %463 = vmatprep.subr.bf16.mxu0 0
    %464 = vmatpush1.bf16.xpose.msra.mxu0 0
    %465 = vmatprep.subr.bf16.mxu0 0
    %466 = vmatpush1.bf16.xpose.msra.mxu0 0
    %467 = vmatprep.subr.bf16.mxu0 0
    %468 = vmatpush1.bf16.xpose.msra.mxu0 0
    %469 = vmatprep.mubr.bf16.mxu0 0
    %470 = vmatmul.mubr.bf16.gmra.mrb[0].mxu0 %v435
    %v471 = vpop.f32.mrb[0].mxu0
    %v472 = vadd.f32 %v166, %v471
    %v473 = vpop.f32.mrb[0].mxu0
    %v474 = vpop.f32.mrb[0].mxu0
    %v475 = vpop.f32.mrb[0].mxu0
    %476 = vdwg.mxu0
    %v477 = vsel %vm358, %v429, -inf
    %478 = vmax.xlane.f32.xlu0 %v477
    %v479 = vpop.xlane.xlu0 %478
    %v480 = vsel %vm358, %v472, -inf
    %481 = vmax.xlane.f32.xlu0 %v480
    %v482 = vpop.xlane.xlu0 %481
    %v483 = vsub.f32 %v429, %v479
    %v484 = vsub.f32 %v472, %v482
    %v485 = vmul.f32 %v483, 1.442695
    %v486 = vpow.pop %v485
    %v487 = vmul.f32 %v484, 1.442695
    %v488 = vpow.pop %v487
    %v489 = vsel %vm358, %v486, 0.0
    %490 = vadd.xlane.f32.xlu0 %v489
    %v491 = vpop.xlane.xlu0 %490
    %v492 = vsel %vm358, %v488, 0.0
    %493 = vadd.xlane.f32.xlu0 %v492
    %v494 = vpop.xlane.xlu0 %493
    %v495 = vrcp.pop %v491
    %v496 = vmul.f32 %v486, %v495
    %v497 = vrcp.pop %v494
    %v498 = vmul.f32 %v488, %v497
    %v499 = vpack.c.bf16 %v496, %v496
    %v500 = vpack.c.bf16 %v498, %v498
    %502 = vrot.lane.b32.xlu0 %v176, 64
    %v503 = vpop.permute.xlu0 %502
    %v505 = vmul.bf16 %v256, %v503
    %v506 = vmul.bf16 %v257, %v503
    %508 = vrot.lane.b32.xlu0 %v505, 64
    %v509 = vpop.permute.xlu0 %508
    %v511 = vsel %vm358, %v499, 0
    %vm513 = vcmask 1043456
    %v515 = vsel %vm513, %v509, 0
    %517 = vmatprep.subr.bf16.mxu0 0
    %518 = vmatpush1.bf16.msra.mxu0 %v515
    %519 = vmatprep.subr.bf16.mxu0 0
    %520 = vmatpush1.bf16.msra.mxu0 0
    %521 = vmatprep.subr.bf16.mxu0 0
    %522 = vmatpush1.bf16.msra.mxu0 0
    %523 = vmatprep.subr.bf16.mxu0 0
    %524 = vmatpush1.bf16.msra.mxu0 0
    %525 = vmatprep.subr.bf16.mxu0 0
    %526 = vmatpush1.bf16.msra.mxu0 0
    %527 = vmatprep.subr.bf16.mxu0 0
    %528 = vmatpush1.bf16.msra.mxu0 0
    %529 = vmatprep.subr.bf16.mxu0 0
    %530 = vmatpush1.bf16.msra.mxu0 0
    %531 = vmatprep.subr.bf16.mxu0 0
    %532 = vmatpush1.bf16.msra.mxu0 0
    %533 = vmatprep.subr.bf16.mxu0 0
    %534 = vmatpush1.bf16.msra.mxu0 0
    %535 = vmatprep.subr.bf16.mxu0 0
    %536 = vmatpush1.bf16.msra.mxu0 0
    %537 = vmatprep.subr.bf16.mxu0 0
    %538 = vmatpush1.bf16.msra.mxu0 0
    %539 = vmatprep.subr.bf16.mxu0 0
    %540 = vmatpush1.bf16.msra.mxu0 0
    %541 = vmatprep.subr.bf16.mxu0 0
    %542 = vmatpush1.bf16.msra.mxu0 0
    %543 = vmatprep.subr.bf16.mxu0 0
    %544 = vmatpush1.bf16.msra.mxu0 0
    %545 = vmatprep.subr.bf16.mxu0 0
    %546 = vmatpush1.bf16.msra.mxu0 0
    %547 = vmatprep.subr.bf16.mxu0 0
    %548 = vmatpush1.bf16.msra.mxu0 0
    %549 = vmatprep.mubr.bf16.mxu0 0
    %550 = vmatmul.mubr.bf16.gmra.mrb[0].mxu0 %v511
    %v551 = vpop.f32.mrb[0].mxu0
    %v552 = vadd.f32 0.0, %v551
    %v553 = vpop.f32.mrb[0].mxu0
    %v554 = vpop.f32.mrb[0].mxu0
    %v555 = vpop.f32.mrb[0].mxu0
    %556 = vdwg.mxu0
    %558 = vrot.lane.b32.xlu0 %v506, 64
    %v559 = vpop.permute.xlu0 %558
    %v561 = vsel %vm358, %v500, 0
    %v564 = vsel %vm513, %v559, 0
    %566 = vmatprep.subr.bf16.mxu0 0
    %567 = vmatpush1.bf16.msra.mxu0 %v564
    %568 = vmatprep.subr.bf16.mxu0 0
    %569 = vmatpush1.bf16.msra.mxu0 0
    %570 = vmatprep.subr.bf16.mxu0 0
    %571 = vmatpush1.bf16.msra.mxu0 0
    %572 = vmatprep.subr.bf16.mxu0 0
    %573 = vmatpush1.bf16.msra.mxu0 0
    %574 = vmatprep.subr.bf16.mxu0 0
    %575 = vmatpush1.bf16.msra.mxu0 0
    %576 = vmatprep.subr.bf16.mxu0 0
    %577 = vmatpush1.bf16.msra.mxu0 0
    %578 = vmatprep.subr.bf16.mxu0 0
    %579 = vmatpush1.bf16.msra.mxu0 0
    %580 = vmatprep.subr.bf16.mxu0 0
    %581 = vmatpush1.bf16.msra.mxu0 0
    %582 = vmatprep.subr.bf16.mxu0 0
    %583 = vmatpush1.bf16.msra.mxu0 0
    %584 = vmatprep.subr.bf16.mxu0 0
    %585 = vmatpush1.bf16.msra.mxu0 0
    %586 = vmatprep.subr.bf16.mxu0 0
    %587 = vmatpush1.bf16.msra.mxu0 0
    %588 = vmatprep.subr.bf16.mxu0 0
    %589 = vmatpush1.bf16.msra.mxu0 0
    %590 = vmatprep.subr.bf16.mxu0 0
    %591 = vmatpush1.bf16.msra.mxu0 0
    %592 = vmatprep.subr.bf16.mxu0 0
    %593 = vmatpush1.bf16.msra.mxu0 0
    %594 = vmatprep.subr.bf16.mxu0 0
    %595 = vmatpush1.bf16.msra.mxu0 0
    %596 = vmatprep.subr.bf16.mxu0 0
    %597 = vmatpush1.bf16.msra.mxu0 0
    %598 = vmatprep.mubr.bf16.mxu0 0
    %599 = vmatmul.mubr.bf16.gmra.mrb[0].mxu0 %v561
    %v600 = vpop.f32.mrb[0].mxu0
    %v601 = vadd.f32 0.0, %v600
    %v602 = vpop.f32.mrb[0].mxu0
    %v603 = vpop.f32.mrb[0].mxu0
    %v604 = vpop.f32.mrb[0].mxu0
    %605 = vdwg.mxu0
    %607 = vrot.lane.b32.xlu0 %v387, 64
    %v608 = vpop.permute.xlu0 %607
    %v610 = vsel %vm358, %v381, 0
    %v613 = vsel %vm513, %v608, 0
    %615 = vmatprep.subr.bf16.mxu0 0
    %616 = vmatpush1.bf16.msra.mxu0 %v613
    %617 = vmatprep.subr.bf16.mxu0 0
    %618 = vmatpush1.bf16.msra.mxu0 0
    %619 = vmatprep.subr.bf16.mxu0 0
    %620 = vmatpush1.bf16.msra.mxu0 0
    %621 = vmatprep.subr.bf16.mxu0 0
    %622 = vmatpush1.bf16.msra.mxu0 0
    %623 = vmatprep.subr.bf16.mxu0 0
    %624 = vmatpush1.bf16.msra.mxu0 0
    %625 = vmatprep.subr.bf16.mxu0 0
    %626 = vmatpush1.bf16.msra.mxu0 0
    %627 = vmatprep.subr.bf16.mxu0 0
    %628 = vmatpush1.bf16.msra.mxu0 0
    %629 = vmatprep.subr.bf16.mxu0 0
    %630 = vmatpush1.bf16.msra.mxu0 0
    %631 = vmatprep.subr.bf16.mxu0 0
    %632 = vmatpush1.bf16.msra.mxu0 0
    %633 = vmatprep.subr.bf16.mxu0 0
    %634 = vmatpush1.bf16.msra.mxu0 0
    %635 = vmatprep.subr.bf16.mxu0 0
    %636 = vmatpush1.bf16.msra.mxu0 0
    %637 = vmatprep.subr.bf16.mxu0 0
    %638 = vmatpush1.bf16.msra.mxu0 0
    %639 = vmatprep.subr.bf16.mxu0 0
    %640 = vmatpush1.bf16.msra.mxu0 0
    %641 = vmatprep.subr.bf16.mxu0 0
    %642 = vmatpush1.bf16.msra.mxu0 0
    %643 = vmatprep.subr.bf16.mxu0 0
    %644 = vmatpush1.bf16.msra.mxu0 0
    %645 = vmatprep.subr.bf16.mxu0 0
    %646 = vmatpush1.bf16.msra.mxu0 0
    %647 = vmatprep.mubr.bf16.mxu0 0
    %648 = vmatmul.mubr.bf16.gmra.mrb[0].mxu0 %v610
    %v649 = vpop.f32.mrb[0].mxu0
    %v650 = vadd.f32 %v552, %v649
    %v651 = vpop.f32.mrb[0].mxu0
    %v652 = vpop.f32.mrb[0].mxu0
    %v653 = vpop.f32.mrb[0].mxu0
    %654 = vdwg.mxu0
    %656 = vrot.lane.b32.xlu0 %v388, 64
    %v657 = vpop.permute.xlu0 %656
    %v659 = vsel %vm358, %v382, 0
    %v662 = vsel %vm513, %v657, 0
    %664 = vmatprep.subr.bf16.mxu0 0
    %665 = vmatpush1.bf16.msra.mxu0 %v662
    %666 = vmatprep.subr.bf16.mxu0 0
    %667 = vmatpush1.bf16.msra.mxu0 0
    %668 = vmatprep.subr.bf16.mxu0 0
    %669 = vmatpush1.bf16.msra.mxu0 0
    %670 = vmatprep.subr.bf16.mxu0 0
    %671 = vmatpush1.bf16.msra.mxu0 0
    %672 = vmatprep.subr.bf16.mxu0 0
    %673 = vmatpush1.bf16.msra.mxu0 0
    %674 = vmatprep.subr.bf16.mxu0 0
    %675 = vmatpush1.bf16.msra.mxu0 0
    %676 = vmatprep.subr.bf16.mxu0 0
    %677 = vmatpush1.bf16.msra.mxu0 0
    %678 = vmatprep.subr.bf16.mxu0 0
    %679 = vmatpush1.bf16.msra.mxu0 0
    %680 = vmatprep.subr.bf16.mxu0 0
    %681 = vmatpush1.bf16.msra.mxu0 0
    %682 = vmatprep.subr.bf16.mxu0 0
    %683 = vmatpush1.bf16.msra.mxu0 0
    %684 = vmatprep.subr.bf16.mxu0 0
    %685 = vmatpush1.bf16.msra.mxu0 0
    %686 = vmatprep.subr.bf16.mxu0 0
    %687 = vmatpush1.bf16.msra.mxu0 0
    %688 = vmatprep.subr.bf16.mxu0 0
    %689 = vmatpush1.bf16.msra.mxu0 0
    %690 = vmatprep.subr.bf16.mxu0 0
    %691 = vmatpush1.bf16.msra.mxu0 0
    %692 = vmatprep.subr.bf16.mxu0 0
    %693 = vmatpush1.bf16.msra.mxu0 0
    %694 = vmatprep.subr.bf16.mxu0 0
    %695 = vmatpush1.bf16.msra.mxu0 0
    %696 = vmatprep.mubr.bf16.mxu0 0
    %697 = vmatmul.mubr.bf16.gmra.mrb[0].mxu0 %v659
    %v698 = vpop.f32.mrb[0].mxu0
    %v699 = vadd.f32 %v601, %v698
    %v700 = vpop.f32.mrb[0].mxu0
    %v701 = vpop.f32.mrb[0].mxu0
    %v702 = vpop.f32.mrb[0].mxu0
    %703 = vdwg.mxu0
    %v704 = vmul.bf16 %v256, %v181
    %v705 = vmul.bf16 %v257, %v181
    %v707 = vsel %vm211, %v704, 0
    %709 = vmatprep.subr.bf16.mxu0 0
    %710 = vmatpush1.bf16.xpose.msra.mxu0 %v267
    %711 = vmatprep.subr.bf16.mxu0 0
    %712 = vmatpush1.bf16.xpose.msra.mxu0 0
    %713 = vmatprep.subr.bf16.mxu0 0
    %714 = vmatpush1.bf16.xpose.msra.mxu0 0
    %715 = vmatprep.subr.bf16.mxu0 0
    %716 = vmatpush1.bf16.xpose.msra.mxu0 0
    %717 = vmatprep.subr.bf16.mxu0 0
    %718 = vmatpush1.bf16.xpose.msra.mxu0 0
    %719 = vmatprep.subr.bf16.mxu0 0
    %720 = vmatpush1.bf16.xpose.msra.mxu0 0
    %721 = vmatprep.subr.bf16.mxu0 0
    %722 = vmatpush1.bf16.xpose.msra.mxu0 0
    %723 = vmatprep.subr.bf16.mxu0 0
    %724 = vmatpush1.bf16.xpose.msra.mxu0 0
    %725 = vmatprep.subr.bf16.mxu0 0
    %726 = vmatpush1.bf16.xpose.msra.mxu0 0
    %727 = vmatprep.subr.bf16.mxu0 0
    %728 = vmatpush1.bf16.xpose.msra.mxu0 0
    %729 = vmatprep.subr.bf16.mxu0 0
    %730 = vmatpush1.bf16.xpose.msra.mxu0 0
    %731 = vmatprep.subr.bf16.mxu0 0
    %732 = vmatpush1.bf16.xpose.msra.mxu0 0
    %733 = vmatprep.subr.bf16.mxu0 0
    %734 = vmatpush1.bf16.xpose.msra.mxu0 0
    %735 = vmatprep.subr.bf16.mxu0 0
    %736 = vmatpush1.bf16.xpose.msra.mxu0 0
    %737 = vmatprep.subr.bf16.mxu0 0
    %738 = vmatpush1.bf16.xpose.msra.mxu0 0
    %739 = vmatprep.subr.bf16.mxu0 0
    %740 = vmatpush1.bf16.xpose.msra.mxu0 0
    %741 = vmatprep.mubr.bf16.mxu0 0
    %742 = vmatmul.mubr.bf16.gmra.mrb[0].mxu0 %v707
    %v743 = vpop.f32.mrb[0].mxu0
    %v744 = vadd.f32 %v166, %v743
    %v745 = vpop.f32.mrb[0].mxu0
    %v746 = vpop.f32.mrb[0].mxu0
    %v747 = vpop.f32.mrb[0].mxu0
    %748 = vdwg.mxu0
    %v750 = vsel %vm211, %v705, 0
    %752 = vmatprep.subr.bf16.mxu0 0
    %753 = vmatpush1.bf16.xpose.msra.mxu0 %v316
    %754 = vmatprep.subr.bf16.mxu0 0
    %755 = vmatpush1.bf16.xpose.msra.mxu0 0
    %756 = vmatprep.subr.bf16.mxu0 0
    %757 = vmatpush1.bf16.xpose.msra.mxu0 0
    %758 = vmatprep.subr.bf16.mxu0 0
    %759 = vmatpush1.bf16.xpose.msra.mxu0 0
    %760 = vmatprep.subr.bf16.mxu0 0
    %761 = vmatpush1.bf16.xpose.msra.mxu0 0
    %762 = vmatprep.subr.bf16.mxu0 0
    %763 = vmatpush1.bf16.xpose.msra.mxu0 0
    %764 = vmatprep.subr.bf16.mxu0 0
    %765 = vmatpush1.bf16.xpose.msra.mxu0 0
    %766 = vmatprep.subr.bf16.mxu0 0
    %767 = vmatpush1.bf16.xpose.msra.mxu0 0
    %768 = vmatprep.subr.bf16.mxu0 0
    %769 = vmatpush1.bf16.xpose.msra.mxu0 0
    %770 = vmatprep.subr.bf16.mxu0 0
    %771 = vmatpush1.bf16.xpose.msra.mxu0 0
    %772 = vmatprep.subr.bf16.mxu0 0
    %773 = vmatpush1.bf16.xpose.msra.mxu0 0
    %774 = vmatprep.subr.bf16.mxu0 0
    %775 = vmatpush1.bf16.xpose.msra.mxu0 0
    %776 = vmatprep.subr.bf16.mxu0 0
    %777 = vmatpush1.bf16.xpose.msra.mxu0 0
    %778 = vmatprep.subr.bf16.mxu0 0
    %779 = vmatpush1.bf16.xpose.msra.mxu0 0
    %780 = vmatprep.subr.bf16.mxu0 0
    %781 = vmatpush1.bf16.xpose.msra.mxu0 0
    %782 = vmatprep.subr.bf16.mxu0 0
    %783 = vmatpush1.bf16.xpose.msra.mxu0 0
    %784 = vmatprep.mubr.bf16.mxu0 0
    %785 = vmatmul.mubr.bf16.gmra.mrb[0].mxu0 %v750
    %v786 = vpop.f32.mrb[0].mxu0
    %v787 = vadd.f32 %v166, %v786
    %v788 = vpop.f32.mrb[0].mxu0
    %v789 = vpop.f32.mrb[0].mxu0
    %v790 = vpop.f32.mrb[0].mxu0
    %791 = vdwg.mxu0
    %v792 = vsel %vm358, %v744, -inf
    %793 = vmax.xlane.f32.xlu0 %v792
    %v794 = vpop.xlane.xlu0 %793
    %v795 = vsel %vm358, %v787, -inf
    %796 = vmax.xlane.f32.xlu0 %v795
    %v797 = vpop.xlane.xlu0 %796
    %v798 = vsub.f32 %v744, %v794
    %v799 = vsub.f32 %v787, %v797
    %v800 = vmul.f32 %v798, 1.442695
    %v801 = vpow.pop %v800
    %v802 = vmul.f32 %v799, 1.442695
    %v803 = vpow.pop %v802
    %v804 = vsel %vm358, %v801, 0.0
    %805 = vadd.xlane.f32.xlu0 %v804
    %v806 = vpop.xlane.xlu0 %805
    %v807 = vsel %vm358, %v803, 0.0
    %808 = vadd.xlane.f32.xlu0 %v807
    %v809 = vpop.xlane.xlu0 %808
    %v810 = vrcp.pop %v806
    %v811 = vmul.f32 %v801, %v810
    %v812 = vrcp.pop %v809
    %v813 = vmul.f32 %v803, %v812
    %v814 = vpack.c.bf16 %v811, %v811
    %v815 = vpack.c.bf16 %v813, %v813
    %817 = vrot.lane.b32.xlu0 %v181, 64
    %v818 = vpop.permute.xlu0 %817
    %v820 = vmul.bf16 %v256, %v818
    %v821 = vmul.bf16 %v257, %v818
    %823 = vrot.lane.b32.xlu0 %v820, 64
    %v824 = vpop.permute.xlu0 %823
    %v826 = vsel %vm358, %v814, 0
    %v829 = vsel %vm513, %v824, 0
    %831 = vmatprep.subr.bf16.mxu0 0
    %832 = vmatpush1.bf16.msra.mxu0 %v829
    %833 = vmatprep.subr.bf16.mxu0 0
    %834 = vmatpush1.bf16.msra.mxu0 0
    %835 = vmatprep.subr.bf16.mxu0 0
    %836 = vmatpush1.bf16.msra.mxu0 0
    %837 = vmatprep.subr.bf16.mxu0 0
    %838 = vmatpush1.bf16.msra.mxu0 0
    %839 = vmatprep.subr.bf16.mxu0 0
    %840 = vmatpush1.bf16.msra.mxu0 0
    %841 = vmatprep.subr.bf16.mxu0 0
    %842 = vmatpush1.bf16.msra.mxu0 0
    %843 = vmatprep.subr.bf16.mxu0 0
    %844 = vmatpush1.bf16.msra.mxu0 0
    %845 = vmatprep.subr.bf16.mxu0 0
    %846 = vmatpush1.bf16.msra.mxu0 0
    %847 = vmatprep.subr.bf16.mxu0 0
    %848 = vmatpush1.bf16.msra.mxu0 0
    %849 = vmatprep.subr.bf16.mxu0 0
    %850 = vmatpush1.bf16.msra.mxu0 0
    %851 = vmatprep.subr.bf16.mxu0 0
    %852 = vmatpush1.bf16.msra.mxu0 0
    %853 = vmatprep.subr.bf16.mxu0 0
    %854 = vmatpush1.bf16.msra.mxu0 0
    %855 = vmatprep.subr.bf16.mxu0 0
    %856 = vmatpush1.bf16.msra.mxu0 0
    %857 = vmatprep.subr.bf16.mxu0 0
    %858 = vmatpush1.bf16.msra.mxu0 0
    %859 = vmatprep.subr.bf16.mxu0 0
    %860 = vmatpush1.bf16.msra.mxu0 0
    %861 = vmatprep.subr.bf16.mxu0 0
    %862 = vmatpush1.bf16.msra.mxu0 0
    %863 = vmatprep.mubr.bf16.mxu0 0
    %864 = vmatmul.mubr.bf16.gmra.mrb[0].mxu0 %v826
    %v865 = vpop.f32.mrb[0].mxu0
    %v866 = vadd.f32 0.0, %v865
    %v867 = vpop.f32.mrb[0].mxu0
    %v868 = vpop.f32.mrb[0].mxu0
    %v869 = vpop.f32.mrb[0].mxu0
    %870 = vdwg.mxu0
    %872 = vrot.lane.b32.xlu0 %v821, 64
    %v873 = vpop.permute.xlu0 %872
    %v875 = vsel %vm358, %v815, 0
    %v878 = vsel %vm513, %v873, 0
    %880 = vmatprep.subr.bf16.mxu0 0
    %881 = vmatpush1.bf16.msra.mxu0 %v878
    %882 = vmatprep.subr.bf16.mxu0 0
    %883 = vmatpush1.bf16.msra.mxu0 0
    %884 = vmatprep.subr.bf16.mxu0 0
    %885 = vmatpush1.bf16.msra.mxu0 0
    %886 = vmatprep.subr.bf16.mxu0 0
    %887 = vmatpush1.bf16.msra.mxu0 0
    %888 = vmatprep.subr.bf16.mxu0 0
    %889 = vmatpush1.bf16.msra.mxu0 0
    %890 = vmatprep.subr.bf16.mxu0 0
    %891 = vmatpush1.bf16.msra.mxu0 0
    %892 = vmatprep.subr.bf16.mxu0 0
    %893 = vmatpush1.bf16.msra.mxu0 0
    %894 = vmatprep.subr.bf16.mxu0 0
    %895 = vmatpush1.bf16.msra.mxu0 0
    %896 = vmatprep.subr.bf16.mxu0 0
    %897 = vmatpush1.bf16.msra.mxu0 0
    %898 = vmatprep.subr.bf16.mxu0 0
    %899 = vmatpush1.bf16.msra.mxu0 0
    %900 = vmatprep.subr.bf16.mxu0 0
    %901 = vmatpush1.bf16.msra.mxu0 0
    %902 = vmatprep.subr.bf16.mxu0 0
    %903 = vmatpush1.bf16.msra.mxu0 0
    %904 = vmatprep.subr.bf16.mxu0 0
    %905 = vmatpush1.bf16.msra.mxu0 0
    %906 = vmatprep.subr.bf16.mxu0 0
    %907 = vmatpush1.bf16.msra.mxu0 0
    %908 = vmatprep.subr.bf16.mxu0 0
    %909 = vmatpush1.bf16.msra.mxu0 0
    %910 = vmatprep.subr.bf16.mxu0 0
    %911 = vmatpush1.bf16.msra.mxu0 0
    %912 = vmatprep.mubr.bf16.mxu0 0
    %913 = vmatmul.mubr.bf16.gmra.mrb[0].mxu0 %v875
    %v914 = vpop.f32.mrb[0].mxu0
    %v915 = vadd.f32 0.0, %v914
    %v916 = vpop.f32.mrb[0].mxu0
    %v917 = vpop.f32.mrb[0].mxu0
    %v918 = vpop.f32.mrb[0].mxu0
    %919 = vdwg.mxu0
    %v920 = vadd.f32 %v650, %v866
    %v921 = vadd.f32 %v699, %v915
    %v922 = vmul.bf16 %v256, %v186
    %v923 = vmul.bf16 %v257, %v186
    %v925 = vsel %vm211, %v922, 0
    %927 = vmatprep.subr.bf16.mxu0 0
    %928 = vmatpush1.bf16.xpose.msra.mxu0 %v267
    %929 = vmatprep.subr.bf16.mxu0 0
    %930 = vmatpush1.bf16.xpose.msra.mxu0 0
    %931 = vmatprep.subr.bf16.mxu0 0
    %932 = vmatpush1.bf16.xpose.msra.mxu0 0
    %933 = vmatprep.subr.bf16.mxu0 0
    %934 = vmatpush1.bf16.xpose.msra.mxu0 0
    %935 = vmatprep.subr.bf16.mxu0 0
    %936 = vmatpush1.bf16.xpose.msra.mxu0 0
    %937 = vmatprep.subr.bf16.mxu0 0
    %938 = vmatpush1.bf16.xpose.msra.mxu0 0
    %939 = vmatprep.subr.bf16.mxu0 0
    %940 = vmatpush1.bf16.xpose.msra.mxu0 0
    %941 = vmatprep.subr.bf16.mxu0 0
    %942 = vmatpush1.bf16.xpose.msra.mxu0 0
    %943 = vmatprep.subr.bf16.mxu0 0
    %944 = vmatpush1.bf16.xpose.msra.mxu0 0
    %945 = vmatprep.subr.bf16.mxu0 0
    %946 = vmatpush1.bf16.xpose.msra.mxu0 0
    %947 = vmatprep.subr.bf16.mxu0 0
    %948 = vmatpush1.bf16.xpose.msra.mxu0 0
    %949 = vmatprep.subr.bf16.mxu0 0
    %950 = vmatpush1.bf16.xpose.msra.mxu0 0
    %951 = vmatprep.subr.bf16.mxu0 0
    %952 = vmatpush1.bf16.xpose.msra.mxu0 0
    %953 = vmatprep.subr.bf16.mxu0 0
    %954 = vmatpush1.bf16.xpose.msra.mxu0 0
    %955 = vmatprep.subr.bf16.mxu0 0
    %956 = vmatpush1.bf16.xpose.msra.mxu0 0
    %957 = vmatprep.subr.bf16.mxu0 0
    %958 = vmatpush1.bf16.xpose.msra.mxu0 0
    %959 = vmatprep.mubr.bf16.mxu0 0
    %960 = vmatmul.mubr.bf16.gmra.mrb[0].mxu0 %v925
    %v961 = vpop.f32.mrb[0].mxu0
    %v962 = vadd.f32 %v166, %v961
    %v963 = vpop.f32.mrb[0].mxu0
    %v964 = vpop.f32.mrb[0].mxu0
    %v965 = vpop.f32.mrb[0].mxu0
    %966 = vdwg.mxu0
    %v968 = vsel %vm211, %v923, 0
    %970 = vmatprep.subr.bf16.mxu0 0
    %971 = vmatpush1.bf16.xpose.msra.mxu0 %v316
    %972 = vmatprep.subr.bf16.mxu0 0
    %973 = vmatpush1.bf16.xpose.msra.mxu0 0
    %974 = vmatprep.subr.bf16.mxu0 0
    %975 = vmatpush1.bf16.xpose.msra.mxu0 0
    %976 = vmatprep.subr.bf16.mxu0 0
    %977 = vmatpush1.bf16.xpose.msra.mxu0 0
    %978 = vmatprep.subr.bf16.mxu0 0
    %979 = vmatpush1.bf16.xpose.msra.mxu0 0
    %980 = vmatprep.subr.bf16.mxu0 0
    %981 = vmatpush1.bf16.xpose.msra.mxu0 0
    %982 = vmatprep.subr.bf16.mxu0 0
    %983 = vmatpush1.bf16.xpose.msra.mxu0 0
    %984 = vmatprep.subr.bf16.mxu0 0
    %985 = vmatpush1.bf16.xpose.msra.mxu0 0
    %986 = vmatprep.subr.bf16.mxu0 0
    %987 = vmatpush1.bf16.xpose.msra.mxu0 0
    %988 = vmatprep.subr.bf16.mxu0 0
    %989 = vmatpush1.bf16.xpose.msra.mxu0 0
    %990 = vmatprep.subr.bf16.mxu0 0
    %991 = vmatpush1.bf16.xpose.msra.mxu0 0
    %992 = vmatprep.subr.bf16.mxu0 0
    %993 = vmatpush1.bf16.xpose.msra.mxu0 0
    %994 = vmatprep.subr.bf16.mxu0 0
    %995 = vmatpush1.bf16.xpose.msra.mxu0 0
    %996 = vmatprep.subr.bf16.mxu0 0
    %997 = vmatpush1.bf16.xpose.msra.mxu0 0
    %998 = vmatprep.subr.bf16.mxu0 0
    %999 = vmatpush1.bf16.xpose.msra.mxu0 0
    %1000 = vmatprep.subr.bf16.mxu0 0
    %1001 = vmatpush1.bf16.xpose.msra.mxu0 0
    %1002 = vmatprep.mubr.bf16.mxu0 0
    %1003 = vmatmul.mubr.bf16.gmra.mrb[0].mxu0 %v968
    %v1004 = vpop.f32.mrb[0].mxu0
    %v1005 = vadd.f32 %v166, %v1004
    %v1006 = vpop.f32.mrb[0].mxu0
    %v1007 = vpop.f32.mrb[0].mxu0
    %v1008 = vpop.f32.mrb[0].mxu0
    %1009 = vdwg.mxu0
    %v1010 = vsel %vm358, %v962, -inf
    %1011 = vmax.xlane.f32.xlu0 %v1010
    %v1012 = vpop.xlane.xlu0 %1011
    %v1013 = vsel %vm358, %v1005, -inf
    %1014 = vmax.xlane.f32.xlu0 %v1013
    %v1015 = vpop.xlane.xlu0 %1014
    %v1016 = vsub.f32 %v962, %v1012
    %v1017 = vsub.f32 %v1005, %v1015
    %v1018 = vmul.f32 %v1016, 1.442695
    %v1019 = vpow.pop %v1018
    %v1020 = vmul.f32 %v1017, 1.442695
    %v1021 = vpow.pop %v1020
    %v1022 = vsel %vm358, %v1019, 0.0
    %1023 = vadd.xlane.f32.xlu0 %v1022
    %v1024 = vpop.xlane.xlu0 %1023
    %v1025 = vsel %vm358, %v1021, 0.0
    %1026 = vadd.xlane.f32.xlu0 %v1025
    %v1027 = vpop.xlane.xlu0 %1026
    %v1028 = vrcp.pop %v1024
    %v1029 = vmul.f32 %v1019, %v1028
    %v1030 = vrcp.pop %v1027
    %v1031 = vmul.f32 %v1021, %v1030
    %v1032 = vpack.c.bf16 %v1029, %v1029
    %v1033 = vpack.c.bf16 %v1031, %v1031
    %1035 = vrot.lane.b32.xlu0 %v186, 64
    %v1036 = vpop.permute.xlu0 %1035
    %v1038 = vmul.bf16 %v256, %v1036
    %v1039 = vmul.bf16 %v257, %v1036
    %1041 = vrot.lane.b32.xlu0 %v1038, 64
    %v1042 = vpop.permute.xlu0 %1041
    %v1044 = vsel %vm358, %v1032, 0
    %v1047 = vsel %vm513, %v1042, 0
    %1049 = vmatprep.subr.bf16.mxu0 0
    %1050 = vmatpush1.bf16.msra.mxu0 %v1047
    %1051 = vmatprep.subr.bf16.mxu0 0
    %1052 = vmatpush1.bf16.msra.mxu0 0
    %1053 = vmatprep.subr.bf16.mxu0 0
    %1054 = vmatpush1.bf16.msra.mxu0 0
    %1055 = vmatprep.subr.bf16.mxu0 0
    %1056 = vmatpush1.bf16.msra.mxu0 0
    %1057 = vmatprep.subr.bf16.mxu0 0
    %1058 = vmatpush1.bf16.msra.mxu0 0
    %1059 = vmatprep.subr.bf16.mxu0 0
    %1060 = vmatpush1.bf16.msra.mxu0 0
    %1061 = vmatprep.subr.bf16.mxu0 0
    %1062 = vmatpush1.bf16.msra.mxu0 0
    %1063 = vmatprep.subr.bf16.mxu0 0
    %1064 = vmatpush1.bf16.msra.mxu0 0
    %1065 = vmatprep.subr.bf16.mxu0 0
    %1066 = vmatpush1.bf16.msra.mxu0 0
    %1067 = vmatprep.subr.bf16.mxu0 0
    %1068 = vmatpush1.bf16.msra.mxu0 0
    %1069 = vmatprep.subr.bf16.mxu0 0
    %1070 = vmatpush1.bf16.msra.mxu0 0
    %1071 = vmatprep.subr.bf16.mxu0 0
    %1072 = vmatpush1.bf16.msra.mxu0 0
    %1073 = vmatprep.subr.bf16.mxu0 0
    %1074 = vmatpush1.bf16.msra.mxu0 0
    %1075 = vmatprep.subr.bf16.mxu0 0
    %1076 = vmatpush1.bf16.msra.mxu0 0
    %1077 = vmatprep.subr.bf16.mxu0 0
    %1078 = vmatpush1.bf16.msra.mxu0 0
    %1079 = vmatprep.subr.bf16.mxu0 0
    %1080 = vmatpush1.bf16.msra.mxu0 0
    %1081 = vmatprep.mubr.bf16.mxu0 0
    %1082 = vmatmul.mubr.bf16.gmra.mrb[0].mxu0 %v1044
    %v1083 = vpop.f32.mrb[0].mxu0
    %v1084 = vadd.f32 0.0, %v1083
    %v1085 = vpop.f32.mrb[0].mxu0
    %v1086 = vpop.f32.mrb[0].mxu0
    %v1087 = vpop.f32.mrb[0].mxu0
    %1088 = vdwg.mxu0
    %1090 = vrot.lane.b32.xlu0 %v1039, 64
    %v1091 = vpop.permute.xlu0 %1090
    %v1093 = vsel %vm358, %v1033, 0
    %v1096 = vsel %vm513, %v1091, 0
    %1098 = vmatprep.subr.bf16.mxu0 0
    %1099 = vmatpush1.bf16.msra.mxu0 %v1096
    %1100 = vmatprep.subr.bf16.mxu0 0
    %1101 = vmatpush1.bf16.msra.mxu0 0
    %1102 = vmatprep.subr.bf16.mxu0 0
    %1103 = vmatpush1.bf16.msra.mxu0 0
    %1104 = vmatprep.subr.bf16.mxu0 0
    %1105 = vmatpush1.bf16.msra.mxu0 0
    %1106 = vmatprep.subr.bf16.mxu0 0
    %1107 = vmatpush1.bf16.msra.mxu0 0
    %1108 = vmatprep.subr.bf16.mxu0 0
    %1109 = vmatpush1.bf16.msra.mxu0 0
    %1110 = vmatprep.subr.bf16.mxu0 0
    %1111 = vmatpush1.bf16.msra.mxu0 0
    %1112 = vmatprep.subr.bf16.mxu0 0
    %1113 = vmatpush1.bf16.msra.mxu0 0
    %1114 = vmatprep.subr.bf16.mxu0 0
    %1115 = vmatpush1.bf16.msra.mxu0 0
    %1116 = vmatprep.subr.bf16.mxu0 0
    %1117 = vmatpush1.bf16.msra.mxu0 0
    %1118 = vmatprep.subr.bf16.mxu0 0
    %1119 = vmatpush1.bf16.msra.mxu0 0
    %1120 = vmatprep.subr.bf16.mxu0 0
    %1121 = vmatpush1.bf16.msra.mxu0 0
    %1122 = vmatprep.subr.bf16.mxu0 0
    %1123 = vmatpush1.bf16.msra.mxu0 0
    %1124 = vmatprep.subr.bf16.mxu0 0
    %1125 = vmatpush1.bf16.msra.mxu0 0
    %1126 = vmatprep.subr.bf16.mxu0 0
    %1127 = vmatpush1.bf16.msra.mxu0 0
    %1128 = vmatprep.subr.bf16.mxu0 0
    %1129 = vmatpush1.bf16.msra.mxu0 0
    %1130 = vmatprep.mubr.bf16.mxu0 0
    %1131 = vmatmul.mubr.bf16.gmra.mrb[0].mxu0 %v1093
    %v1132 = vpop.f32.mrb[0].mxu0
    %v1133 = vadd.f32 0.0, %v1132
    %v1134 = vpop.f32.mrb[0].mxu0
    %v1135 = vpop.f32.mrb[0].mxu0
    %v1136 = vpop.f32.mrb[0].mxu0
    %1137 = vdwg.mxu0
    %v1138 = vadd.f32 %v920, %v1084
    %v1139 = vadd.f32 %v921, %v1133
    %v1140 = vld [vmem:[%s5] sm:$0xf]
    %v1141 = vld [vmem:[%s5 + $0x4] sm:$0xf]
    %v1142 = vld [vmem:[%s5 + $0x8] sm:$0xf]
    %v1143 = vld [vmem:[%s5 + $0xc] sm:$0xf]
    %v1144 = vld [vmem:[%s6] sm:$0x1]
    %v1145 = vpack.c.bf16 %v1139, %v1138
    %v1147 = vlaneseq
    %v1148 = vshrl.u32 %v1147, 7
    %v1149 = vsub.s32 0, %v1148
    %v1150 = vrot.slane %v1144, %v1149
    %v1156 = vunpack.c.l.b16 %v1140
    %v1157 = vunpack.c.l.b16 %v1141
    %v1158 = vunpack.c.l.b16 %v1142
    %v1159 = vunpack.c.l.b16 %v1143
    %v1160 = vpack.c.b16 %v1157, %v1156
    %v1161 = vpack.c.b16 %v1159, %v1158
    %v1165 = vsel %vm211, %v1145, 0
    %1167 = vmatprep.subr.bf16.mxu0 0
    %1168 = vmatpush1.bf16.msra.mxu0 %v1160
    %1169 = vmatprep.subr.bf16.mxu0 0
    %1170 = vmatpush1.bf16.msra.mxu0 %v1161
    %1171 = vmatprep.subr.bf16.mxu0 0
    %1172 = vmatpush1.bf16.msra.mxu0 0
    %1173 = vmatprep.subr.bf16.mxu0 0
    %1174 = vmatpush1.bf16.msra.mxu0 0
    %1175 = vmatprep.subr.bf16.mxu0 0
    %1176 = vmatpush1.bf16.msra.mxu0 0
    %1177 = vmatprep.subr.bf16.mxu0 0
    %1178 = vmatpush1.bf16.msra.mxu0 0
    %1179 = vmatprep.subr.bf16.mxu0 0
    %1180 = vmatpush1.bf16.msra.mxu0 0
    %1181 = vmatprep.subr.bf16.mxu0 0
    %1182 = vmatpush1.bf16.msra.mxu0 0
    %1183 = vmatprep.subr.bf16.mxu0 0
    %1184 = vmatpush1.bf16.msra.mxu0 0
    %1185 = vmatprep.subr.bf16.mxu0 0
    %1186 = vmatpush1.bf16.msra.mxu0 0
    %1187 = vmatprep.subr.bf16.mxu0 0
    %1188 = vmatpush1.bf16.msra.mxu0 0
    %1189 = vmatprep.subr.bf16.mxu0 0
    %1190 = vmatpush1.bf16.msra.mxu0 0
    %1191 = vmatprep.subr.bf16.mxu0 0
    %1192 = vmatpush1.bf16.msra.mxu0 0
    %1193 = vmatprep.subr.bf16.mxu0 0
    %1194 = vmatpush1.bf16.msra.mxu0 0
    %1195 = vmatprep.subr.bf16.mxu0 0
    %1196 = vmatpush1.bf16.msra.mxu0 0
    %1197 = vmatprep.subr.bf16.mxu0 0
    %1198 = vmatpush1.bf16.msra.mxu0 0
    %1199 = vmatprep.mubr.bf16.mxu0 0
    %1200 = vmatmul.mubr.bf16.gmra.mrb[0].mxu0 %v1165
    %v1201 = vpop.f32.mrb[0].mxu0
    %v1202 = vadd.f32 %v1150, %v1201
    %v1203 = vpop.f32.mrb[0].mxu0
    %v1204 = vpop.f32.mrb[0].mxu0
    %v1205 = vadd.f32 %v1150, %v1204
    %v1206 = vpop.f32.mrb[0].mxu0
    %1207 = vdwg.mxu0
    %v1208 = vld [vmem:[%s7] sm:$0xf]
    %v1209 = vadd.f32 %v159, %v1202
    %v1210 = vadd.f32 %v160, %v1205
    %v1211 = vsel %vm211, %v1209, 0.0
    %1212 = vadd.xlane.f32.xlu0 %v1211
    %v1213 = vpop.xlane.xlu0 %1212
    %v1214 = vsel %vm211, %v1210, 0.0
    %1215 = vadd.xlane.f32.xlu0 %v1214
    %v1216 = vpop.xlane.xlu0 %1215
    %v1217 = vrcp.pop 32.0
    %v1218 = vmul.f32 %v1213, %v1217
    %v1219 = vmul.f32 %v1216, %v1217
    %v1220 = vsub.f32 %v1209, %v1218
    %v1221 = vsub.f32 %v1210, %v1219
    %v1222 = vmul.f32 %v1220, %v1220
    %v1223 = vmul.f32 %v1221, %v1221
    %v1224 = vsel %vm211, %v1222, 0.0
    %1225 = vadd.xlane.f32.xlu0 %v1224
    %v1226 = vpop.xlane.xlu0 %1225
    %v1227 = vsel %vm211, %v1223, 0.0
    %1228 = vadd.xlane.f32.xlu0 %v1227
    %v1229 = vpop.xlane.xlu0 %1228
    %v1230 = vmul.f32 %v1226, %v1217
    %v1231 = vmul.f32 %v1229, %v1217
    %v1232 = vadd.f32 %v1230, 1e-05
    %v1233 = vadd.f32 %v1231, 1e-05
    %v1234 = vrsqrt.pop %v1232
    %v1235 = vrsqrt.pop %v1233
    %v1236 = vmul.f32 %v1220, %v1234
    %v1237 = vmul.f32 %v1221, %v1235
    %v1238 = vlaneseq
    %v1239 = vshrl.u32 %v1238, 7
    %v1240 = vsub.s32 0, %v1239
    %v1241 = vrot.slane %v1208, %v1240
    %v1242 = vmul.f32 %v1236, %v1241
    %v1243 = vmul.f32 %v1237, %v1241
    %v1244 = vlaneseq
    %v1245 = vshrl.u32 %v1244, 7
    %v1246 = vsub.s32 1, %v1245
    %v1247 = vrot.slane %v1208, %v1246
    %v1248 = vadd.f32 %v1242, %v1247
    %v1249 = vadd.f32 %v1243, %v1247
    %v1250 = vld [vmem:[%s8] sm:$0xf]
    %v1251 = vld [vmem:[%s8 + $0x4] sm:$0xf]
    %v1252 = vld [vmem:[%s8 + $0x8] sm:$0xf]
    %v1253 = vld [vmem:[%s8 + $0xc] sm:$0xf]
    %v1254 = vld [vmem:[%s9] sm:$0x1]
    %v1255 = vpack.c.bf16 %v1249, %v1248
    %v1257 = vlaneseq
    %v1258 = vshrl.u32 %v1257, 7
    %v1259 = vsub.s32 0, %v1258
    %v1260 = vrot.slane %v1254, %v1259
    %v1266 = vunpack.c.l.b16 %v1250
    %v1267 = vunpack.c.l.b16 %v1251
    %v1268 = vunpack.c.l.b16 %v1252
    %v1269 = vunpack.c.l.b16 %v1253
    %v1270 = vpack.c.b16 %v1267, %v1266
    %v1271 = vpack.c.b16 %v1269, %v1268
    %v1275 = vsel %vm211, %v1255, 0
    %1277 = vmatprep.subr.bf16.mxu0 0
    %1278 = vmatpush1.bf16.msra.mxu0 %v1270
    %1279 = vmatprep.subr.bf16.mxu0 0
    %1280 = vmatpush1.bf16.msra.mxu0 %v1271
    %1281 = vmatprep.subr.bf16.mxu0 0
    %1282 = vmatpush1.bf16.msra.mxu0 0
    %1283 = vmatprep.subr.bf16.mxu0 0
    %1284 = vmatpush1.bf16.msra.mxu0 0
    %1285 = vmatprep.subr.bf16.mxu0 0
    %1286 = vmatpush1.bf16.msra.mxu0 0
    %1287 = vmatprep.subr.bf16.mxu0 0
    %1288 = vmatpush1.bf16.msra.mxu0 0
    %1289 = vmatprep.subr.bf16.mxu0 0
    %1290 = vmatpush1.bf16.msra.mxu0 0
    %1291 = vmatprep.subr.bf16.mxu0 0
    %1292 = vmatpush1.bf16.msra.mxu0 0
    %1293 = vmatprep.subr.bf16.mxu0 0
    %1294 = vmatpush1.bf16.msra.mxu0 0
    %1295 = vmatprep.subr.bf16.mxu0 0
    %1296 = vmatpush1.bf16.msra.mxu0 0
    %1297 = vmatprep.subr.bf16.mxu0 0
    %1298 = vmatpush1.bf16.msra.mxu0 0
    %1299 = vmatprep.subr.bf16.mxu0 0
    %1300 = vmatpush1.bf16.msra.mxu0 0
    %1301 = vmatprep.subr.bf16.mxu0 0
    %1302 = vmatpush1.bf16.msra.mxu0 0
    %1303 = vmatprep.subr.bf16.mxu0 0
    %1304 = vmatpush1.bf16.msra.mxu0 0
    %1305 = vmatprep.subr.bf16.mxu0 0
    %1306 = vmatpush1.bf16.msra.mxu0 0
    %1307 = vmatprep.subr.bf16.mxu0 0
    %1308 = vmatpush1.bf16.msra.mxu0 0
    %1309 = vmatprep.mubr.bf16.mxu0 0
    %1310 = vmatmul.mubr.bf16.gmra.mrb[0].mxu0 %v1275
    %v1311 = vpop.f32.mrb[0].mxu0
    %v1312 = vadd.f32 %v1260, %v1311
    %v1313 = vpop.f32.mrb[0].mxu0
    %v1314 = vpop.f32.mrb[0].mxu0
    %v1315 = vadd.f32 %v1260, %v1314
    %v1316 = vpop.f32.mrb[0].mxu0
    %1317 = vdwg.mxu0
    %v1318 = vmax.f32 %v1312, 0.0
    %v1319 = vmax.f32 %v1315, 0.0
    %v1320 = vld [vmem:[%s10] sm:$0xf]
    %v1321 = vld [vmem:[%s10 + $0x4] sm:$0xf]
    %v1322 = vld [vmem:[%s10 + $0x8] sm:$0xf]
    %v1323 = vld [vmem:[%s10 + $0xc] sm:$0xf]
    %v1324 = vld [vmem:[%s10 + $0x10] sm:$0xf]
    %v1325 = vld [vmem:[%s10 + $0x14] sm:$0xf]
    %v1326 = vld [vmem:[%s10 + $0x18] sm:$0xf]
    %v1327 = vld [vmem:[%s10 + $0x1c] sm:$0xf]
    %v1328 = vld [vmem:[%s11] sm:$0x1]
    %v1329 = vpack.c.bf16 %v1319, %v1318
    %v1331 = vlaneseq
    %v1332 = vshrl.u32 %v1331, 7
    %v1333 = vsub.s32 0, %v1332
    %v1334 = vrot.slane %v1328, %v1333
    %v1344 = vunpack.c.l.b16 %v1320
    %v1345 = vunpack.c.l.b16 %v1321
    %v1346 = vunpack.c.l.b16 %v1322
    %v1347 = vunpack.c.l.b16 %v1323
    %v1348 = vunpack.c.l.b16 %v1324
    %v1349 = vunpack.c.l.b16 %v1325
    %v1350 = vunpack.c.l.b16 %v1326
    %v1351 = vunpack.c.l.b16 %v1327
    %v1352 = vpack.c.b16 %v1345, %v1344
    %v1353 = vpack.c.b16 %v1347, %v1346
    %v1354 = vpack.c.b16 %v1349, %v1348
    %v1355 = vpack.c.b16 %v1351, %v1350
    %vm1360 = vcmask 523264
    %v1362 = vsel %vm1360, %v1329, 0
    %1364 = vmatprep.subr.bf16.mxu0 0
    %1365 = vmatpush1.bf16.msra.mxu0 %v1352
    %1366 = vmatprep.subr.bf16.mxu0 0
    %1367 = vmatpush1.bf16.msra.mxu0 %v1353
    %1368 = vmatprep.subr.bf16.mxu0 0
    %1369 = vmatpush1.bf16.msra.mxu0 %v1354
    %1370 = vmatprep.subr.bf16.mxu0 0
    %1371 = vmatpush1.bf16.msra.mxu0 %v1355
    %1372 = vmatprep.subr.bf16.mxu0 0
    %1373 = vmatpush1.bf16.msra.mxu0 0
    %1374 = vmatprep.subr.bf16.mxu0 0
    %1375 = vmatpush1.bf16.msra.mxu0 0
    %1376 = vmatprep.subr.bf16.mxu0 0
    %1377 = vmatpush1.bf16.msra.mxu0 0
    %1378 = vmatprep.subr.bf16.mxu0 0
    %1379 = vmatpush1.bf16.msra.mxu0 0
    %1380 = vmatprep.subr.bf16.mxu0 0
    %1381 = vmatpush1.bf16.msra.mxu0 0
    %1382 = vmatprep.subr.bf16.mxu0 0
    %1383 = vmatpush1.bf16.msra.mxu0 0
    %1384 = vmatprep.subr.bf16.mxu0 0
    %1385 = vmatpush1.bf16.msra.mxu0 0
    %1386 = vmatprep.subr.bf16.mxu0 0
    %1387 = vmatpush1.bf16.msra.mxu0 0
    %1388 = vmatprep.subr.bf16.mxu0 0
    %1389 = vmatpush1.bf16.msra.mxu0 0
    %1390 = vmatprep.subr.bf16.mxu0 0
    %1391 = vmatpush1.bf16.msra.mxu0 0
    %1392 = vmatprep.subr.bf16.mxu0 0
    %1393 = vmatpush1.bf16.msra.mxu0 0
    %1394 = vmatprep.subr.bf16.mxu0 0
    %1395 = vmatpush1.bf16.msra.mxu0 0
    %1396 = vmatprep.mubr.bf16.mxu0 0
    %1397 = vmatmul.mubr.bf16.gmra.mrb[0].mxu0 %v1362
    %v1398 = vpop.f32.mrb[0].mxu0
    %v1399 = vadd.f32 %v1334, %v1398
    %v1400 = vpop.f32.mrb[0].mxu0
    %v1401 = vpop.f32.mrb[0].mxu0
    %v1402 = vadd.f32 %v1334, %v1401
    %v1403 = vpop.f32.mrb[0].mxu0
    %1404 = vdwg.mxu0
    %v1405 = vadd.f32 %v1248, %v1399
    %v1406 = vadd.f32 %v1249, %v1402
    %v1407 = vsel %vm211, %v1405, 0.0
    %1408 = vadd.xlane.f32.xlu0 %v1407
    %v1409 = vpop.xlane.xlu0 %1408
    %v1410 = vsel %vm211, %v1406, 0.0
    %1411 = vadd.xlane.f32.xlu0 %v1410
    %v1412 = vpop.xlane.xlu0 %1411
    %v1413 = vmul.f32 %v1409, %v1217
    %v1414 = vmul.f32 %v1412, %v1217
    %v1415 = vsub.f32 %v1405, %v1413
    %v1416 = vsub.f32 %v1406, %v1414
    %v1417 = vmul.f32 %v1415, %v1415
    %v1418 = vmul.f32 %v1416, %v1416
    %v1419 = vsel %vm211, %v1417, 0.0
    %1420 = vadd.xlane.f32.xlu0 %v1419
    %v1421 = vpop.xlane.xlu0 %1420
    %v1422 = vsel %vm211, %v1418, 0.0
    %1423 = vadd.xlane.f32.xlu0 %v1422
    %v1424 = vpop.xlane.xlu0 %1423
    %v1425 = vmul.f32 %v1421, %v1217
    %v1426 = vmul.f32 %v1424, %v1217
    %v1427 = vadd.f32 %v1425, 1e-05
    %v1428 = vadd.f32 %v1426, 1e-05
    %v1429 = vrsqrt.pop %v1427
    %v1430 = vrsqrt.pop %v1428
    %v1431 = vmul.f32 %v1415, %v1429
    %v1432 = vmul.f32 %v1416, %v1430
    %v1433 = vlaneseq
    %v1434 = vshrl.u32 %v1433, 7
    %v1435 = vsub.s32 2, %v1434
    %v1436 = vrot.slane %v1208, %v1435
    %v1437 = vmul.f32 %v1431, %v1436
    %v1438 = vmul.f32 %v1432, %v1436
    %v1439 = vlaneseq
    %v1440 = vshrl.u32 %v1439, 7
    %v1441 = vsub.s32 3, %v1440
    %v1442 = vrot.slane %v1208, %v1441
    %v1443 = vadd.f32 %v1437, %v1442
    %v1444 = vadd.f32 %v1438, %v1442
    %s1445 = scalar_lea.vmem %s3, 16
    %v1446 = vld [vmem:[%s1445] sm:$0xf]
    %v1447 = vld [vmem:[%s1445 + $0x4] sm:$0xf]
    %v1448 = vld [vmem:[%s1445 + $0x8] sm:$0xf]
    %v1449 = vld [vmem:[%s1445 + $0xc] sm:$0xf]
    %s1450 = scalar_lea.vmem %s4, 1
    %v1451 = vld [vmem:[%s1450] sm:$0x1]
    %v1452 = vpack.c.bf16 %v1444, %v1443
    %v1454 = vlaneseq
    %v1455 = vshrl.u32 %v1454, 7
    %v1456 = vsub.s32 0, %v1455
    %v1457 = vrot.slane %v1451, %v1456
    %v1463 = vunpack.c.l.b16 %v1446
    %v1464 = vunpack.c.l.b16 %v1447
    %v1465 = vunpack.c.l.b16 %v1448
    %v1466 = vunpack.c.l.b16 %v1449
    %v1467 = vpack.c.b16 %v1464, %v1463
    %v1468 = vpack.c.b16 %v1466, %v1465
    %v1472 = vsel %vm211, %v1452, 0
    %1474 = vmatprep.subr.bf16.mxu0 0
    %1475 = vmatpush1.bf16.msra.mxu0 %v1467
    %1476 = vmatprep.subr.bf16.mxu0 0
    %1477 = vmatpush1.bf16.msra.mxu0 %v1468
    %1478 = vmatprep.subr.bf16.mxu0 0
    %1479 = vmatpush1.bf16.msra.mxu0 0
    %1480 = vmatprep.subr.bf16.mxu0 0
    %1481 = vmatpush1.bf16.msra.mxu0 0
    %1482 = vmatprep.subr.bf16.mxu0 0
    %1483 = vmatpush1.bf16.msra.mxu0 0
    %1484 = vmatprep.subr.bf16.mxu0 0
    %1485 = vmatpush1.bf16.msra.mxu0 0
    %1486 = vmatprep.subr.bf16.mxu0 0
    %1487 = vmatpush1.bf16.msra.mxu0 0
    %1488 = vmatprep.subr.bf16.mxu0 0
    %1489 = vmatpush1.bf16.msra.mxu0 0
    %1490 = vmatprep.subr.bf16.mxu0 0
    %1491 = vmatpush1.bf16.msra.mxu0 0
    %1492 = vmatprep.subr.bf16.mxu0 0
    %1493 = vmatpush1.bf16.msra.mxu0 0
    %1494 = vmatprep.subr.bf16.mxu0 0
    %1495 = vmatpush1.bf16.msra.mxu0 0
    %1496 = vmatprep.subr.bf16.mxu0 0
    %1497 = vmatpush1.bf16.msra.mxu0 0
    %1498 = vmatprep.subr.bf16.mxu0 0
    %1499 = vmatpush1.bf16.msra.mxu0 0
    %1500 = vmatprep.subr.bf16.mxu0 0
    %1501 = vmatpush1.bf16.msra.mxu0 0
    %1502 = vmatprep.subr.bf16.mxu0 0
    %1503 = vmatpush1.bf16.msra.mxu0 0
    %1504 = vmatprep.subr.bf16.mxu0 0
    %1505 = vmatpush1.bf16.msra.mxu0 0
    %1506 = vmatprep.mubr.bf16.mxu0 0
    %1507 = vmatmul.mubr.bf16.gmra.mrb[0].mxu0 %v1472
    %v1508 = vpop.f32.mrb[0].mxu0
    %v1509 = vadd.f32 %v1457, %v1508
    %v1510 = vpop.f32.mrb[0].mxu0
    %v1511 = vpop.f32.mrb[0].mxu0
    %v1512 = vadd.f32 %v1457, %v1511
    %v1513 = vpop.f32.mrb[0].mxu0
    %1514 = vdwg.mxu0
    %v1515 = vpack.c.bf16 %v1509, %v1509
    %v1516 = vpack.c.bf16 %v1512, %v1512
    %v1517 = vmul.bf16 %v1515, %v171
    %v1518 = vmul.bf16 %v1516, %v171
    %1520 = vrot.lane.b32.xlu0 %v1515, 96
    %v1521 = vpop.permute.xlu0 %1520
    %v1523 = vsel %vm211, %v1517, 0
    %v1526 = vsel %vm211, %v1521, 0
    %1528 = vmatprep.subr.bf16.mxu0 0
    %1529 = vmatpush1.bf16.xpose.msra.mxu0 %v1526
    %1530 = vmatprep.subr.bf16.mxu0 0
    %1531 = vmatpush1.bf16.xpose.msra.mxu0 0
    %1532 = vmatprep.subr.bf16.mxu0 0
    %1533 = vmatpush1.bf16.xpose.msra.mxu0 0
    %1534 = vmatprep.subr.bf16.mxu0 0
    %1535 = vmatpush1.bf16.xpose.msra.mxu0 0
    %1536 = vmatprep.subr.bf16.mxu0 0
    %1537 = vmatpush1.bf16.xpose.msra.mxu0 0
    %1538 = vmatprep.subr.bf16.mxu0 0
    %1539 = vmatpush1.bf16.xpose.msra.mxu0 0
    %1540 = vmatprep.subr.bf16.mxu0 0
    %1541 = vmatpush1.bf16.xpose.msra.mxu0 0
    %1542 = vmatprep.subr.bf16.mxu0 0
    %1543 = vmatpush1.bf16.xpose.msra.mxu0 0
    %1544 = vmatprep.subr.bf16.mxu0 0
    %1545 = vmatpush1.bf16.xpose.msra.mxu0 0
    %1546 = vmatprep.subr.bf16.mxu0 0
    %1547 = vmatpush1.bf16.xpose.msra.mxu0 0
    %1548 = vmatprep.subr.bf16.mxu0 0
    %1549 = vmatpush1.bf16.xpose.msra.mxu0 0
    %1550 = vmatprep.subr.bf16.mxu0 0
    %1551 = vmatpush1.bf16.xpose.msra.mxu0 0
    %1552 = vmatprep.subr.bf16.mxu0 0
    %1553 = vmatpush1.bf16.xpose.msra.mxu0 0
    %1554 = vmatprep.subr.bf16.mxu0 0
    %1555 = vmatpush1.bf16.xpose.msra.mxu0 0
    %1556 = vmatprep.subr.bf16.mxu0 0
    %1557 = vmatpush1.bf16.xpose.msra.mxu0 0
    %1558 = vmatprep.subr.bf16.mxu0 0
    %1559 = vmatpush1.bf16.xpose.msra.mxu0 0
    %1560 = vmatprep.mubr.bf16.mxu0 0
    %1561 = vmatmul.mubr.bf16.gmra.mrb[0].mxu0 %v1523
    %v1562 = vpop.f32.mrb[0].mxu0
    %v1563 = vadd.f32 %v166, %v1562
    %v1564 = vpop.f32.mrb[0].mxu0
    %v1565 = vpop.f32.mrb[0].mxu0
    %v1566 = vpop.f32.mrb[0].mxu0
    %1567 = vdwg.mxu0
    %1569 = vrot.lane.b32.xlu0 %v1516, 96
    %v1570 = vpop.permute.xlu0 %1569
    %v1572 = vsel %vm211, %v1518, 0
    %v1575 = vsel %vm211, %v1570, 0
    %1577 = vmatprep.subr.bf16.mxu0 0
    %1578 = vmatpush1.bf16.xpose.msra.mxu0 %v1575
    %1579 = vmatprep.subr.bf16.mxu0 0
    %1580 = vmatpush1.bf16.xpose.msra.mxu0 0
    %1581 = vmatprep.subr.bf16.mxu0 0
    %1582 = vmatpush1.bf16.xpose.msra.mxu0 0
    %1583 = vmatprep.subr.bf16.mxu0 0
    %1584 = vmatpush1.bf16.xpose.msra.mxu0 0
    %1585 = vmatprep.subr.bf16.mxu0 0
    %1586 = vmatpush1.bf16.xpose.msra.mxu0 0
    %1587 = vmatprep.subr.bf16.mxu0 0
    %1588 = vmatpush1.bf16.xpose.msra.mxu0 0
    %1589 = vmatprep.subr.bf16.mxu0 0
    %1590 = vmatpush1.bf16.xpose.msra.mxu0 0
    %1591 = vmatprep.subr.bf16.mxu0 0
    %1592 = vmatpush1.bf16.xpose.msra.mxu0 0
    %1593 = vmatprep.subr.bf16.mxu0 0
    %1594 = vmatpush1.bf16.xpose.msra.mxu0 0
    %1595 = vmatprep.subr.bf16.mxu0 0
    %1596 = vmatpush1.bf16.xpose.msra.mxu0 0
    %1597 = vmatprep.subr.bf16.mxu0 0
    %1598 = vmatpush1.bf16.xpose.msra.mxu0 0
    %1599 = vmatprep.subr.bf16.mxu0 0
    %1600 = vmatpush1.bf16.xpose.msra.mxu0 0
    %1601 = vmatprep.subr.bf16.mxu0 0
    %1602 = vmatpush1.bf16.xpose.msra.mxu0 0
    %1603 = vmatprep.subr.bf16.mxu0 0
    %1604 = vmatpush1.bf16.xpose.msra.mxu0 0
    %1605 = vmatprep.subr.bf16.mxu0 0
    %1606 = vmatpush1.bf16.xpose.msra.mxu0 0
    %1607 = vmatprep.subr.bf16.mxu0 0
    %1608 = vmatpush1.bf16.xpose.msra.mxu0 0
    %1609 = vmatprep.mubr.bf16.mxu0 0
    %1610 = vmatmul.mubr.bf16.gmra.mrb[0].mxu0 %v1572
    %v1611 = vpop.f32.mrb[0].mxu0
    %v1612 = vadd.f32 %v166, %v1611
    %v1613 = vpop.f32.mrb[0].mxu0
    %v1614 = vpop.f32.mrb[0].mxu0
    %v1615 = vpop.f32.mrb[0].mxu0
    %1616 = vdwg.mxu0
    %v1617 = vsel %vm358, %v1563, -inf
    %1618 = vmax.xlane.f32.xlu0 %v1617
    %v1619 = vpop.xlane.xlu0 %1618
    %v1620 = vsel %vm358, %v1612, -inf
    %1621 = vmax.xlane.f32.xlu0 %v1620
    %v1622 = vpop.xlane.xlu0 %1621
    %v1623 = vsub.f32 %v1563, %v1619
    %v1624 = vsub.f32 %v1612, %v1622
    %v1625 = vmul.f32 %v1623, 1.442695
    %v1626 = vpow.pop %v1625
    %v1627 = vmul.f32 %v1624, 1.442695
    %v1628 = vpow.pop %v1627
    %v1629 = vsel %vm358, %v1626, 0.0
    %1630 = vadd.xlane.f32.xlu0 %v1629
    %v1631 = vpop.xlane.xlu0 %1630
    %v1632 = vsel %vm358, %v1628, 0.0
    %1633 = vadd.xlane.f32.xlu0 %v1632
    %v1634 = vpop.xlane.xlu0 %1633
    %v1635 = vrcp.pop %v1631
    %v1636 = vmul.f32 %v1626, %v1635
    %v1637 = vrcp.pop %v1634
    %v1638 = vmul.f32 %v1628, %v1637
    %v1639 = vpack.c.bf16 %v1636, %v1636
    %v1640 = vpack.c.bf16 %v1638, %v1638
    %v1641 = vmul.bf16 %v1515, %v385
    %v1642 = vmul.bf16 %v1516, %v385
    %v1643 = vmul.bf16 %v1515, %v176
    %v1644 = vmul.bf16 %v1516, %v176
    %v1646 = vsel %vm211, %v1643, 0
    %1648 = vmatprep.subr.bf16.mxu0 0
    %1649 = vmatpush1.bf16.xpose.msra.mxu0 %v1526
    %1650 = vmatprep.subr.bf16.mxu0 0
    %1651 = vmatpush1.bf16.xpose.msra.mxu0 0
    %1652 = vmatprep.subr.bf16.mxu0 0
    %1653 = vmatpush1.bf16.xpose.msra.mxu0 0
    %1654 = vmatprep.subr.bf16.mxu0 0
    %1655 = vmatpush1.bf16.xpose.msra.mxu0 0
    %1656 = vmatprep.subr.bf16.mxu0 0
    %1657 = vmatpush1.bf16.xpose.msra.mxu0 0
    %1658 = vmatprep.subr.bf16.mxu0 0
    %1659 = vmatpush1.bf16.xpose.msra.mxu0 0
    %1660 = vmatprep.subr.bf16.mxu0 0
    %1661 = vmatpush1.bf16.xpose.msra.mxu0 0
    %1662 = vmatprep.subr.bf16.mxu0 0
    %1663 = vmatpush1.bf16.xpose.msra.mxu0 0
    %1664 = vmatprep.subr.bf16.mxu0 0
    %1665 = vmatpush1.bf16.xpose.msra.mxu0 0
    %1666 = vmatprep.subr.bf16.mxu0 0
    %1667 = vmatpush1.bf16.xpose.msra.mxu0 0
    %1668 = vmatprep.subr.bf16.mxu0 0
    %1669 = vmatpush1.bf16.xpose.msra.mxu0 0
    %1670 = vmatprep.subr.bf16.mxu0 0
    %1671 = vmatpush1.bf16.xpose.msra.mxu0 0
    %1672 = vmatprep.subr.bf16.mxu0 0
    %1673 = vmatpush1.bf16.xpose.msra.mxu0 0
    %1674 = vmatprep.subr.bf16.mxu0 0
    %1675 = vmatpush1.bf16.xpose.msra.mxu0 0
    %1676 = vmatprep.subr.bf16.mxu0 0
    %1677 = vmatpush1.bf16.xpose.msra.mxu0 0
    %1678 = vmatprep.subr.bf16.mxu0 0
    %1679 = vmatpush1.bf16.xpose.msra.mxu0 0
    %1680 = vmatprep.mubr.bf16.mxu0 0
    %1681 = vmatmul.mubr.bf16.gmra.mrb[0].mxu0 %v1646
    %v1682 = vpop.f32.mrb[0].mxu0
    %v1683 = vadd.f32 %v166, %v1682
    %v1684 = vpop.f32.mrb[0].mxu0
    %v1685 = vpop.f32.mrb[0].mxu0
    %v1686 = vpop.f32.mrb[0].mxu0
    %1687 = vdwg.mxu0
    %v1689 = vsel %vm211, %v1644, 0
    %1691 = vmatprep.subr.bf16.mxu0 0
    %1692 = vmatpush1.bf16.xpose.msra.mxu0 %v1575
    %1693 = vmatprep.subr.bf16.mxu0 0
    %1694 = vmatpush1.bf16.xpose.msra.mxu0 0
    %1695 = vmatprep.subr.bf16.mxu0 0
    %1696 = vmatpush1.bf16.xpose.msra.mxu0 0
    %1697 = vmatprep.subr.bf16.mxu0 0
    %1698 = vmatpush1.bf16.xpose.msra.mxu0 0
    %1699 = vmatprep.subr.bf16.mxu0 0
    %1700 = vmatpush1.bf16.xpose.msra.mxu0 0
    %1701 = vmatprep.subr.bf16.mxu0 0
    %1702 = vmatpush1.bf16.xpose.msra.mxu0 0
    %1703 = vmatprep.subr.bf16.mxu0 0
    %1704 = vmatpush1.bf16.xpose.msra.mxu0 0
    %1705 = vmatprep.subr.bf16.mxu0 0
    %1706 = vmatpush1.bf16.xpose.msra.mxu0 0
    %1707 = vmatprep.subr.bf16.mxu0 0
    %1708 = vmatpush1.bf16.xpose.msra.mxu0 0
    %1709 = vmatprep.subr.bf16.mxu0 0
    %1710 = vmatpush1.bf16.xpose.msra.mxu0 0
    %1711 = vmatprep.subr.bf16.mxu0 0
    %1712 = vmatpush1.bf16.xpose.msra.mxu0 0
    %1713 = vmatprep.subr.bf16.mxu0 0
    %1714 = vmatpush1.bf16.xpose.msra.mxu0 0
    %1715 = vmatprep.subr.bf16.mxu0 0
    %1716 = vmatpush1.bf16.xpose.msra.mxu0 0
    %1717 = vmatprep.subr.bf16.mxu0 0
    %1718 = vmatpush1.bf16.xpose.msra.mxu0 0
    %1719 = vmatprep.subr.bf16.mxu0 0
    %1720 = vmatpush1.bf16.xpose.msra.mxu0 0
    %1721 = vmatprep.subr.bf16.mxu0 0
    %1722 = vmatpush1.bf16.xpose.msra.mxu0 0
    %1723 = vmatprep.mubr.bf16.mxu0 0
    %1724 = vmatmul.mubr.bf16.gmra.mrb[0].mxu0 %v1689
    %v1725 = vpop.f32.mrb[0].mxu0
    %v1726 = vadd.f32 %v166, %v1725
    %v1727 = vpop.f32.mrb[0].mxu0
    %v1728 = vpop.f32.mrb[0].mxu0
    %v1729 = vpop.f32.mrb[0].mxu0
    %1730 = vdwg.mxu0
    %v1731 = vsel %vm358, %v1683, -inf
    %1732 = vmax.xlane.f32.xlu0 %v1731
    %v1733 = vpop.xlane.xlu0 %1732
    %v1734 = vsel %vm358, %v1726, -inf
    %1735 = vmax.xlane.f32.xlu0 %v1734
    %v1736 = vpop.xlane.xlu0 %1735
    %v1737 = vsub.f32 %v1683, %v1733
    %v1738 = vsub.f32 %v1726, %v1736
    %v1739 = vmul.f32 %v1737, 1.442695
    %v1740 = vpow.pop %v1739
    %v1741 = vmul.f32 %v1738, 1.442695
    %v1742 = vpow.pop %v1741
    %v1743 = vsel %vm358, %v1740, 0.0
    %1744 = vadd.xlane.f32.xlu0 %v1743
    %v1745 = vpop.xlane.xlu0 %1744
    %v1746 = vsel %vm358, %v1742, 0.0
    %1747 = vadd.xlane.f32.xlu0 %v1746
    %v1748 = vpop.xlane.xlu0 %1747
    %v1749 = vrcp.pop %v1745
    %v1750 = vmul.f32 %v1740, %v1749
    %v1751 = vrcp.pop %v1748
    %v1752 = vmul.f32 %v1742, %v1751
    %v1753 = vpack.c.bf16 %v1750, %v1750
    %v1754 = vpack.c.bf16 %v1752, %v1752
    %v1755 = vmul.bf16 %v1515, %v503
    %v1756 = vmul.bf16 %v1516, %v503
    %1758 = vrot.lane.b32.xlu0 %v1755, 64
    %v1759 = vpop.permute.xlu0 %1758
    %v1761 = vsel %vm358, %v1753, 0
    %v1764 = vsel %vm513, %v1759, 0
    %1766 = vmatprep.subr.bf16.mxu0 0
    %1767 = vmatpush1.bf16.msra.mxu0 %v1764
    %1768 = vmatprep.subr.bf16.mxu0 0
    %1769 = vmatpush1.bf16.msra.mxu0 0
    %1770 = vmatprep.subr.bf16.mxu0 0
    %1771 = vmatpush1.bf16.msra.mxu0 0
    %1772 = vmatprep.subr.bf16.mxu0 0
    %1773 = vmatpush1.bf16.msra.mxu0 0
    %1774 = vmatprep.subr.bf16.mxu0 0
    %1775 = vmatpush1.bf16.msra.mxu0 0
    %1776 = vmatprep.subr.bf16.mxu0 0
    %1777 = vmatpush1.bf16.msra.mxu0 0
    %1778 = vmatprep.subr.bf16.mxu0 0
    %1779 = vmatpush1.bf16.msra.mxu0 0
    %1780 = vmatprep.subr.bf16.mxu0 0
    %1781 = vmatpush1.bf16.msra.mxu0 0
    %1782 = vmatprep.subr.bf16.mxu0 0
    %1783 = vmatpush1.bf16.msra.mxu0 0
    %1784 = vmatprep.subr.bf16.mxu0 0
    %1785 = vmatpush1.bf16.msra.mxu0 0
    %1786 = vmatprep.subr.bf16.mxu0 0
    %1787 = vmatpush1.bf16.msra.mxu0 0
    %1788 = vmatprep.subr.bf16.mxu0 0
    %1789 = vmatpush1.bf16.msra.mxu0 0
    %1790 = vmatprep.subr.bf16.mxu0 0
    %1791 = vmatpush1.bf16.msra.mxu0 0
    %1792 = vmatprep.subr.bf16.mxu0 0
    %1793 = vmatpush1.bf16.msra.mxu0 0
    %1794 = vmatprep.subr.bf16.mxu0 0
    %1795 = vmatpush1.bf16.msra.mxu0 0
    %1796 = vmatprep.subr.bf16.mxu0 0
    %1797 = vmatpush1.bf16.msra.mxu0 0
    %1798 = vmatprep.mubr.bf16.mxu0 0
    %1799 = vmatmul.mubr.bf16.gmra.mrb[0].mxu0 %v1761
    %v1800 = vpop.f32.mrb[0].mxu0
    %v1801 = vadd.f32 0.0, %v1800
    %v1802 = vpop.f32.mrb[0].mxu0
    %v1803 = vpop.f32.mrb[0].mxu0
    %v1804 = vpop.f32.mrb[0].mxu0
    %1805 = vdwg.mxu0
    %1807 = vrot.lane.b32.xlu0 %v1756, 64
    %v1808 = vpop.permute.xlu0 %1807
    %v1810 = vsel %vm358, %v1754, 0
    %v1813 = vsel %vm513, %v1808, 0
    %1815 = vmatprep.subr.bf16.mxu0 0
    %1816 = vmatpush1.bf16.msra.mxu0 %v1813
    %1817 = vmatprep.subr.bf16.mxu0 0
    %1818 = vmatpush1.bf16.msra.mxu0 0
    %1819 = vmatprep.subr.bf16.mxu0 0
    %1820 = vmatpush1.bf16.msra.mxu0 0
    %1821 = vmatprep.subr.bf16.mxu0 0
    %1822 = vmatpush1.bf16.msra.mxu0 0
    %1823 = vmatprep.subr.bf16.mxu0 0
    %1824 = vmatpush1.bf16.msra.mxu0 0
    %1825 = vmatprep.subr.bf16.mxu0 0
    %1826 = vmatpush1.bf16.msra.mxu0 0
    %1827 = vmatprep.subr.bf16.mxu0 0
    %1828 = vmatpush1.bf16.msra.mxu0 0
    %1829 = vmatprep.subr.bf16.mxu0 0
    %1830 = vmatpush1.bf16.msra.mxu0 0
    %1831 = vmatprep.subr.bf16.mxu0 0
    %1832 = vmatpush1.bf16.msra.mxu0 0
    %1833 = vmatprep.subr.bf16.mxu0 0
    %1834 = vmatpush1.bf16.msra.mxu0 0
    %1835 = vmatprep.subr.bf16.mxu0 0
    %1836 = vmatpush1.bf16.msra.mxu0 0
    %1837 = vmatprep.subr.bf16.mxu0 0
    %1838 = vmatpush1.bf16.msra.mxu0 0
    %1839 = vmatprep.subr.bf16.mxu0 0
    %1840 = vmatpush1.bf16.msra.mxu0 0
    %1841 = vmatprep.subr.bf16.mxu0 0
    %1842 = vmatpush1.bf16.msra.mxu0 0
    %1843 = vmatprep.subr.bf16.mxu0 0
    %1844 = vmatpush1.bf16.msra.mxu0 0
    %1845 = vmatprep.subr.bf16.mxu0 0
    %1846 = vmatpush1.bf16.msra.mxu0 0
    %1847 = vmatprep.mubr.bf16.mxu0 0
    %1848 = vmatmul.mubr.bf16.gmra.mrb[0].mxu0 %v1810
    %v1849 = vpop.f32.mrb[0].mxu0
    %v1850 = vadd.f32 0.0, %v1849
    %v1851 = vpop.f32.mrb[0].mxu0
    %v1852 = vpop.f32.mrb[0].mxu0
    %v1853 = vpop.f32.mrb[0].mxu0
    %1854 = vdwg.mxu0
    %1856 = vrot.lane.b32.xlu0 %v1641, 64
    %v1857 = vpop.permute.xlu0 %1856
    %v1859 = vsel %vm358, %v1639, 0
    %v1862 = vsel %vm513, %v1857, 0
    %1864 = vmatprep.subr.bf16.mxu0 0
    %1865 = vmatpush1.bf16.msra.mxu0 %v1862
    %1866 = vmatprep.subr.bf16.mxu0 0
    %1867 = vmatpush1.bf16.msra.mxu0 0
    %1868 = vmatprep.subr.bf16.mxu0 0
    %1869 = vmatpush1.bf16.msra.mxu0 0
    %1870 = vmatprep.subr.bf16.mxu0 0
    %1871 = vmatpush1.bf16.msra.mxu0 0
    %1872 = vmatprep.subr.bf16.mxu0 0
    %1873 = vmatpush1.bf16.msra.mxu0 0
    %1874 = vmatprep.subr.bf16.mxu0 0
    %1875 = vmatpush1.bf16.msra.mxu0 0
    %1876 = vmatprep.subr.bf16.mxu0 0
    %1877 = vmatpush1.bf16.msra.mxu0 0
    %1878 = vmatprep.subr.bf16.mxu0 0
    %1879 = vmatpush1.bf16.msra.mxu0 0
    %1880 = vmatprep.subr.bf16.mxu0 0
    %1881 = vmatpush1.bf16.msra.mxu0 0
    %1882 = vmatprep.subr.bf16.mxu0 0
    %1883 = vmatpush1.bf16.msra.mxu0 0
    %1884 = vmatprep.subr.bf16.mxu0 0
    %1885 = vmatpush1.bf16.msra.mxu0 0
    %1886 = vmatprep.subr.bf16.mxu0 0
    %1887 = vmatpush1.bf16.msra.mxu0 0
    %1888 = vmatprep.subr.bf16.mxu0 0
    %1889 = vmatpush1.bf16.msra.mxu0 0
    %1890 = vmatprep.subr.bf16.mxu0 0
    %1891 = vmatpush1.bf16.msra.mxu0 0
    %1892 = vmatprep.subr.bf16.mxu0 0
    %1893 = vmatpush1.bf16.msra.mxu0 0
    %1894 = vmatprep.subr.bf16.mxu0 0
    %1895 = vmatpush1.bf16.msra.mxu0 0
    %1896 = vmatprep.mubr.bf16.mxu0 0
    %1897 = vmatmul.mubr.bf16.gmra.mrb[0].mxu0 %v1859
    %v1898 = vpop.f32.mrb[0].mxu0
    %v1899 = vadd.f32 %v1801, %v1898
    %v1900 = vpop.f32.mrb[0].mxu0
    %v1901 = vpop.f32.mrb[0].mxu0
    %v1902 = vpop.f32.mrb[0].mxu0
    %1903 = vdwg.mxu0
    %1905 = vrot.lane.b32.xlu0 %v1642, 64
    %v1906 = vpop.permute.xlu0 %1905
    %v1908 = vsel %vm358, %v1640, 0
    %v1911 = vsel %vm513, %v1906, 0
    %1913 = vmatprep.subr.bf16.mxu0 0
    %1914 = vmatpush1.bf16.msra.mxu0 %v1911
    %1915 = vmatprep.subr.bf16.mxu0 0
    %1916 = vmatpush1.bf16.msra.mxu0 0
    %1917 = vmatprep.subr.bf16.mxu0 0
    %1918 = vmatpush1.bf16.msra.mxu0 0
    %1919 = vmatprep.subr.bf16.mxu0 0
    %1920 = vmatpush1.bf16.msra.mxu0 0
    %1921 = vmatprep.subr.bf16.mxu0 0
    %1922 = vmatpush1.bf16.msra.mxu0 0
    %1923 = vmatprep.subr.bf16.mxu0 0
    %1924 = vmatpush1.bf16.msra.mxu0 0
    %1925 = vmatprep.subr.bf16.mxu0 0
    %1926 = vmatpush1.bf16.msra.mxu0 0
    %1927 = vmatprep.subr.bf16.mxu0 0
    %1928 = vmatpush1.bf16.msra.mxu0 0
    %1929 = vmatprep.subr.bf16.mxu0 0
    %1930 = vmatpush1.bf16.msra.mxu0 0
    %1931 = vmatprep.subr.bf16.mxu0 0
    %1932 = vmatpush1.bf16.msra.mxu0 0
    %1933 = vmatprep.subr.bf16.mxu0 0
    %1934 = vmatpush1.bf16.msra.mxu0 0
    %1935 = vmatprep.subr.bf16.mxu0 0
    %1936 = vmatpush1.bf16.msra.mxu0 0
    %1937 = vmatprep.subr.bf16.mxu0 0
    %1938 = vmatpush1.bf16.msra.mxu0 0
    %1939 = vmatprep.subr.bf16.mxu0 0
    %1940 = vmatpush1.bf16.msra.mxu0 0
    %1941 = vmatprep.subr.bf16.mxu0 0
    %1942 = vmatpush1.bf16.msra.mxu0 0
    %1943 = vmatprep.subr.bf16.mxu0 0
    %1944 = vmatpush1.bf16.msra.mxu0 0
    %1945 = vmatprep.mubr.bf16.mxu0 0
    %1946 = vmatmul.mubr.bf16.gmra.mrb[0].mxu0 %v1908
    %v1947 = vpop.f32.mrb[0].mxu0
    %v1948 = vadd.f32 %v1850, %v1947
    %v1949 = vpop.f32.mrb[0].mxu0
    %v1950 = vpop.f32.mrb[0].mxu0
    %v1951 = vpop.f32.mrb[0].mxu0
    %1952 = vdwg.mxu0
    %v1953 = vmul.bf16 %v1515, %v181
    %v1954 = vmul.bf16 %v1516, %v181
    %v1956 = vsel %vm211, %v1953, 0
    %1958 = vmatprep.subr.bf16.mxu0 0
    %1959 = vmatpush1.bf16.xpose.msra.mxu0 %v1526
    %1960 = vmatprep.subr.bf16.mxu0 0
    %1961 = vmatpush1.bf16.xpose.msra.mxu0 0
    %1962 = vmatprep.subr.bf16.mxu0 0
    %1963 = vmatpush1.bf16.xpose.msra.mxu0 0
    %1964 = vmatprep.subr.bf16.mxu0 0
    %1965 = vmatpush1.bf16.xpose.msra.mxu0 0
    %1966 = vmatprep.subr.bf16.mxu0 0
    %1967 = vmatpush1.bf16.xpose.msra.mxu0 0
    %1968 = vmatprep.subr.bf16.mxu0 0
    %1969 = vmatpush1.bf16.xpose.msra.mxu0 0
    %1970 = vmatprep.subr.bf16.mxu0 0
    %1971 = vmatpush1.bf16.xpose.msra.mxu0 0
    %1972 = vmatprep.subr.bf16.mxu0 0
    %1973 = vmatpush1.bf16.xpose.msra.mxu0 0
    %1974 = vmatprep.subr.bf16.mxu0 0
    %1975 = vmatpush1.bf16.xpose.msra.mxu0 0
    %1976 = vmatprep.subr.bf16.mxu0 0
    %1977 = vmatpush1.bf16.xpose.msra.mxu0 0
    %1978 = vmatprep.subr.bf16.mxu0 0
    %1979 = vmatpush1.bf16.xpose.msra.mxu0 0
    %1980 = vmatprep.subr.bf16.mxu0 0
    %1981 = vmatpush1.bf16.xpose.msra.mxu0 0
    %1982 = vmatprep.subr.bf16.mxu0 0
    %1983 = vmatpush1.bf16.xpose.msra.mxu0 0
    %1984 = vmatprep.subr.bf16.mxu0 0
    %1985 = vmatpush1.bf16.xpose.msra.mxu0 0
    %1986 = vmatprep.subr.bf16.mxu0 0
    %1987 = vmatpush1.bf16.xpose.msra.mxu0 0
    %1988 = vmatprep.subr.bf16.mxu0 0
    %1989 = vmatpush1.bf16.xpose.msra.mxu0 0
    %1990 = vmatprep.mubr.bf16.mxu0 0
    %1991 = vmatmul.mubr.bf16.gmra.mrb[0].mxu0 %v1956
    %v1992 = vpop.f32.mrb[0].mxu0
    %v1993 = vadd.f32 %v166, %v1992
    %v1994 = vpop.f32.mrb[0].mxu0
    %v1995 = vpop.f32.mrb[0].mxu0
    %v1996 = vpop.f32.mrb[0].mxu0
    %1997 = vdwg.mxu0
    %v1999 = vsel %vm211, %v1954, 0
    %2001 = vmatprep.subr.bf16.mxu0 0
    %2002 = vmatpush1.bf16.xpose.msra.mxu0 %v1575
    %2003 = vmatprep.subr.bf16.mxu0 0
    %2004 = vmatpush1.bf16.xpose.msra.mxu0 0
    %2005 = vmatprep.subr.bf16.mxu0 0
    %2006 = vmatpush1.bf16.xpose.msra.mxu0 0
    %2007 = vmatprep.subr.bf16.mxu0 0
    %2008 = vmatpush1.bf16.xpose.msra.mxu0 0
    %2009 = vmatprep.subr.bf16.mxu0 0
    %2010 = vmatpush1.bf16.xpose.msra.mxu0 0
    %2011 = vmatprep.subr.bf16.mxu0 0
    %2012 = vmatpush1.bf16.xpose.msra.mxu0 0
    %2013 = vmatprep.subr.bf16.mxu0 0
    %2014 = vmatpush1.bf16.xpose.msra.mxu0 0
    %2015 = vmatprep.subr.bf16.mxu0 0
    %2016 = vmatpush1.bf16.xpose.msra.mxu0 0
    %2017 = vmatprep.subr.bf16.mxu0 0
    %2018 = vmatpush1.bf16.xpose.msra.mxu0 0
    %2019 = vmatprep.subr.bf16.mxu0 0
    %2020 = vmatpush1.bf16.xpose.msra.mxu0 0
    %2021 = vmatprep.subr.bf16.mxu0 0
    %2022 = vmatpush1.bf16.xpose.msra.mxu0 0
    %2023 = vmatprep.subr.bf16.mxu0 0
    %2024 = vmatpush1.bf16.xpose.msra.mxu0 0
    %2025 = vmatprep.subr.bf16.mxu0 0
    %2026 = vmatpush1.bf16.xpose.msra.mxu0 0
    %2027 = vmatprep.subr.bf16.mxu0 0
    %2028 = vmatpush1.bf16.xpose.msra.mxu0 0
    %2029 = vmatprep.subr.bf16.mxu0 0
    %2030 = vmatpush1.bf16.xpose.msra.mxu0 0
    %2031 = vmatprep.subr.bf16.mxu0 0
    %2032 = vmatpush1.bf16.xpose.msra.mxu0 0
    %2033 = vmatprep.mubr.bf16.mxu0 0
    %2034 = vmatmul.mubr.bf16.gmra.mrb[0].mxu0 %v1999
    %v2035 = vpop.f32.mrb[0].mxu0
    %v2036 = vadd.f32 %v166, %v2035
    %v2037 = vpop.f32.mrb[0].mxu0
    %v2038 = vpop.f32.mrb[0].mxu0
    %v2039 = vpop.f32.mrb[0].mxu0
    %2040 = vdwg.mxu0
    %v2041 = vsel %vm358, %v1993, -inf
    %2042 = vmax.xlane.f32.xlu0 %v2041
    %v2043 = vpop.xlane.xlu0 %2042
    %v2044 = vsel %vm358, %v2036, -inf
    %2045 = vmax.xlane.f32.xlu0 %v2044
    %v2046 = vpop.xlane.xlu0 %2045
    %v2047 = vsub.f32 %v1993, %v2043
    %v2048 = vsub.f32 %v2036, %v2046
    %v2049 = vmul.f32 %v2047, 1.442695
    %v2050 = vpow.pop %v2049
    %v2051 = vmul.f32 %v2048, 1.442695
    %v2052 = vpow.pop %v2051
    %v2053 = vsel %vm358, %v2050, 0.0
    %2054 = vadd.xlane.f32.xlu0 %v2053
    %v2055 = vpop.xlane.xlu0 %2054
    %v2056 = vsel %vm358, %v2052, 0.0
    %2057 = vadd.xlane.f32.xlu0 %v2056
    %v2058 = vpop.xlane.xlu0 %2057
    %v2059 = vrcp.pop %v2055
    %v2060 = vmul.f32 %v2050, %v2059
    %v2061 = vrcp.pop %v2058
    %v2062 = vmul.f32 %v2052, %v2061
    %v2063 = vpack.c.bf16 %v2060, %v2060
    %v2064 = vpack.c.bf16 %v2062, %v2062
    %v2065 = vmul.bf16 %v1515, %v818
    %v2066 = vmul.bf16 %v1516, %v818
    %2068 = vrot.lane.b32.xlu0 %v2065, 64
    %v2069 = vpop.permute.xlu0 %2068
    %v2071 = vsel %vm358, %v2063, 0
    %v2074 = vsel %vm513, %v2069, 0
    %2076 = vmatprep.subr.bf16.mxu0 0
    %2077 = vmatpush1.bf16.msra.mxu0 %v2074
    %2078 = vmatprep.subr.bf16.mxu0 0
    %2079 = vmatpush1.bf16.msra.mxu0 0
    %2080 = vmatprep.subr.bf16.mxu0 0
    %2081 = vmatpush1.bf16.msra.mxu0 0
    %2082 = vmatprep.subr.bf16.mxu0 0
    %2083 = vmatpush1.bf16.msra.mxu0 0
    %2084 = vmatprep.subr.bf16.mxu0 0
    %2085 = vmatpush1.bf16.msra.mxu0 0
    %2086 = vmatprep.subr.bf16.mxu0 0
    %2087 = vmatpush1.bf16.msra.mxu0 0
    %2088 = vmatprep.subr.bf16.mxu0 0
    %2089 = vmatpush1.bf16.msra.mxu0 0
    %2090 = vmatprep.subr.bf16.mxu0 0
    %2091 = vmatpush1.bf16.msra.mxu0 0
    %2092 = vmatprep.subr.bf16.mxu0 0
    %2093 = vmatpush1.bf16.msra.mxu0 0
    %2094 = vmatprep.subr.bf16.mxu0 0
    %2095 = vmatpush1.bf16.msra.mxu0 0
    %2096 = vmatprep.subr.bf16.mxu0 0
    %2097 = vmatpush1.bf16.msra.mxu0 0
    %2098 = vmatprep.subr.bf16.mxu0 0
    %2099 = vmatpush1.bf16.msra.mxu0 0
    %2100 = vmatprep.subr.bf16.mxu0 0
    %2101 = vmatpush1.bf16.msra.mxu0 0
    %2102 = vmatprep.subr.bf16.mxu0 0
    %2103 = vmatpush1.bf16.msra.mxu0 0
    %2104 = vmatprep.subr.bf16.mxu0 0
    %2105 = vmatpush1.bf16.msra.mxu0 0
    %2106 = vmatprep.subr.bf16.mxu0 0
    %2107 = vmatpush1.bf16.msra.mxu0 0
    %2108 = vmatprep.mubr.bf16.mxu0 0
    %2109 = vmatmul.mubr.bf16.gmra.mrb[0].mxu0 %v2071
    %v2110 = vpop.f32.mrb[0].mxu0
    %v2111 = vadd.f32 0.0, %v2110
    %v2112 = vpop.f32.mrb[0].mxu0
    %v2113 = vpop.f32.mrb[0].mxu0
    %v2114 = vpop.f32.mrb[0].mxu0
    %2115 = vdwg.mxu0
    %2117 = vrot.lane.b32.xlu0 %v2066, 64
    %v2118 = vpop.permute.xlu0 %2117
    %v2120 = vsel %vm358, %v2064, 0
    %v2123 = vsel %vm513, %v2118, 0
    %2125 = vmatprep.subr.bf16.mxu0 0
    %2126 = vmatpush1.bf16.msra.mxu0 %v2123
    %2127 = vmatprep.subr.bf16.mxu0 0
    %2128 = vmatpush1.bf16.msra.mxu0 0
    %2129 = vmatprep.subr.bf16.mxu0 0
    %2130 = vmatpush1.bf16.msra.mxu0 0
    %2131 = vmatprep.subr.bf16.mxu0 0
    %2132 = vmatpush1.bf16.msra.mxu0 0
    %2133 = vmatprep.subr.bf16.mxu0 0
    %2134 = vmatpush1.bf16.msra.mxu0 0
    %2135 = vmatprep.subr.bf16.mxu0 0
    %2136 = vmatpush1.bf16.msra.mxu0 0
    %2137 = vmatprep.subr.bf16.mxu0 0
    %2138 = vmatpush1.bf16.msra.mxu0 0
    %2139 = vmatprep.subr.bf16.mxu0 0
    %2140 = vmatpush1.bf16.msra.mxu0 0
    %2141 = vmatprep.subr.bf16.mxu0 0
    %2142 = vmatpush1.bf16.msra.mxu0 0
    %2143 = vmatprep.subr.bf16.mxu0 0
    %2144 = vmatpush1.bf16.msra.mxu0 0
    %2145 = vmatprep.subr.bf16.mxu0 0
    %2146 = vmatpush1.bf16.msra.mxu0 0
    %2147 = vmatprep.subr.bf16.mxu0 0
    %2148 = vmatpush1.bf16.msra.mxu0 0
    %2149 = vmatprep.subr.bf16.mxu0 0
    %2150 = vmatpush1.bf16.msra.mxu0 0
    %2151 = vmatprep.subr.bf16.mxu0 0
    %2152 = vmatpush1.bf16.msra.mxu0 0
    %2153 = vmatprep.subr.bf16.mxu0 0
    %2154 = vmatpush1.bf16.msra.mxu0 0
    %2155 = vmatprep.subr.bf16.mxu0 0
    %2156 = vmatpush1.bf16.msra.mxu0 0
    %2157 = vmatprep.mubr.bf16.mxu0 0
    %2158 = vmatmul.mubr.bf16.gmra.mrb[0].mxu0 %v2120
    %v2159 = vpop.f32.mrb[0].mxu0
    %v2160 = vadd.f32 0.0, %v2159
    %v2161 = vpop.f32.mrb[0].mxu0
    %v2162 = vpop.f32.mrb[0].mxu0
    %v2163 = vpop.f32.mrb[0].mxu0
    %2164 = vdwg.mxu0
    %v2165 = vadd.f32 %v1899, %v2111
    %v2166 = vadd.f32 %v1948, %v2160
    %v2167 = vmul.bf16 %v1515, %v186
    %v2168 = vmul.bf16 %v1516, %v186
    %v2170 = vsel %vm211, %v2167, 0
    %2172 = vmatprep.subr.bf16.mxu0 0
    %2173 = vmatpush1.bf16.xpose.msra.mxu0 %v1526
    %2174 = vmatprep.subr.bf16.mxu0 0
    %2175 = vmatpush1.bf16.xpose.msra.mxu0 0
    %2176 = vmatprep.subr.bf16.mxu0 0
    %2177 = vmatpush1.bf16.xpose.msra.mxu0 0
    %2178 = vmatprep.subr.bf16.mxu0 0
    %2179 = vmatpush1.bf16.xpose.msra.mxu0 0
    %2180 = vmatprep.subr.bf16.mxu0 0
    %2181 = vmatpush1.bf16.xpose.msra.mxu0 0
    %2182 = vmatprep.subr.bf16.mxu0 0
    %2183 = vmatpush1.bf16.xpose.msra.mxu0 0
    %2184 = vmatprep.subr.bf16.mxu0 0
    %2185 = vmatpush1.bf16.xpose.msra.mxu0 0
    %2186 = vmatprep.subr.bf16.mxu0 0
    %2187 = vmatpush1.bf16.xpose.msra.mxu0 0
    %2188 = vmatprep.subr.bf16.mxu0 0
    %2189 = vmatpush1.bf16.xpose.msra.mxu0 0
    %2190 = vmatprep.subr.bf16.mxu0 0
    %2191 = vmatpush1.bf16.xpose.msra.mxu0 0
    %2192 = vmatprep.subr.bf16.mxu0 0
    %2193 = vmatpush1.bf16.xpose.msra.mxu0 0
    %2194 = vmatprep.subr.bf16.mxu0 0
    %2195 = vmatpush1.bf16.xpose.msra.mxu0 0
    %2196 = vmatprep.subr.bf16.mxu0 0
    %2197 = vmatpush1.bf16.xpose.msra.mxu0 0
    %2198 = vmatprep.subr.bf16.mxu0 0
    %2199 = vmatpush1.bf16.xpose.msra.mxu0 0
    %2200 = vmatprep.subr.bf16.mxu0 0
    %2201 = vmatpush1.bf16.xpose.msra.mxu0 0
    %2202 = vmatprep.subr.bf16.mxu0 0
    %2203 = vmatpush1.bf16.xpose.msra.mxu0 0
    %2204 = vmatprep.mubr.bf16.mxu0 0
    %2205 = vmatmul.mubr.bf16.gmra.mrb[0].mxu0 %v2170
    %v2206 = vpop.f32.mrb[0].mxu0
    %v2207 = vadd.f32 %v166, %v2206
    %v2208 = vpop.f32.mrb[0].mxu0
    %v2209 = vpop.f32.mrb[0].mxu0
    %v2210 = vpop.f32.mrb[0].mxu0
    %2211 = vdwg.mxu0
    %v2213 = vsel %vm211, %v2168, 0
    %2215 = vmatprep.subr.bf16.mxu0 0
    %2216 = vmatpush1.bf16.xpose.msra.mxu0 %v1575
    %2217 = vmatprep.subr.bf16.mxu0 0
    %2218 = vmatpush1.bf16.xpose.msra.mxu0 0
    %2219 = vmatprep.subr.bf16.mxu0 0
    %2220 = vmatpush1.bf16.xpose.msra.mxu0 0
    %2221 = vmatprep.subr.bf16.mxu0 0
    %2222 = vmatpush1.bf16.xpose.msra.mxu0 0
    %2223 = vmatprep.subr.bf16.mxu0 0
    %2224 = vmatpush1.bf16.xpose.msra.mxu0 0
    %2225 = vmatprep.subr.bf16.mxu0 0
    %2226 = vmatpush1.bf16.xpose.msra.mxu0 0
    %2227 = vmatprep.subr.bf16.mxu0 0
    %2228 = vmatpush1.bf16.xpose.msra.mxu0 0
    %2229 = vmatprep.subr.bf16.mxu0 0
    %2230 = vmatpush1.bf16.xpose.msra.mxu0 0
    %2231 = vmatprep.subr.bf16.mxu0 0
    %2232 = vmatpush1.bf16.xpose.msra.mxu0 0
    %2233 = vmatprep.subr.bf16.mxu0 0
    %2234 = vmatpush1.bf16.xpose.msra.mxu0 0
    %2235 = vmatprep.subr.bf16.mxu0 0
    %2236 = vmatpush1.bf16.xpose.msra.mxu0 0
    %2237 = vmatprep.subr.bf16.mxu0 0
    %2238 = vmatpush1.bf16.xpose.msra.mxu0 0
    %2239 = vmatprep.subr.bf16.mxu0 0
    %2240 = vmatpush1.bf16.xpose.msra.mxu0 0
    %2241 = vmatprep.subr.bf16.mxu0 0
    %2242 = vmatpush1.bf16.xpose.msra.mxu0 0
    %2243 = vmatprep.subr.bf16.mxu0 0
    %2244 = vmatpush1.bf16.xpose.msra.mxu0 0
    %2245 = vmatprep.subr.bf16.mxu0 0
    %2246 = vmatpush1.bf16.xpose.msra.mxu0 0
    %2247 = vmatprep.mubr.bf16.mxu0 0
    %2248 = vmatmul.mubr.bf16.gmra.mrb[0].mxu0 %v2213
    %v2249 = vpop.f32.mrb[0].mxu0
    %v2250 = vadd.f32 %v166, %v2249
    %v2251 = vpop.f32.mrb[0].mxu0
    %v2252 = vpop.f32.mrb[0].mxu0
    %v2253 = vpop.f32.mrb[0].mxu0
    %2254 = vdwg.mxu0
    %v2255 = vsel %vm358, %v2207, -inf
    %2256 = vmax.xlane.f32.xlu0 %v2255
    %v2257 = vpop.xlane.xlu0 %2256
    %v2258 = vsel %vm358, %v2250, -inf
    %2259 = vmax.xlane.f32.xlu0 %v2258
    %v2260 = vpop.xlane.xlu0 %2259
    %v2261 = vsub.f32 %v2207, %v2257
    %v2262 = vsub.f32 %v2250, %v2260
    %v2263 = vmul.f32 %v2261, 1.442695
    %v2264 = vpow.pop %v2263
    %v2265 = vmul.f32 %v2262, 1.442695
    %v2266 = vpow.pop %v2265
    %v2267 = vsel %vm358, %v2264, 0.0
    %2268 = vadd.xlane.f32.xlu0 %v2267
    %v2269 = vpop.xlane.xlu0 %2268
    %v2270 = vsel %vm358, %v2266, 0.0
    %2271 = vadd.xlane.f32.xlu0 %v2270
    %v2272 = vpop.xlane.xlu0 %2271
    %v2273 = vrcp.pop %v2269
    %v2274 = vmul.f32 %v2264, %v2273
    %v2275 = vrcp.pop %v2272
    %v2276 = vmul.f32 %v2266, %v2275
    %v2277 = vpack.c.bf16 %v2274, %v2274
    %v2278 = vpack.c.bf16 %v2276, %v2276
    %v2279 = vmul.bf16 %v1515, %v1036
    %v2280 = vmul.bf16 %v1516, %v1036
    %2282 = vrot.lane.b32.xlu0 %v2279, 64
    %v2283 = vpop.permute.xlu0 %2282
    %v2285 = vsel %vm358, %v2277, 0
    %v2288 = vsel %vm513, %v2283, 0
    %2290 = vmatprep.subr.bf16.mxu0 0
    %2291 = vmatpush1.bf16.msra.mxu0 %v2288
    %2292 = vmatprep.subr.bf16.mxu0 0
    %2293 = vmatpush1.bf16.msra.mxu0 0
    %2294 = vmatprep.subr.bf16.mxu0 0
    %2295 = vmatpush1.bf16.msra.mxu0 0
    %2296 = vmatprep.subr.bf16.mxu0 0
    %2297 = vmatpush1.bf16.msra.mxu0 0
    %2298 = vmatprep.subr.bf16.mxu0 0
    %2299 = vmatpush1.bf16.msra.mxu0 0
    %2300 = vmatprep.subr.bf16.mxu0 0
    %2301 = vmatpush1.bf16.msra.mxu0 0
    %2302 = vmatprep.subr.bf16.mxu0 0
    %2303 = vmatpush1.bf16.msra.mxu0 0
    %2304 = vmatprep.subr.bf16.mxu0 0
    %2305 = vmatpush1.bf16.msra.mxu0 0
    %2306 = vmatprep.subr.bf16.mxu0 0
    %2307 = vmatpush1.bf16.msra.mxu0 0
    %2308 = vmatprep.subr.bf16.mxu0 0
    %2309 = vmatpush1.bf16.msra.mxu0 0
    %2310 = vmatprep.subr.bf16.mxu0 0
    %2311 = vmatpush1.bf16.msra.mxu0 0
    %2312 = vmatprep.subr.bf16.mxu0 0
    %2313 = vmatpush1.bf16.msra.mxu0 0
    %2314 = vmatprep.subr.bf16.mxu0 0
    %2315 = vmatpush1.bf16.msra.mxu0 0
    %2316 = vmatprep.subr.bf16.mxu0 0
    %2317 = vmatpush1.bf16.msra.mxu0 0
    %2318 = vmatprep.subr.bf16.mxu0 0
    %2319 = vmatpush1.bf16.msra.mxu0 0
    %2320 = vmatprep.subr.bf16.mxu0 0
    %2321 = vmatpush1.bf16.msra.mxu0 0
    %2322 = vmatprep.mubr.bf16.mxu0 0
    %2323 = vmatmul.mubr.bf16.gmra.mrb[0].mxu0 %v2285
    %v2324 = vpop.f32.mrb[0].mxu0
    %v2325 = vadd.f32 0.0, %v2324
    %v2326 = vpop.f32.mrb[0].mxu0
    %v2327 = vpop.f32.mrb[0].mxu0
    %v2328 = vpop.f32.mrb[0].mxu0
    %2329 = vdwg.mxu0
    %2331 = vrot.lane.b32.xlu0 %v2280, 64
    %v2332 = vpop.permute.xlu0 %2331
    %v2334 = vsel %vm358, %v2278, 0
    %v2337 = vsel %vm513, %v2332, 0
    %2339 = vmatprep.subr.bf16.mxu0 0
    %2340 = vmatpush1.bf16.msra.mxu0 %v2337
    %2341 = vmatprep.subr.bf16.mxu0 0
    %2342 = vmatpush1.bf16.msra.mxu0 0
    %2343 = vmatprep.subr.bf16.mxu0 0
    %2344 = vmatpush1.bf16.msra.mxu0 0
    %2345 = vmatprep.subr.bf16.mxu0 0
    %2346 = vmatpush1.bf16.msra.mxu0 0
    %2347 = vmatprep.subr.bf16.mxu0 0
    %2348 = vmatpush1.bf16.msra.mxu0 0
    %2349 = vmatprep.subr.bf16.mxu0 0
    %2350 = vmatpush1.bf16.msra.mxu0 0
    %2351 = vmatprep.subr.bf16.mxu0 0
    %2352 = vmatpush1.bf16.msra.mxu0 0
    %2353 = vmatprep.subr.bf16.mxu0 0
    %2354 = vmatpush1.bf16.msra.mxu0 0
    %2355 = vmatprep.subr.bf16.mxu0 0
    %2356 = vmatpush1.bf16.msra.mxu0 0
    %2357 = vmatprep.subr.bf16.mxu0 0
    %2358 = vmatpush1.bf16.msra.mxu0 0
    %2359 = vmatprep.subr.bf16.mxu0 0
    %2360 = vmatpush1.bf16.msra.mxu0 0
    %2361 = vmatprep.subr.bf16.mxu0 0
    %2362 = vmatpush1.bf16.msra.mxu0 0
    %2363 = vmatprep.subr.bf16.mxu0 0
    %2364 = vmatpush1.bf16.msra.mxu0 0
    %2365 = vmatprep.subr.bf16.mxu0 0
    %2366 = vmatpush1.bf16.msra.mxu0 0
    %2367 = vmatprep.subr.bf16.mxu0 0
    %2368 = vmatpush1.bf16.msra.mxu0 0
    %2369 = vmatprep.subr.bf16.mxu0 0
    %2370 = vmatpush1.bf16.msra.mxu0 0
    %2371 = vmatprep.mubr.bf16.mxu0 0
    %2372 = vmatmul.mubr.bf16.gmra.mrb[0].mxu0 %v2334
    %v2373 = vpop.f32.mrb[0].mxu0
    %v2374 = vadd.f32 0.0, %v2373
    %v2375 = vpop.f32.mrb[0].mxu0
    %v2376 = vpop.f32.mrb[0].mxu0
    %v2377 = vpop.f32.mrb[0].mxu0
    %2378 = vdwg.mxu0
    %v2379 = vadd.f32 %v2165, %v2325
    %v2380 = vadd.f32 %v2166, %v2374
    %s2381 = scalar_lea.vmem %s5, 16
    %v2382 = vld [vmem:[%s2381] sm:$0xf]
    %v2383 = vld [vmem:[%s2381 + $0x4] sm:$0xf]
    %v2384 = vld [vmem:[%s2381 + $0x8] sm:$0xf]
    %v2385 = vld [vmem:[%s2381 + $0xc] sm:$0xf]
    %s2386 = scalar_lea.vmem %s6, 1
    %v2387 = vld [vmem:[%s2386] sm:$0x1]
    %v2388 = vpack.c.bf16 %v2380, %v2379
    %v2390 = vlaneseq
    %v2391 = vshrl.u32 %v2390, 7
    %v2392 = vsub.s32 0, %v2391
    %v2393 = vrot.slane %v2387, %v2392
    %v2399 = vunpack.c.l.b16 %v2382
    %v2400 = vunpack.c.l.b16 %v2383
    %v2401 = vunpack.c.l.b16 %v2384
    %v2402 = vunpack.c.l.b16 %v2385
    %v2403 = vpack.c.b16 %v2400, %v2399
    %v2404 = vpack.c.b16 %v2402, %v2401
    %v2408 = vsel %vm211, %v2388, 0
    %2410 = vmatprep.subr.bf16.mxu0 0
    %2411 = vmatpush1.bf16.msra.mxu0 %v2403
    %2412 = vmatprep.subr.bf16.mxu0 0
    %2413 = vmatpush1.bf16.msra.mxu0 %v2404
    %2414 = vmatprep.subr.bf16.mxu0 0
    %2415 = vmatpush1.bf16.msra.mxu0 0
    %2416 = vmatprep.subr.bf16.mxu0 0
    %2417 = vmatpush1.bf16.msra.mxu0 0
    %2418 = vmatprep.subr.bf16.mxu0 0
    %2419 = vmatpush1.bf16.msra.mxu0 0
    %2420 = vmatprep.subr.bf16.mxu0 0
    %2421 = vmatpush1.bf16.msra.mxu0 0
    %2422 = vmatprep.subr.bf16.mxu0 0
    %2423 = vmatpush1.bf16.msra.mxu0 0
    %2424 = vmatprep.subr.bf16.mxu0 0
    %2425 = vmatpush1.bf16.msra.mxu0 0
    %2426 = vmatprep.subr.bf16.mxu0 0
    %2427 = vmatpush1.bf16.msra.mxu0 0
    %2428 = vmatprep.subr.bf16.mxu0 0
    %2429 = vmatpush1.bf16.msra.mxu0 0
    %2430 = vmatprep.subr.bf16.mxu0 0
    %2431 = vmatpush1.bf16.msra.mxu0 0
    %2432 = vmatprep.subr.bf16.mxu0 0
    %2433 = vmatpush1.bf16.msra.mxu0 0
    %2434 = vmatprep.subr.bf16.mxu0 0
    %2435 = vmatpush1.bf16.msra.mxu0 0
    %2436 = vmatprep.subr.bf16.mxu0 0
    %2437 = vmatpush1.bf16.msra.mxu0 0
    %2438 = vmatprep.subr.bf16.mxu0 0
    %2439 = vmatpush1.bf16.msra.mxu0 0
    %2440 = vmatprep.subr.bf16.mxu0 0
    %2441 = vmatpush1.bf16.msra.mxu0 0
    %2442 = vmatprep.mubr.bf16.mxu0 0
    %2443 = vmatmul.mubr.bf16.gmra.mrb[0].mxu0 %v2408
    %v2444 = vpop.f32.mrb[0].mxu0
    %v2445 = vadd.f32 %v2393, %v2444
    %v2446 = vpop.f32.mrb[0].mxu0
    %v2447 = vpop.f32.mrb[0].mxu0
    %v2448 = vadd.f32 %v2393, %v2447
    %v2449 = vpop.f32.mrb[0].mxu0
    %2450 = vdwg.mxu0
    %s2451 = scalar_lea.vmem %s7, 4
    %v2452 = vld [vmem:[%s2451] sm:$0xf]
    %v2453 = vadd.f32 %v1443, %v2445
    %v2454 = vadd.f32 %v1444, %v2448
    %v2455 = vsel %vm211, %v2453, 0.0
    %2456 = vadd.xlane.f32.xlu0 %v2455
    %v2457 = vpop.xlane.xlu0 %2456
    %v2458 = vsel %vm211, %v2454, 0.0
    %2459 = vadd.xlane.f32.xlu0 %v2458
    %v2460 = vpop.xlane.xlu0 %2459
    %v2461 = vmul.f32 %v2457, %v1217
    %v2462 = vmul.f32 %v2460, %v1217
    %v2463 = vsub.f32 %v2453, %v2461
    %v2464 = vsub.f32 %v2454, %v2462
    %v2465 = vmul.f32 %v2463, %v2463
    %v2466 = vmul.f32 %v2464, %v2464
    %v2467 = vsel %vm211, %v2465, 0.0
    %2468 = vadd.xlane.f32.xlu0 %v2467
    %v2469 = vpop.xlane.xlu0 %2468
    %v2470 = vsel %vm211, %v2466, 0.0
    %2471 = vadd.xlane.f32.xlu0 %v2470
    %v2472 = vpop.xlane.xlu0 %2471
    %v2473 = vmul.f32 %v2469, %v1217
    %v2474 = vmul.f32 %v2472, %v1217
    %v2475 = vadd.f32 %v2473, 1e-05
    %v2476 = vadd.f32 %v2474, 1e-05
    %v2477 = vrsqrt.pop %v2475
    %v2478 = vrsqrt.pop %v2476
    %v2479 = vmul.f32 %v2463, %v2477
    %v2480 = vmul.f32 %v2464, %v2478
    %v2481 = vlaneseq
    %v2482 = vshrl.u32 %v2481, 7
    %v2483 = vsub.s32 0, %v2482
    %v2484 = vrot.slane %v2452, %v2483
    %v2485 = vmul.f32 %v2479, %v2484
    %v2486 = vmul.f32 %v2480, %v2484
    %v2487 = vlaneseq
    %v2488 = vshrl.u32 %v2487, 7
    %v2489 = vsub.s32 1, %v2488
    %v2490 = vrot.slane %v2452, %v2489
    %v2491 = vadd.f32 %v2485, %v2490
    %v2492 = vadd.f32 %v2486, %v2490
    %s2493 = scalar_lea.vmem %s8, 16
    %v2494 = vld [vmem:[%s2493] sm:$0xf]
    %v2495 = vld [vmem:[%s2493 + $0x4] sm:$0xf]
    %v2496 = vld [vmem:[%s2493 + $0x8] sm:$0xf]
    %v2497 = vld [vmem:[%s2493 + $0xc] sm:$0xf]
    %s2498 = scalar_lea.vmem %s9, 1
    %v2499 = vld [vmem:[%s2498] sm:$0x1]
    %v2500 = vpack.c.bf16 %v2492, %v2491
    %v2502 = vlaneseq
    %v2503 = vshrl.u32 %v2502, 7
    %v2504 = vsub.s32 0, %v2503
    %v2505 = vrot.slane %v2499, %v2504
    %v2511 = vunpack.c.l.b16 %v2494
    %v2512 = vunpack.c.l.b16 %v2495
    %v2513 = vunpack.c.l.b16 %v2496
    %v2514 = vunpack.c.l.b16 %v2497
    %v2515 = vpack.c.b16 %v2512, %v2511
    %v2516 = vpack.c.b16 %v2514, %v2513
    %v2520 = vsel %vm211, %v2500, 0
    %2522 = vmatprep.subr.bf16.mxu0 0
    %2523 = vmatpush1.bf16.msra.mxu0 %v2515
    %2524 = vmatprep.subr.bf16.mxu0 0
    %2525 = vmatpush1.bf16.msra.mxu0 %v2516
    %2526 = vmatprep.subr.bf16.mxu0 0
    %2527 = vmatpush1.bf16.msra.mxu0 0
    %2528 = vmatprep.subr.bf16.mxu0 0
    %2529 = vmatpush1.bf16.msra.mxu0 0
    %2530 = vmatprep.subr.bf16.mxu0 0
    %2531 = vmatpush1.bf16.msra.mxu0 0
    %2532 = vmatprep.subr.bf16.mxu0 0
    %2533 = vmatpush1.bf16.msra.mxu0 0
    %2534 = vmatprep.subr.bf16.mxu0 0
    %2535 = vmatpush1.bf16.msra.mxu0 0
    %2536 = vmatprep.subr.bf16.mxu0 0
    %2537 = vmatpush1.bf16.msra.mxu0 0
    %2538 = vmatprep.subr.bf16.mxu0 0
    %2539 = vmatpush1.bf16.msra.mxu0 0
    %2540 = vmatprep.subr.bf16.mxu0 0
    %2541 = vmatpush1.bf16.msra.mxu0 0
    %2542 = vmatprep.subr.bf16.mxu0 0
    %2543 = vmatpush1.bf16.msra.mxu0 0
    %2544 = vmatprep.subr.bf16.mxu0 0
    %2545 = vmatpush1.bf16.msra.mxu0 0
    %2546 = vmatprep.subr.bf16.mxu0 0
    %2547 = vmatpush1.bf16.msra.mxu0 0
    %2548 = vmatprep.subr.bf16.mxu0 0
    %2549 = vmatpush1.bf16.msra.mxu0 0
    %2550 = vmatprep.subr.bf16.mxu0 0
    %2551 = vmatpush1.bf16.msra.mxu0 0
    %2552 = vmatprep.subr.bf16.mxu0 0
    %2553 = vmatpush1.bf16.msra.mxu0 0
    %2554 = vmatprep.mubr.bf16.mxu0 0
    %2555 = vmatmul.mubr.bf16.gmra.mrb[0].mxu0 %v2520
    %v2556 = vpop.f32.mrb[0].mxu0
    %v2557 = vadd.f32 %v2505, %v2556
    %v2558 = vpop.f32.mrb[0].mxu0
    %v2559 = vpop.f32.mrb[0].mxu0
    %v2560 = vadd.f32 %v2505, %v2559
    %v2561 = vpop.f32.mrb[0].mxu0
    %2562 = vdwg.mxu0
    %v2563 = vmax.f32 %v2557, 0.0
    %v2564 = vmax.f32 %v2560, 0.0
    %s2565 = scalar_lea.vmem %s10, 32
    %v2566 = vld [vmem:[%s2565] sm:$0xf]
    %v2567 = vld [vmem:[%s2565 + $0x4] sm:$0xf]
    %v2568 = vld [vmem:[%s2565 + $0x8] sm:$0xf]
    %v2569 = vld [vmem:[%s2565 + $0xc] sm:$0xf]
    %v2570 = vld [vmem:[%s2565 + $0x10] sm:$0xf]
    %v2571 = vld [vmem:[%s2565 + $0x14] sm:$0xf]
    %v2572 = vld [vmem:[%s2565 + $0x18] sm:$0xf]
    %v2573 = vld [vmem:[%s2565 + $0x1c] sm:$0xf]
    %s2574 = scalar_lea.vmem %s11, 1
    %v2575 = vld [vmem:[%s2574] sm:$0x1]
    %v2576 = vpack.c.bf16 %v2564, %v2563
    %v2578 = vlaneseq
    %v2579 = vshrl.u32 %v2578, 7
    %v2580 = vsub.s32 0, %v2579
    %v2581 = vrot.slane %v2575, %v2580
    %v2591 = vunpack.c.l.b16 %v2566
    %v2592 = vunpack.c.l.b16 %v2567
    %v2593 = vunpack.c.l.b16 %v2568
    %v2594 = vunpack.c.l.b16 %v2569
    %v2595 = vunpack.c.l.b16 %v2570
    %v2596 = vunpack.c.l.b16 %v2571
    %v2597 = vunpack.c.l.b16 %v2572
    %v2598 = vunpack.c.l.b16 %v2573
    %v2599 = vpack.c.b16 %v2592, %v2591
    %v2600 = vpack.c.b16 %v2594, %v2593
    %v2601 = vpack.c.b16 %v2596, %v2595
    %v2602 = vpack.c.b16 %v2598, %v2597
    %v2608 = vsel %vm1360, %v2576, 0
    %2610 = vmatprep.subr.bf16.mxu0 0
    %2611 = vmatpush1.bf16.msra.mxu0 %v2599
    %2612 = vmatprep.subr.bf16.mxu0 0
    %2613 = vmatpush1.bf16.msra.mxu0 %v2600
    %2614 = vmatprep.subr.bf16.mxu0 0
    %2615 = vmatpush1.bf16.msra.mxu0 %v2601
    %2616 = vmatprep.subr.bf16.mxu0 0
    %2617 = vmatpush1.bf16.msra.mxu0 %v2602
    %2618 = vmatprep.subr.bf16.mxu0 0
    %2619 = vmatpush1.bf16.msra.mxu0 0
    %2620 = vmatprep.subr.bf16.mxu0 0
    %2621 = vmatpush1.bf16.msra.mxu0 0
    %2622 = vmatprep.subr.bf16.mxu0 0
    %2623 = vmatpush1.bf16.msra.mxu0 0
    %2624 = vmatprep.subr.bf16.mxu0 0
    %2625 = vmatpush1.bf16.msra.mxu0 0
    %2626 = vmatprep.subr.bf16.mxu0 0
    %2627 = vmatpush1.bf16.msra.mxu0 0
    %2628 = vmatprep.subr.bf16.mxu0 0
    %2629 = vmatpush1.bf16.msra.mxu0 0
    %2630 = vmatprep.subr.bf16.mxu0 0
    %2631 = vmatpush1.bf16.msra.mxu0 0
    %2632 = vmatprep.subr.bf16.mxu0 0
    %2633 = vmatpush1.bf16.msra.mxu0 0
    %2634 = vmatprep.subr.bf16.mxu0 0
    %2635 = vmatpush1.bf16.msra.mxu0 0
    %2636 = vmatprep.subr.bf16.mxu0 0
    %2637 = vmatpush1.bf16.msra.mxu0 0
    %2638 = vmatprep.subr.bf16.mxu0 0
    %2639 = vmatpush1.bf16.msra.mxu0 0
    %2640 = vmatprep.subr.bf16.mxu0 0
    %2641 = vmatpush1.bf16.msra.mxu0 0
    %2642 = vmatprep.mubr.bf16.mxu0 0
    %2643 = vmatmul.mubr.bf16.gmra.mrb[0].mxu0 %v2608
    %v2644 = vpop.f32.mrb[0].mxu0
    %v2645 = vadd.f32 %v2581, %v2644
    %v2646 = vpop.f32.mrb[0].mxu0
    %v2647 = vpop.f32.mrb[0].mxu0
    %v2648 = vadd.f32 %v2581, %v2647
    %v2649 = vpop.f32.mrb[0].mxu0
    %2650 = vdwg.mxu0
    %v2651 = vadd.f32 %v2491, %v2645
    %v2652 = vadd.f32 %v2492, %v2648
    %v2653 = vsel %vm211, %v2651, 0.0
    %2654 = vadd.xlane.f32.xlu0 %v2653
    %v2655 = vpop.xlane.xlu0 %2654
    %v2656 = vsel %vm211, %v2652, 0.0
    %2657 = vadd.xlane.f32.xlu0 %v2656
    %v2658 = vpop.xlane.xlu0 %2657
    %v2659 = vmul.f32 %v2655, %v1217
    %v2660 = vmul.f32 %v2658, %v1217
    %v2661 = vsub.f32 %v2651, %v2659
    %v2662 = vsub.f32 %v2652, %v2660
    %v2663 = vmul.f32 %v2661, %v2661
    %v2664 = vmul.f32 %v2662, %v2662
    %v2665 = vsel %vm211, %v2663, 0.0
    %2666 = vadd.xlane.f32.xlu0 %v2665
    %v2667 = vpop.xlane.xlu0 %2666
    %v2668 = vsel %vm211, %v2664, 0.0
    %2669 = vadd.xlane.f32.xlu0 %v2668
    %v2670 = vpop.xlane.xlu0 %2669
    %v2671 = vmul.f32 %v2667, %v1217
    %v2672 = vmul.f32 %v2670, %v1217
    %v2673 = vadd.f32 %v2671, 1e-05
    %v2674 = vadd.f32 %v2672, 1e-05
    %v2675 = vrsqrt.pop %v2673
    %v2676 = vrsqrt.pop %v2674
    %v2677 = vmul.f32 %v2661, %v2675
    %v2678 = vmul.f32 %v2662, %v2676
    %v2679 = vlaneseq
    %v2680 = vshrl.u32 %v2679, 7
    %v2681 = vsub.s32 2, %v2680
    %v2682 = vrot.slane %v2452, %v2681
    %v2683 = vmul.f32 %v2677, %v2682
    %v2684 = vmul.f32 %v2678, %v2682
    %v2685 = vlaneseq
    %v2686 = vshrl.u32 %v2685, 7
    %v2687 = vsub.s32 3, %v2686
    %v2688 = vrot.slane %v2452, %v2687
    %v2689 = vadd.f32 %v2683, %v2688
    %v2690 = vadd.f32 %v2684, %v2688
    %v2691 = vld [vmem:[%s12] sm:$0xf]
    %v2692 = vld [vmem:[%s12 + $0x4] sm:$0xf]
    %v2693 = vld [vmem:[%s12 + $0x8] sm:$0xf]
    %v2694 = vld [vmem:[%s12 + $0xc] sm:$0xf]
    %v2695 = vld [vmem:[%s13] sm:$0x1]
    %v2696 = vpack.c.bf16 %v2690, %v2689
    %v2698 = vlaneseq
    %v2699 = vshrl.u32 %v2698, 7
    %v2700 = vsub.s32 0, %v2699
    %v2701 = vrot.slane %v2695, %v2700
    %v2707 = vunpack.c.l.b16 %v2691
    %v2708 = vunpack.c.l.b16 %v2692
    %v2709 = vunpack.c.l.b16 %v2693
    %v2710 = vunpack.c.l.b16 %v2694
    %v2711 = vpack.c.b16 %v2708, %v2707
    %v2712 = vpack.c.b16 %v2710, %v2709
    %v2716 = vsel %vm211, %v2696, 0
    %2718 = vmatprep.subr.bf16.mxu0 0
    %2719 = vmatpush1.bf16.msra.mxu0 %v2711
    %2720 = vmatprep.subr.bf16.mxu0 0
    %2721 = vmatpush1.bf16.msra.mxu0 %v2712
    %2722 = vmatprep.subr.bf16.mxu0 0
    %2723 = vmatpush1.bf16.msra.mxu0 0
    %2724 = vmatprep.subr.bf16.mxu0 0
    %2725 = vmatpush1.bf16.msra.mxu0 0
    %2726 = vmatprep.subr.bf16.mxu0 0
    %2727 = vmatpush1.bf16.msra.mxu0 0
    %2728 = vmatprep.subr.bf16.mxu0 0
    %2729 = vmatpush1.bf16.msra.mxu0 0
    %2730 = vmatprep.subr.bf16.mxu0 0
    %2731 = vmatpush1.bf16.msra.mxu0 0
    %2732 = vmatprep.subr.bf16.mxu0 0
    %2733 = vmatpush1.bf16.msra.mxu0 0
    %2734 = vmatprep.subr.bf16.mxu0 0
    %2735 = vmatpush1.bf16.msra.mxu0 0
    %2736 = vmatprep.subr.bf16.mxu0 0
    %2737 = vmatpush1.bf16.msra.mxu0 0
    %2738 = vmatprep.subr.bf16.mxu0 0
    %2739 = vmatpush1.bf16.msra.mxu0 0
    %2740 = vmatprep.subr.bf16.mxu0 0
    %2741 = vmatpush1.bf16.msra.mxu0 0
    %2742 = vmatprep.subr.bf16.mxu0 0
    %2743 = vmatpush1.bf16.msra.mxu0 0
    %2744 = vmatprep.subr.bf16.mxu0 0
    %2745 = vmatpush1.bf16.msra.mxu0 0
    %2746 = vmatprep.subr.bf16.mxu0 0
    %2747 = vmatpush1.bf16.msra.mxu0 0
    %2748 = vmatprep.subr.bf16.mxu0 0
    %2749 = vmatpush1.bf16.msra.mxu0 0
    %2750 = vmatprep.mubr.bf16.mxu0 0
    %2751 = vmatmul.mubr.bf16.gmra.mrb[0].mxu0 %v2716
    %v2752 = vpop.f32.mrb[0].mxu0
    %v2753 = vadd.f32 %v2701, %v2752
    %v2754 = vpop.f32.mrb[0].mxu0
    %v2755 = vpop.f32.mrb[0].mxu0
    %v2756 = vadd.f32 %v2701, %v2755
    %v2757 = vpop.f32.mrb[0].mxu0
    %2758 = vdwg.mxu0
    %2759 = vst.msk [vmem:[#allocation6] sm:$0xff] %vm1360, %v2753
    %2760 = vst.msk [vmem:[#allocation6 + $0x8] sm:$0xff] %vm1360, %v2756
    // Predicated region
    $region62: #{tpu_custom_call.1} parent=1 // pred_check
      _
    $region63: #{tpu_custom_call.1} parent=1 // pred_check_branch
      %2762 = sbr.rel (0) target = $region65
    $region64: #{tpu_custom_call.1} parent=1 // pred_region
      %s2764 = ssub.s32 256, 256
      %2765 = vsyncadd [#allocation4], %s2764
      %s2766 = sshll.u32 [#allocation6], 4
      %s2767 = int_to_ptr.vmem [resolvable:$true] %s2766
      %2772 = dma.vmem_to_hbm [thread:$0]  %s2767, 256, %s14, [#allocation4], 128, 128, 8
    $region65: #{tpu_custom_call.1} parent=1 // pred_fallthru
      _
    // Predicated region
    $region66: #{tpu_custom_call.1} parent=1 // pred_check
      _
    $region67: #{tpu_custom_call.1} parent=1 // pred_check_branch
      %2774 = sbr.rel (0) target = $region69
    $region68: #{tpu_custom_call.1} parent=1 // pred_region
      %2775 = dma.done [#allocation4], 256
    $region69: #{tpu_custom_call.1} parent=1 // pred_fallthru
      _
    %2776 = vsyncpa [#allocation4], 1
    %2777 = vsyncpa [#allocation5], 1

</llo_original>
